<compile_context>
chip_gen: v5e
topology: v5e:2x2
jax: 0.10.0
libtpu: 0.0.40
codegen_flags: <defaults>
</compile_context>

<pallas_src>
import functools

import jax
import jax.numpy as jnp
from jax import lax
from jax.experimental import pallas as pl
from jax.experimental.pallas import tpu as pltpu


def _round_up(x, m):
    return ((x + m - 1) // m) * m


# PyTorch LSTM gate order along the weight rows is [i, f, g, o]; the kernel uses
# [i, f, o, g] so the three sigmoid gates are contiguous (one wide EUP push).
_GATE_ORDER = (0, 1, 3, 2)


def _lstm_reg_kernel(x2d_ref,                        # (S*Bp, I)
                     wih0_ref, whh0_ref, b0_ref,     # (I, 4Hp), (Hp, 4Hp), (1, 4Hp)
                     wih1_ref, whh1_ref, b1_ref,     # (Hp, 4Hp), (Hp, 4Hp), (1, 4Hp)
                     wreg_ref, breg_ref,             # (Hp, Op), (1, Op)
                     out_ref,                        # (S*Bp, Op)
                     xg_scr,                         # VMEM (S*Bp, 4Hp) gate precompute
                     h_scr,                          # VMEM (S*Bp, Hp) per-layer hidden states
                     *, seq, b_pad, h_pad, unroll):

    def run_layer(whh_ref):
        h0 = jnp.zeros((b_pad, h_pad), jnp.float32)
        c0 = jnp.zeros((b_pad, h_pad), jnp.float32)

        def body(t, hc):
            h, c = hc
            row = pl.multiple_of(t * b_pad, b_pad)
            # Input projection + bias is precomputed in xg_scr; only the
            # recurrent h @ Whh matmul sits on the serial path.  The weight ref
            # is indexed *inside* the dot: no 64-vreg Whh value lives across the
            # unrolled loop.
            gates = xg_scr[pl.ds(row, b_pad), :] + jnp.dot(
                h, whh_ref[...], preferred_element_type=jnp.float32)
            # Gate layout (reordered in wrapper): [i, f, o, g].
            # sigmoid(x) = 0.5*tanh(0.5*x) + 0.5  -> single EUP push over 3 gates.
            sig = 0.5 * jnp.tanh(0.5 * gates[:, :3 * h_pad]) + 0.5
            g = jnp.tanh(gates[:, 3 * h_pad:])
            i = sig[:, 0 * h_pad:1 * h_pad]
            f = sig[:, 1 * h_pad:2 * h_pad]
            o = sig[:, 2 * h_pad:3 * h_pad]
            c_new = f * c + i * g
            h_new = o * jnp.tanh(c_new)
            h_scr[pl.ds(row, b_pad), :] = h_new
            return (h_new, c_new)

        lax.fori_loop(0, seq, body, (h0, c0), unroll=unroll)

    # ----- Layer 0: batched input projection (hoisted), then recurrence -----
    xg_scr[...] = jnp.dot(x2d_ref[...], wih0_ref[...],
                          preferred_element_type=jnp.float32) + b0_ref[...]
    run_layer(whh0_ref)

    # ----- Layer 1: batched input projection of layer-0 outputs, recurrence -----
    xg_scr[...] = jnp.dot(h_scr[...], wih1_ref[...],
                          preferred_element_type=jnp.float32) + b1_ref[...]
    run_layer(whh1_ref)

    # ----- Linear head: one batched matmul + one lane-dense bulk store -----
    out_ref[...] = jnp.dot(h_scr[...], wreg_ref[...],
                           preferred_element_type=jnp.float32) + breg_ref[...]


def lstm_reg_forward(x, params):
    """x: (seq, batch, input_size) f32 -> (seq, batch, output_size) f32."""
    S, B, I = x.shape
    H = params["whh0"].shape[1]                      # whh0: (4H, H)
    O = params["wreg"].shape[0]                      # wreg: (O, H)

    B_pad = _round_up(B, 8)                          # full sublane group
    H_pad = _round_up(H, 128)                        # lane-aligned gate slices
    O_pad = _round_up(O, 128)                        # lane-dense output store

    order = jnp.array(_GATE_ORDER)

    def pad_gate_w(w, in_pad):
        # w: (4H, in_dim) PyTorch layout -> (in_pad, 4*H_pad), gates reordered
        # to [i, f, o, g] and each gate block zero-padded to H_pad lanes.
        in_dim = w.shape[1]
        w4 = w.reshape(4, H, in_dim)[order]
        w4 = jnp.pad(w4, ((0, 0), (0, H_pad - H), (0, in_pad - in_dim)))
        return jnp.transpose(w4, (2, 0, 1)).reshape(in_pad, 4 * H_pad)

    def pad_gate_b(b):
        b4 = b.reshape(4, H)[order]
        b4 = jnp.pad(b4, ((0, 0), (0, H_pad - H)))
        return b4.reshape(1, 4 * H_pad)

    x_p = jnp.pad(x, ((0, 0), (0, B_pad - B), (0, 0))).reshape(S * B_pad, I)

    args = (
        x_p,
        pad_gate_w(params["wih0"], I),                                 # (I, 4Hp)
        pad_gate_w(params["whh0"], H_pad),                             # (Hp, 4Hp)
        pad_gate_b(params["bih0"] + params["bhh0"]),                   # (1, 4Hp)
        pad_gate_w(params["wih1"], H_pad),                             # (Hp, 4Hp)
        pad_gate_w(params["whh1"], H_pad),                             # (Hp, 4Hp)
        pad_gate_b(params["bih1"] + params["bhh1"]),                   # (1, 4Hp)
        jnp.pad(params["wreg"].T, ((0, H_pad - H), (0, O_pad - O))),   # (Hp, Op)
        jnp.pad(params["breg"], (0, O_pad - O)).reshape(1, O_pad),     # (1, Op)
    )

    def full_spec(a):
        nd = a.ndim
        return pl.BlockSpec(a.shape, lambda i, _nd=nd: (0,) * _nd)

    # Size the scoped VMEM limit from the actual footprint instead of the
    # 16/32 MiB default (inputs/outputs counted twice for pipeline buffers).
    def nbytes(shape):
        n = 1
        for s in shape:
            n *= s
        return 4 * n

    io_bytes = sum(nbytes(a.shape) for a in args) + nbytes((S * B_pad, O_pad))
    scratch_bytes = nbytes((S * B_pad, 4 * H_pad)) + nbytes((S * B_pad, H_pad))
    vmem_limit = int(min(max(2 * io_bytes + scratch_bytes + (4 << 20), 32 << 20),
                         100 << 20))

    # Bounded partial unroll: full for tiny sequences, factor 8 otherwise.
    unroll = S if S <= 16 else 8

    kernel = functools.partial(_lstm_reg_kernel, seq=S, b_pad=B_pad,
                               h_pad=H_pad, unroll=unroll)

    out2d = pl.pallas_call(
        kernel,
        out_shape=jax.ShapeDtypeStruct((S * B_pad, O_pad), jnp.float32),
        grid_spec=pltpu.PrefetchScalarGridSpec(
            num_scalar_prefetch=0,
            grid=(1,),
            in_specs=[full_spec(a) for a in args],
            out_specs=pl.BlockSpec((S * B_pad, O_pad), lambda i: (0, 0)),
            scratch_shapes=[
                pltpu.VMEM((S * B_pad, 4 * H_pad), jnp.float32),   # gate precompute
                pltpu.VMEM((S * B_pad, H_pad), jnp.float32),       # layer hidden states
            ],
        ),
        compiler_params=pltpu.CompilerParams(
            dimension_semantics=("arbitrary",),
            vmem_limit_bytes=vmem_limit),
    )(*args)

    # Strip batch / output-lane padding and restore (seq, batch, output) layout.
    return out2d.reshape(S, B_pad, O_pad)[:, :B, :O]


def init_params(key, input_size, hidden_size, output_size):
    """Deterministic parameter init mimicking PyTorch uniform(-1/sqrt(H), 1/sqrt(H))."""
    k = 1.0 / jnp.sqrt(jnp.float32(hidden_size))
    keys = jax.random.split(key, 10)
    u = lambda kk, shape: jax.random.uniform(kk, shape, jnp.float32, -k, k)
    return {
        # layer 0
        "wih0": u(keys[0], (4 * hidden_size, input_size)),
        "whh0": u(keys[1], (4 * hidden_size, hidden_size)),
        "bih0": u(keys[2], (4 * hidden_size,)),
        "bhh0": u(keys[3], (4 * hidden_size,)),
        # layer 1
        "wih1": u(keys[4], (4 * hidden_size, hidden_size)),
        "whh1": u(keys[5], (4 * hidden_size, hidden_size)),
        "bih1": u(keys[6], (4 * hidden_size,)),
        "bhh1": u(keys[7], (4 * hidden_size,)),
        # linear head
        "wreg": u(keys[8], (output_size, hidden_size)),
        "breg": u(keys[9], (output_size,)),
    }


def lstm_reg_reference(x, params):
    """Pure-JAX reference for correctness checking (matches PyTorch semantics)."""
    hidden = params["whh0"].shape[1]

    def cell(x_t, h, c, wih, whh, b):
        gates = x_t @ wih.T + h @ whh.T + b
        i = jax.nn.sigmoid(gates[:, 0 * hidden:1 * hidden])
        f = jax.nn.sigmoid(gates[:, 1 * hidden:2 * hidden])
        g = jnp.tanh(gates[:, 2 * hidden:3 * hidden])
        o = jax.nn.sigmoid(gates[:, 3 * hidden:4 * hidden])
        c = f * c + i * g
        h = o * jnp.tanh(c)
        return h, c

    def run_layer(inp, wih, whh, b):
        batch = inp.shape[1]
        h = jnp.zeros((batch, hidden), jnp.float32)
        c = jnp.zeros((batch, hidden), jnp.float32)

        def step(carry, x_t):
            h, c = carry
            h, c = cell(x_t, h, c, wih, whh, b)
            return (h, c), h

        _, ys = lax.scan(step, (h, c), inp)
        return ys

    y0 = run_layer(x, params["wih0"], params["whh0"], params["bih0"] + params["bhh0"])
    y1 = run_layer(y0, params["wih1"], params["whh1"], params["bih1"] + params["bhh1"])
    return y1 @ params["wreg"].T + params["breg"]


if __name__ == "__main__":
    seq, batch, input_size, hidden_size, output_size = 8, 2, 4, 32, 1

    key = jax.random.PRNGKey(0)
    kx, kp = jax.random.split(key)
    x = jax.random.normal(kx, (seq, batch, input_size), jnp.float32)
    params = init_params(kp, input_size, hidden_size, output_size)

    out = lstm_reg_forward(x, params)
    out = jax.block_until_ready(out)

    ref = lstm_reg_reference(x, params)
    assert out.shape == (seq, batch, output_size)
    assert jnp.allclose(out, ref, rtol=1e-3, atol=1e-3)

    print("KERNEL_OK")
</pallas_src>

<mosaic_0001>
module attributes {stable_mosaic.version = 11 : i64} {
  func.func @_lstm_reg_kernel(%arg0: i32, %arg1: memref<64x4xf32, #tpu.memory_space<vmem>>, %arg2: memref<4x512xf32, #tpu.memory_space<vmem>>, %arg3: memref<128x512xf32, #tpu.memory_space<vmem>>, %arg4: memref<1x512xf32, #tpu.memory_space<vmem>>, %arg5: memref<128x512xf32, #tpu.memory_space<vmem>>, %arg6: memref<128x512xf32, #tpu.memory_space<vmem>>, %arg7: memref<1x512xf32, #tpu.memory_space<vmem>>, %arg8: memref<128x128xf32, #tpu.memory_space<vmem>>, %arg9: memref<1x128xf32, #tpu.memory_space<vmem>>, %arg10: memref<64x128xf32, #tpu.memory_space<vmem>>, %arg11: memref<64x512xf32, #tpu.memory_space<vmem>>, %arg12: memref<64x128xf32, #tpu.memory_space<vmem>>) attributes {dimension_semantics = [#tpu.dimension_semantics<arbitrary>], iteration_bounds = array<i64: 1>, scalar_prefetch = 0 : i64, scratch_operands = 2 : i64, tpu.core_type = #tpu.core_type<tc>, window_params = [{pipeline_mode = #tpu.pipeline_mode<synchronous>, transform_indices = @transform_0, window_bounds = array<i64: 64, 4>}, {pipeline_mode = #tpu.pipeline_mode<synchronous>, transform_indices = @transform_1, window_bounds = array<i64: 4, 512>}, {pipeline_mode = #tpu.pipeline_mode<synchronous>, transform_indices = @transform_2, window_bounds = array<i64: 128, 512>}, {pipeline_mode = #tpu.pipeline_mode<synchronous>, transform_indices = @transform_3, window_bounds = array<i64: 1, 512>}, {pipeline_mode = #tpu.pipeline_mode<synchronous>, transform_indices = @transform_4, window_bounds = array<i64: 128, 512>}, {pipeline_mode = #tpu.pipeline_mode<synchronous>, transform_indices = @transform_5, window_bounds = array<i64: 128, 512>}, {pipeline_mode = #tpu.pipeline_mode<synchronous>, transform_indices = @transform_6, window_bounds = array<i64: 1, 512>}, {pipeline_mode = #tpu.pipeline_mode<synchronous>, transform_indices = @transform_7, window_bounds = array<i64: 128, 128>}, {pipeline_mode = #tpu.pipeline_mode<synchronous>, transform_indices = @transform_8, window_bounds = array<i64: 1, 128>}, {pipeline_mode = #tpu.pipeline_mode<synchronous>, transform_indices = @transform_9, window_bounds = array<i64: 64, 128>}]} {
    %c0 = arith.constant 0 : index
    %c0_0 = arith.constant 0 : index
    %0 = vector.load %arg1[%c0, %c0_0] : memref<64x4xf32, #tpu.memory_space<vmem>>, vector<64x4xf32>
    %c0_1 = arith.constant 0 : index
    %c0_2 = arith.constant 0 : index
    %1 = vector.load %arg2[%c0_1, %c0_2] : memref<4x512xf32, #tpu.memory_space<vmem>>, vector<4x512xf32>
    %cst = arith.constant dense<0.000000e+00> : vector<64x512xf32>
    %2 = tpu.matmul %0, %1, %cst {dimension_numbers = #tpu.dot_dimension_numbers<[1], [0], [0], [1], [0, 0, 1, 1], [], []>} : vector<64x4xf32>, vector<4x512xf32>, vector<64x512xf32> -> vector<64x512xf32>
    %c0_3 = arith.constant 0 : index
    %c0_4 = arith.constant 0 : index
    %3 = vector.load %arg4[%c0_3, %c0_4] : memref<1x512xf32, #tpu.memory_space<vmem>>, vector<1x512xf32>
    %4 = vector.broadcast %3 : vector<1x512xf32> to vector<64x512xf32>
    %5 = arith.addf %2, %4 : vector<64x512xf32>
    %c0_5 = arith.constant 0 : index
    %c0_6 = arith.constant 0 : index
    %6 = vector.load %arg11[%c0_5, %c0_6] : memref<64x512xf32, #tpu.memory_space<vmem>>, vector<64x512xf32>
    tpu.vector_store %arg11[%c0_5, %c0_6], %5 {strides = array<i32>} : memref<64x512xf32, #tpu.memory_space<vmem>>, vector<64x512xf32>,
    %cst_7 = arith.constant 0.000000e+00 : f32
    %7 = vector.broadcast %cst_7 : f32 to vector<8x128xf32>
    %cst_8 = arith.constant 0.000000e+00 : f32
    %8 = vector.broadcast %cst_8 : f32 to vector<8x128xf32>
    %c0_i32 = arith.constant 0 : i32
    %c8_i32 = arith.constant 8 : i32
    %9 = arith.muli %c0_i32, %c8_i32 : i32
    %10 = tpu.assume_multiple %9, 8 : i32
    %11 = arith.index_cast %10 : i32 to index
    %c0_9 = arith.constant 0 : index
    %12 = vector.load %arg11[%11, %c0_9] : memref<64x512xf32, #tpu.memory_space<vmem>>, vector<8x512xf32>
    %c0_10 = arith.constant 0 : index
    %c0_11 = arith.constant 0 : index
    %13 = vector.load %arg3[%c0_10, %c0_11] : memref<128x512xf32, #tpu.memory_space<vmem>>, vector<128x512xf32>
    %cst_12 = arith.constant dense<0.000000e+00> : vector<8x512xf32>
    %14 = tpu.matmul %7, %13, %cst_12 {dimension_numbers = #tpu.dot_dimension_numbers<[1], [0], [0], [1], [0, 0, 1, 1], [], []>} : vector<8x128xf32>, vector<128x512xf32>, vector<8x512xf32> -> vector<8x512xf32>
    %15 = arith.addf %12, %14 : vector<8x512xf32>
    %16 = vector.extract_strided_slice %15 {offsets = [0, 0], sizes = [8, 384], strides = [1, 1]} : vector<8x512xf32> to vector<8x384xf32>
    %cst_13 = arith.constant 5.000000e-01 : f32
    %17 = vector.broadcast %cst_13 : f32 to vector<8x384xf32>
    %18 = arith.mulf %17, %16 : vector<8x384xf32>
    %19 = math.tanh %18 : vector<8x384xf32>
    %cst_14 = arith.constant 5.000000e-01 : f32
    %20 = vector.broadcast %cst_14 : f32 to vector<8x384xf32>
    %21 = arith.mulf %20, %19 : vector<8x384xf32>
    %cst_15 = arith.constant 5.000000e-01 : f32
    %22 = vector.broadcast %cst_15 : f32 to vector<8x384xf32>
    %23 = arith.addf %21, %22 : vector<8x384xf32>
    %24 = vector.extract_strided_slice %15 {offsets = [0, 384], sizes = [8, 128], strides = [1, 1]} : vector<8x512xf32> to vector<8x128xf32>
    %25 = math.tanh %24 : vector<8x128xf32>
    %26 = vector.extract_strided_slice %23 {offsets = [0, 0], sizes = [8, 128], strides = [1, 1]} : vector<8x384xf32> to vector<8x128xf32>
    %27 = vector.extract_strided_slice %23 {offsets = [0, 128], sizes = [8, 128], strides = [1, 1]} : vector<8x384xf32> to vector<8x128xf32>
    %28 = vector.extract_strided_slice %23 {offsets = [0, 256], sizes = [8, 128], strides = [1, 1]} : vector<8x384xf32> to vector<8x128xf32>
    %29 = arith.mulf %27, %8 : vector<8x128xf32>
    %30 = arith.mulf %26, %25 : vector<8x128xf32>
    %31 = arith.addf %29, %30 : vector<8x128xf32>
    %32 = math.tanh %31 : vector<8x128xf32>
    %33 = arith.mulf %28, %32 : vector<8x128xf32>
    %34 = arith.index_cast %10 : i32 to index
    %c0_16 = arith.constant 0 : index
    %35 = vector.load %arg12[%34, %c0_16] : memref<64x128xf32, #tpu.memory_space<vmem>>, vector<8x128xf32>
    tpu.vector_store %arg12[%34, %c0_16], %33 {strides = array<i32>} : memref<64x128xf32, #tpu.memory_space<vmem>>, vector<8x128xf32>,
    %c1_i32 = arith.constant 1 : i32
    %c8_i32_17 = arith.constant 8 : i32
    %36 = arith.muli %c1_i32, %c8_i32_17 : i32
    %37 = tpu.assume_multiple %36, 8 : i32
    %38 = arith.index_cast %37 : i32 to index
    %c0_18 = arith.constant 0 : index
    %39 = vector.load %arg11[%38, %c0_18] : memref<64x512xf32, #tpu.memory_space<vmem>>, vector<8x512xf32>
    %c0_19 = arith.constant 0 : index
    %c0_20 = arith.constant 0 : index
    %40 = vector.load %arg3[%c0_19, %c0_20] : memref<128x512xf32, #tpu.memory_space<vmem>>, vector<128x512xf32>
    %cst_21 = arith.constant dense<0.000000e+00> : vector<8x512xf32>
    %41 = tpu.matmul %33, %40, %cst_21 {dimension_numbers = #tpu.dot_dimension_numbers<[1], [0], [0], [1], [0, 0, 1, 1], [], []>} : vector<8x128xf32>, vector<128x512xf32>, vector<8x512xf32> -> vector<8x512xf32>
    %42 = arith.addf %39, %41 : vector<8x512xf32>
    %43 = vector.extract_strided_slice %42 {offsets = [0, 0], sizes = [8, 384], strides = [1, 1]} : vector<8x512xf32> to vector<8x384xf32>
    %cst_22 = arith.constant 5.000000e-01 : f32
    %44 = vector.broadcast %cst_22 : f32 to vector<8x384xf32>
    %45 = arith.mulf %44, %43 : vector<8x384xf32>
    %46 = math.tanh %45 : vector<8x384xf32>
    %cst_23 = arith.constant 5.000000e-01 : f32
    %47 = vector.broadcast %cst_23 : f32 to vector<8x384xf32>
    %48 = arith.mulf %47, %46 : vector<8x384xf32>
    %cst_24 = arith.constant 5.000000e-01 : f32
    %49 = vector.broadcast %cst_24 : f32 to vector<8x384xf32>
    %50 = arith.addf %48, %49 : vector<8x384xf32>
    %51 = vector.extract_strided_slice %42 {offsets = [0, 384], sizes = [8, 128], strides = [1, 1]} : vector<8x512xf32> to vector<8x128xf32>
    %52 = math.tanh %51 : vector<8x128xf32>
    %53 = vector.extract_strided_slice %50 {offsets = [0, 0], sizes = [8, 128], strides = [1, 1]} : vector<8x384xf32> to vector<8x128xf32>
    %54 = vector.extract_strided_slice %50 {offsets = [0, 128], sizes = [8, 128], strides = [1, 1]} : vector<8x384xf32> to vector<8x128xf32>
    %55 = vector.extract_strided_slice %50 {offsets = [0, 256], sizes = [8, 128], strides = [1, 1]} : vector<8x384xf32> to vector<8x128xf32>
    %56 = arith.mulf %54, %31 : vector<8x128xf32>
    %57 = arith.mulf %53, %52 : vector<8x128xf32>
    %58 = arith.addf %56, %57 : vector<8x128xf32>
    %59 = math.tanh %58 : vector<8x128xf32>
    %60 = arith.mulf %55, %59 : vector<8x128xf32>
    %61 = arith.index_cast %37 : i32 to index
    %c0_25 = arith.constant 0 : index
    %62 = vector.load %arg12[%61, %c0_25] : memref<64x128xf32, #tpu.memory_space<vmem>>, vector<8x128xf32>
    tpu.vector_store %arg12[%61, %c0_25], %60 {strides = array<i32>} : memref<64x128xf32, #tpu.memory_space<vmem>>, vector<8x128xf32>,
    %c2_i32 = arith.constant 2 : i32
    %c8_i32_26 = arith.constant 8 : i32
    %63 = arith.muli %c2_i32, %c8_i32_26 : i32
    %64 = tpu.assume_multiple %63, 8 : i32
    %65 = arith.index_cast %64 : i32 to index
    %c0_27 = arith.constant 0 : index
    %66 = vector.load %arg11[%65, %c0_27] : memref<64x512xf32, #tpu.memory_space<vmem>>, vector<8x512xf32>
    %c0_28 = arith.constant 0 : index
    %c0_29 = arith.constant 0 : index
    %67 = vector.load %arg3[%c0_28, %c0_29] : memref<128x512xf32, #tpu.memory_space<vmem>>, vector<128x512xf32>
    %cst_30 = arith.constant dense<0.000000e+00> : vector<8x512xf32>
    %68 = tpu.matmul %60, %67, %cst_30 {dimension_numbers = #tpu.dot_dimension_numbers<[1], [0], [0], [1], [0, 0, 1, 1], [], []>} : vector<8x128xf32>, vector<128x512xf32>, vector<8x512xf32> -> vector<8x512xf32>
    %69 = arith.addf %66, %68 : vector<8x512xf32>
    %70 = vector.extract_strided_slice %69 {offsets = [0, 0], sizes = [8, 384], strides = [1, 1]} : vector<8x512xf32> to vector<8x384xf32>
    %cst_31 = arith.constant 5.000000e-01 : f32
    %71 = vector.broadcast %cst_31 : f32 to vector<8x384xf32>
    %72 = arith.mulf %71, %70 : vector<8x384xf32>
    %73 = math.tanh %72 : vector<8x384xf32>
    %cst_32 = arith.constant 5.000000e-01 : f32
    %74 = vector.broadcast %cst_32 : f32 to vector<8x384xf32>
    %75 = arith.mulf %74, %73 : vector<8x384xf32>
    %cst_33 = arith.constant 5.000000e-01 : f32
    %76 = vector.broadcast %cst_33 : f32 to vector<8x384xf32>
    %77 = arith.addf %75, %76 : vector<8x384xf32>
    %78 = vector.extract_strided_slice %69 {offsets = [0, 384], sizes = [8, 128], strides = [1, 1]} : vector<8x512xf32> to vector<8x128xf32>
    %79 = math.tanh %78 : vector<8x128xf32>
    %80 = vector.extract_strided_slice %77 {offsets = [0, 0], sizes = [8, 128], strides = [1, 1]} : vector<8x384xf32> to vector<8x128xf32>
    %81 = vector.extract_strided_slice %77 {offsets = [0, 128], sizes = [8, 128], strides = [1, 1]} : vector<8x384xf32> to vector<8x128xf32>
    %82 = vector.extract_strided_slice %77 {offsets = [0, 256], sizes = [8, 128], strides = [1, 1]} : vector<8x384xf32> to vector<8x128xf32>
    %83 = arith.mulf %81, %58 : vector<8x128xf32>
    %84 = arith.mulf %80, %79 : vector<8x128xf32>
    %85 = arith.addf %83, %84 : vector<8x128xf32>
    %86 = math.tanh %85 : vector<8x128xf32>
    %87 = arith.mulf %82, %86 : vector<8x128xf32>
    %88 = arith.index_cast %64 : i32 to index
    %c0_34 = arith.constant 0 : index
    %89 = vector.load %arg12[%88, %c0_34] : memref<64x128xf32, #tpu.memory_space<vmem>>, vector<8x128xf32>
    tpu.vector_store %arg12[%88, %c0_34], %87 {strides = array<i32>} : memref<64x128xf32, #tpu.memory_space<vmem>>, vector<8x128xf32>,
    %c3_i32 = arith.constant 3 : i32
    %c8_i32_35 = arith.constant 8 : i32
    %90 = arith.muli %c3_i32, %c8_i32_35 : i32
    %91 = tpu.assume_multiple %90, 8 : i32
    %92 = arith.index_cast %91 : i32 to index
    %c0_36 = arith.constant 0 : index
    %93 = vector.load %arg11[%92, %c0_36] : memref<64x512xf32, #tpu.memory_space<vmem>>, vector<8x512xf32>
    %c0_37 = arith.constant 0 : index
    %c0_38 = arith.constant 0 : index
    %94 = vector.load %arg3[%c0_37, %c0_38] : memref<128x512xf32, #tpu.memory_space<vmem>>, vector<128x512xf32>
    %cst_39 = arith.constant dense<0.000000e+00> : vector<8x512xf32>
    %95 = tpu.matmul %87, %94, %cst_39 {dimension_numbers = #tpu.dot_dimension_numbers<[1], [0], [0], [1], [0, 0, 1, 1], [], []>} : vector<8x128xf32>, vector<128x512xf32>, vector<8x512xf32> -> vector<8x512xf32>
    %96 = arith.addf %93, %95 : vector<8x512xf32>
    %97 = vector.extract_strided_slice %96 {offsets = [0, 0], sizes = [8, 384], strides = [1, 1]} : vector<8x512xf32> to vector<8x384xf32>
    %cst_40 = arith.constant 5.000000e-01 : f32
    %98 = vector.broadcast %cst_40 : f32 to vector<8x384xf32>
    %99 = arith.mulf %98, %97 : vector<8x384xf32>
    %100 = math.tanh %99 : vector<8x384xf32>
    %cst_41 = arith.constant 5.000000e-01 : f32
    %101 = vector.broadcast %cst_41 : f32 to vector<8x384xf32>
    %102 = arith.mulf %101, %100 : vector<8x384xf32>
    %cst_42 = arith.constant 5.000000e-01 : f32
    %103 = vector.broadcast %cst_42 : f32 to vector<8x384xf32>
    %104 = arith.addf %102, %103 : vector<8x384xf32>
    %105 = vector.extract_strided_slice %96 {offsets = [0, 384], sizes = [8, 128], strides = [1, 1]} : vector<8x512xf32> to vector<8x128xf32>
    %106 = math.tanh %105 : vector<8x128xf32>
    %107 = vector.extract_strided_slice %104 {offsets = [0, 0], sizes = [8, 128], strides = [1, 1]} : vector<8x384xf32> to vector<8x128xf32>
    %108 = vector.extract_strided_slice %104 {offsets = [0, 128], sizes = [8, 128], strides = [1, 1]} : vector<8x384xf32> to vector<8x128xf32>
    %109 = vector.extract_strided_slice %104 {offsets = [0, 256], sizes = [8, 128], strides = [1, 1]} : vector<8x384xf32> to vector<8x128xf32>
    %110 = arith.mulf %108, %85 : vector<8x128xf32>
    %111 = arith.mulf %107, %106 : vector<8x128xf32>
    %112 = arith.addf %110, %111 : vector<8x128xf32>
    %113 = math.tanh %112 : vector<8x128xf32>
    %114 = arith.mulf %109, %113 : vector<8x128xf32>
    %115 = arith.index_cast %91 : i32 to index
    %c0_43 = arith.constant 0 : index
    %116 = vector.load %arg12[%115, %c0_43] : memref<64x128xf32, #tpu.memory_space<vmem>>, vector<8x128xf32>
    tpu.vector_store %arg12[%115, %c0_43], %114 {strides = array<i32>} : memref<64x128xf32, #tpu.memory_space<vmem>>, vector<8x128xf32>,
    %c4_i32 = arith.constant 4 : i32
    %c8_i32_44 = arith.constant 8 : i32
    %117 = arith.muli %c4_i32, %c8_i32_44 : i32
    %118 = tpu.assume_multiple %117, 8 : i32
    %119 = arith.index_cast %118 : i32 to index
    %c0_45 = arith.constant 0 : index
    %120 = vector.load %arg11[%119, %c0_45] : memref<64x512xf32, #tpu.memory_space<vmem>>, vector<8x512xf32>
    %c0_46 = arith.constant 0 : index
    %c0_47 = arith.constant 0 : index
    %121 = vector.load %arg3[%c0_46, %c0_47] : memref<128x512xf32, #tpu.memory_space<vmem>>, vector<128x512xf32>
    %cst_48 = arith.constant dense<0.000000e+00> : vector<8x512xf32>
    %122 = tpu.matmul %114, %121, %cst_48 {dimension_numbers = #tpu.dot_dimension_numbers<[1], [0], [0], [1], [0, 0, 1, 1], [], []>} : vector<8x128xf32>, vector<128x512xf32>, vector<8x512xf32> -> vector<8x512xf32>
    %123 = arith.addf %120, %122 : vector<8x512xf32>
    %124 = vector.extract_strided_slice %123 {offsets = [0, 0], sizes = [8, 384], strides = [1, 1]} : vector<8x512xf32> to vector<8x384xf32>
    %cst_49 = arith.constant 5.000000e-01 : f32
    %125 = vector.broadcast %cst_49 : f32 to vector<8x384xf32>
    %126 = arith.mulf %125, %124 : vector<8x384xf32>
    %127 = math.tanh %126 : vector<8x384xf32>
    %cst_50 = arith.constant 5.000000e-01 : f32
    %128 = vector.broadcast %cst_50 : f32 to vector<8x384xf32>
    %129 = arith.mulf %128, %127 : vector<8x384xf32>
    %cst_51 = arith.constant 5.000000e-01 : f32
    %130 = vector.broadcast %cst_51 : f32 to vector<8x384xf32>
    %131 = arith.addf %129, %130 : vector<8x384xf32>
    %132 = vector.extract_strided_slice %123 {offsets = [0, 384], sizes = [8, 128], strides = [1, 1]} : vector<8x512xf32> to vector<8x128xf32>
    %133 = math.tanh %132 : vector<8x128xf32>
    %134 = vector.extract_strided_slice %131 {offsets = [0, 0], sizes = [8, 128], strides = [1, 1]} : vector<8x384xf32> to vector<8x128xf32>
    %135 = vector.extract_strided_slice %131 {offsets = [0, 128], sizes = [8, 128], strides = [1, 1]} : vector<8x384xf32> to vector<8x128xf32>
    %136 = vector.extract_strided_slice %131 {offsets = [0, 256], sizes = [8, 128], strides = [1, 1]} : vector<8x384xf32> to vector<8x128xf32>
    %137 = arith.mulf %135, %112 : vector<8x128xf32>
    %138 = arith.mulf %134, %133 : vector<8x128xf32>
    %139 = arith.addf %137, %138 : vector<8x128xf32>
    %140 = math.tanh %139 : vector<8x128xf32>
    %141 = arith.mulf %136, %140 : vector<8x128xf32>
    %142 = arith.index_cast %118 : i32 to index
    %c0_52 = arith.constant 0 : index
    %143 = vector.load %arg12[%142, %c0_52] : memref<64x128xf32, #tpu.memory_space<vmem>>, vector<8x128xf32>
    tpu.vector_store %arg12[%142, %c0_52], %141 {strides = array<i32>} : memref<64x128xf32, #tpu.memory_space<vmem>>, vector<8x128xf32>,
    %c5_i32 = arith.constant 5 : i32
    %c8_i32_53 = arith.constant 8 : i32
    %144 = arith.muli %c5_i32, %c8_i32_53 : i32
    %145 = tpu.assume_multiple %144, 8 : i32
    %146 = arith.index_cast %145 : i32 to index
    %c0_54 = arith.constant 0 : index
    %147 = vector.load %arg11[%146, %c0_54] : memref<64x512xf32, #tpu.memory_space<vmem>>, vector<8x512xf32>
    %c0_55 = arith.constant 0 : index
    %c0_56 = arith.constant 0 : index
    %148 = vector.load %arg3[%c0_55, %c0_56] : memref<128x512xf32, #tpu.memory_space<vmem>>, vector<128x512xf32>
    %cst_57 = arith.constant dense<0.000000e+00> : vector<8x512xf32>
    %149 = tpu.matmul %141, %148, %cst_57 {dimension_numbers = #tpu.dot_dimension_numbers<[1], [0], [0], [1], [0, 0, 1, 1], [], []>} : vector<8x128xf32>, vector<128x512xf32>, vector<8x512xf32> -> vector<8x512xf32>
    %150 = arith.addf %147, %149 : vector<8x512xf32>
    %151 = vector.extract_strided_slice %150 {offsets = [0, 0], sizes = [8, 384], strides = [1, 1]} : vector<8x512xf32> to vector<8x384xf32>
    %cst_58 = arith.constant 5.000000e-01 : f32
    %152 = vector.broadcast %cst_58 : f32 to vector<8x384xf32>
    %153 = arith.mulf %152, %151 : vector<8x384xf32>
    %154 = math.tanh %153 : vector<8x384xf32>
    %cst_59 = arith.constant 5.000000e-01 : f32
    %155 = vector.broadcast %cst_59 : f32 to vector<8x384xf32>
    %156 = arith.mulf %155, %154 : vector<8x384xf32>
    %cst_60 = arith.constant 5.000000e-01 : f32
    %157 = vector.broadcast %cst_60 : f32 to vector<8x384xf32>
    %158 = arith.addf %156, %157 : vector<8x384xf32>
    %159 = vector.extract_strided_slice %150 {offsets = [0, 384], sizes = [8, 128], strides = [1, 1]} : vector<8x512xf32> to vector<8x128xf32>
    %160 = math.tanh %159 : vector<8x128xf32>
    %161 = vector.extract_strided_slice %158 {offsets = [0, 0], sizes = [8, 128], strides = [1, 1]} : vector<8x384xf32> to vector<8x128xf32>
    %162 = vector.extract_strided_slice %158 {offsets = [0, 128], sizes = [8, 128], strides = [1, 1]} : vector<8x384xf32> to vector<8x128xf32>
    %163 = vector.extract_strided_slice %158 {offsets = [0, 256], sizes = [8, 128], strides = [1, 1]} : vector<8x384xf32> to vector<8x128xf32>
    %164 = arith.mulf %162, %139 : vector<8x128xf32>
    %165 = arith.mulf %161, %160 : vector<8x128xf32>
    %166 = arith.addf %164, %165 : vector<8x128xf32>
    %167 = math.tanh %166 : vector<8x128xf32>
    %168 = arith.mulf %163, %167 : vector<8x128xf32>
    %169 = arith.index_cast %145 : i32 to index
    %c0_61 = arith.constant 0 : index
    %170 = vector.load %arg12[%169, %c0_61] : memref<64x128xf32, #tpu.memory_space<vmem>>, vector<8x128xf32>
    tpu.vector_store %arg12[%169, %c0_61], %168 {strides = array<i32>} : memref<64x128xf32, #tpu.memory_space<vmem>>, vector<8x128xf32>,
    %c6_i32 = arith.constant 6 : i32
    %c8_i32_62 = arith.constant 8 : i32
    %171 = arith.muli %c6_i32, %c8_i32_62 : i32
    %172 = tpu.assume_multiple %171, 8 : i32
    %173 = arith.index_cast %172 : i32 to index
    %c0_63 = arith.constant 0 : index
    %174 = vector.load %arg11[%173, %c0_63] : memref<64x512xf32, #tpu.memory_space<vmem>>, vector<8x512xf32>
    %c0_64 = arith.constant 0 : index
    %c0_65 = arith.constant 0 : index
    %175 = vector.load %arg3[%c0_64, %c0_65] : memref<128x512xf32, #tpu.memory_space<vmem>>, vector<128x512xf32>
    %cst_66 = arith.constant dense<0.000000e+00> : vector<8x512xf32>
    %176 = tpu.matmul %168, %175, %cst_66 {dimension_numbers = #tpu.dot_dimension_numbers<[1], [0], [0], [1], [0, 0, 1, 1], [], []>} : vector<8x128xf32>, vector<128x512xf32>, vector<8x512xf32> -> vector<8x512xf32>
    %177 = arith.addf %174, %176 : vector<8x512xf32>
    %178 = vector.extract_strided_slice %177 {offsets = [0, 0], sizes = [8, 384], strides = [1, 1]} : vector<8x512xf32> to vector<8x384xf32>
    %cst_67 = arith.constant 5.000000e-01 : f32
    %179 = vector.broadcast %cst_67 : f32 to vector<8x384xf32>
    %180 = arith.mulf %179, %178 : vector<8x384xf32>
    %181 = math.tanh %180 : vector<8x384xf32>
    %cst_68 = arith.constant 5.000000e-01 : f32
    %182 = vector.broadcast %cst_68 : f32 to vector<8x384xf32>
    %183 = arith.mulf %182, %181 : vector<8x384xf32>
    %cst_69 = arith.constant 5.000000e-01 : f32
    %184 = vector.broadcast %cst_69 : f32 to vector<8x384xf32>
    %185 = arith.addf %183, %184 : vector<8x384xf32>
    %186 = vector.extract_strided_slice %177 {offsets = [0, 384], sizes = [8, 128], strides = [1, 1]} : vector<8x512xf32> to vector<8x128xf32>
    %187 = math.tanh %186 : vector<8x128xf32>
    %188 = vector.extract_strided_slice %185 {offsets = [0, 0], sizes = [8, 128], strides = [1, 1]} : vector<8x384xf32> to vector<8x128xf32>
    %189 = vector.extract_strided_slice %185 {offsets = [0, 128], sizes = [8, 128], strides = [1, 1]} : vector<8x384xf32> to vector<8x128xf32>
    %190 = vector.extract_strided_slice %185 {offsets = [0, 256], sizes = [8, 128], strides = [1, 1]} : vector<8x384xf32> to vector<8x128xf32>
    %191 = arith.mulf %189, %166 : vector<8x128xf32>
    %192 = arith.mulf %188, %187 : vector<8x128xf32>
    %193 = arith.addf %191, %192 : vector<8x128xf32>
    %194 = math.tanh %193 : vector<8x128xf32>
    %195 = arith.mulf %190, %194 : vector<8x128xf32>
    %196 = arith.index_cast %172 : i32 to index
    %c0_70 = arith.constant 0 : index
    %197 = vector.load %arg12[%196, %c0_70] : memref<64x128xf32, #tpu.memory_space<vmem>>, vector<8x128xf32>
    tpu.vector_store %arg12[%196, %c0_70], %195 {strides = array<i32>} : memref<64x128xf32, #tpu.memory_space<vmem>>, vector<8x128xf32>,
    %c7_i32 = arith.constant 7 : i32
    %c8_i32_71 = arith.constant 8 : i32
    %198 = arith.muli %c7_i32, %c8_i32_71 : i32
    %199 = tpu.assume_multiple %198, 8 : i32
    %200 = arith.index_cast %199 : i32 to index
    %c0_72 = arith.constant 0 : index
    %201 = vector.load %arg11[%200, %c0_72] : memref<64x512xf32, #tpu.memory_space<vmem>>, vector<8x512xf32>
    %c0_73 = arith.constant 0 : index
    %c0_74 = arith.constant 0 : index
    %202 = vector.load %arg3[%c0_73, %c0_74] : memref<128x512xf32, #tpu.memory_space<vmem>>, vector<128x512xf32>
    %cst_75 = arith.constant dense<0.000000e+00> : vector<8x512xf32>
    %203 = tpu.matmul %195, %202, %cst_75 {dimension_numbers = #tpu.dot_dimension_numbers<[1], [0], [0], [1], [0, 0, 1, 1], [], []>} : vector<8x128xf32>, vector<128x512xf32>, vector<8x512xf32> -> vector<8x512xf32>
    %204 = arith.addf %201, %203 : vector<8x512xf32>
    %205 = vector.extract_strided_slice %204 {offsets = [0, 0], sizes = [8, 384], strides = [1, 1]} : vector<8x512xf32> to vector<8x384xf32>
    %cst_76 = arith.constant 5.000000e-01 : f32
    %206 = vector.broadcast %cst_76 : f32 to vector<8x384xf32>
    %207 = arith.mulf %206, %205 : vector<8x384xf32>
    %208 = math.tanh %207 : vector<8x384xf32>
    %cst_77 = arith.constant 5.000000e-01 : f32
    %209 = vector.broadcast %cst_77 : f32 to vector<8x384xf32>
    %210 = arith.mulf %209, %208 : vector<8x384xf32>
    %cst_78 = arith.constant 5.000000e-01 : f32
    %211 = vector.broadcast %cst_78 : f32 to vector<8x384xf32>
    %212 = arith.addf %210, %211 : vector<8x384xf32>
    %213 = vector.extract_strided_slice %204 {offsets = [0, 384], sizes = [8, 128], strides = [1, 1]} : vector<8x512xf32> to vector<8x128xf32>
    %214 = math.tanh %213 : vector<8x128xf32>
    %215 = vector.extract_strided_slice %212 {offsets = [0, 0], sizes = [8, 128], strides = [1, 1]} : vector<8x384xf32> to vector<8x128xf32>
    %216 = vector.extract_strided_slice %212 {offsets = [0, 128], sizes = [8, 128], strides = [1, 1]} : vector<8x384xf32> to vector<8x128xf32>
    %217 = vector.extract_strided_slice %212 {offsets = [0, 256], sizes = [8, 128], strides = [1, 1]} : vector<8x384xf32> to vector<8x128xf32>
    %218 = arith.mulf %216, %193 : vector<8x128xf32>
    %219 = arith.mulf %215, %214 : vector<8x128xf32>
    %220 = arith.addf %218, %219 : vector<8x128xf32>
    %221 = math.tanh %220 : vector<8x128xf32>
    %222 = arith.mulf %217, %221 : vector<8x128xf32>
    %223 = arith.index_cast %199 : i32 to index
    %c0_79 = arith.constant 0 : index
    %224 = vector.load %arg12[%223, %c0_79] : memref<64x128xf32, #tpu.memory_space<vmem>>, vector<8x128xf32>
    tpu.vector_store %arg12[%223, %c0_79], %222 {strides = array<i32>} : memref<64x128xf32, #tpu.memory_space<vmem>>, vector<8x128xf32>,
    %c8_i32_80 = arith.constant 8 : i32
    %c0_81 = arith.constant 0 : index
    %c0_82 = arith.constant 0 : index
    %225 = vector.load %arg12[%c0_81, %c0_82] : memref<64x128xf32, #tpu.memory_space<vmem>>, vector<64x128xf32>
    %c0_83 = arith.constant 0 : index
    %c0_84 = arith.constant 0 : index
    %226 = vector.load %arg5[%c0_83, %c0_84] : memref<128x512xf32, #tpu.memory_space<vmem>>, vector<128x512xf32>
    %cst_85 = arith.constant dense<0.000000e+00> : vector<64x512xf32>
    %227 = tpu.matmul %225, %226, %cst_85 {dimension_numbers = #tpu.dot_dimension_numbers<[1], [0], [0], [1], [0, 0, 1, 1], [], []>} : vector<64x128xf32>, vector<128x512xf32>, vector<64x512xf32> -> vector<64x512xf32>
    %c0_86 = arith.constant 0 : index
    %c0_87 = arith.constant 0 : index
    %228 = vector.load %arg7[%c0_86, %c0_87] : memref<1x512xf32, #tpu.memory_space<vmem>>, vector<1x512xf32>
    %229 = vector.broadcast %228 : vector<1x512xf32> to vector<64x512xf32>
    %230 = arith.addf %227, %229 : vector<64x512xf32>
    %c0_88 = arith.constant 0 : index
    %c0_89 = arith.constant 0 : index
    %231 = vector.load %arg11[%c0_88, %c0_89] : memref<64x512xf32, #tpu.memory_space<vmem>>, vector<64x512xf32>
    tpu.vector_store %arg11[%c0_88, %c0_89], %230 {strides = array<i32>} : memref<64x512xf32, #tpu.memory_space<vmem>>, vector<64x512xf32>,
    %cst_90 = arith.constant 0.000000e+00 : f32
    %232 = vector.broadcast %cst_90 : f32 to vector<8x128xf32>
    %cst_91 = arith.constant 0.000000e+00 : f32
    %233 = vector.broadcast %cst_91 : f32 to vector<8x128xf32>
    %c0_i32_92 = arith.constant 0 : i32
    %c8_i32_93 = arith.constant 8 : i32
    %234 = arith.muli %c0_i32_92, %c8_i32_93 : i32
    %235 = tpu.assume_multiple %234, 8 : i32
    %236 = arith.index_cast %235 : i32 to index
    %c0_94 = arith.constant 0 : index
    %237 = vector.load %arg11[%236, %c0_94] : memref<64x512xf32, #tpu.memory_space<vmem>>, vector<8x512xf32>
    %c0_95 = arith.constant 0 : index
    %c0_96 = arith.constant 0 : index
    %238 = vector.load %arg6[%c0_95, %c0_96] : memref<128x512xf32, #tpu.memory_space<vmem>>, vector<128x512xf32>
    %cst_97 = arith.constant dense<0.000000e+00> : vector<8x512xf32>
    %239 = tpu.matmul %232, %238, %cst_97 {dimension_numbers = #tpu.dot_dimension_numbers<[1], [0], [0], [1], [0, 0, 1, 1], [], []>} : vector<8x128xf32>, vector<128x512xf32>, vector<8x512xf32> -> vector<8x512xf32>
    %240 = arith.addf %237, %239 : vector<8x512xf32>
    %241 = vector.extract_strided_slice %240 {offsets = [0, 0], sizes = [8, 384], strides = [1, 1]} : vector<8x512xf32> to vector<8x384xf32>
    %cst_98 = arith.constant 5.000000e-01 : f32
    %242 = vector.broadcast %cst_98 : f32 to vector<8x384xf32>
    %243 = arith.mulf %242, %241 : vector<8x384xf32>
    %244 = math.tanh %243 : vector<8x384xf32>
    %cst_99 = arith.constant 5.000000e-01 : f32
    %245 = vector.broadcast %cst_99 : f32 to vector<8x384xf32>
    %246 = arith.mulf %245, %244 : vector<8x384xf32>
    %cst_100 = arith.constant 5.000000e-01 : f32
    %247 = vector.broadcast %cst_100 : f32 to vector<8x384xf32>
    %248 = arith.addf %246, %247 : vector<8x384xf32>
    %249 = vector.extract_strided_slice %240 {offsets = [0, 384], sizes = [8, 128], strides = [1, 1]} : vector<8x512xf32> to vector<8x128xf32>
    %250 = math.tanh %249 : vector<8x128xf32>
    %251 = vector.extract_strided_slice %248 {offsets = [0, 0], sizes = [8, 128], strides = [1, 1]} : vector<8x384xf32> to vector<8x128xf32>
    %252 = vector.extract_strided_slice %248 {offsets = [0, 128], sizes = [8, 128], strides = [1, 1]} : vector<8x384xf32> to vector<8x128xf32>
    %253 = vector.extract_strided_slice %248 {offsets = [0, 256], sizes = [8, 128], strides = [1, 1]} : vector<8x384xf32> to vector<8x128xf32>
    %254 = arith.mulf %252, %233 : vector<8x128xf32>
    %255 = arith.mulf %251, %250 : vector<8x128xf32>
    %256 = arith.addf %254, %255 : vector<8x128xf32>
    %257 = math.tanh %256 : vector<8x128xf32>
    %258 = arith.mulf %253, %257 : vector<8x128xf32>
    %259 = arith.index_cast %235 : i32 to index
    %c0_101 = arith.constant 0 : index
    %260 = vector.load %arg12[%259, %c0_101] : memref<64x128xf32, #tpu.memory_space<vmem>>, vector<8x128xf32>
    tpu.vector_store %arg12[%259, %c0_101], %258 {strides = array<i32>} : memref<64x128xf32, #tpu.memory_space<vmem>>, vector<8x128xf32>,
    %c1_i32_102 = arith.constant 1 : i32
    %c8_i32_103 = arith.constant 8 : i32
    %261 = arith.muli %c1_i32_102, %c8_i32_103 : i32
    %262 = tpu.assume_multiple %261, 8 : i32
    %263 = arith.index_cast %262 : i32 to index
    %c0_104 = arith.constant 0 : index
    %264 = vector.load %arg11[%263, %c0_104] : memref<64x512xf32, #tpu.memory_space<vmem>>, vector<8x512xf32>
    %c0_105 = arith.constant 0 : index
    %c0_106 = arith.constant 0 : index
    %265 = vector.load %arg6[%c0_105, %c0_106] : memref<128x512xf32, #tpu.memory_space<vmem>>, vector<128x512xf32>
    %cst_107 = arith.constant dense<0.000000e+00> : vector<8x512xf32>
    %266 = tpu.matmul %258, %265, %cst_107 {dimension_numbers = #tpu.dot_dimension_numbers<[1], [0], [0], [1], [0, 0, 1, 1], [], []>} : vector<8x128xf32>, vector<128x512xf32>, vector<8x512xf32> -> vector<8x512xf32>
    %267 = arith.addf %264, %266 : vector<8x512xf32>
    %268 = vector.extract_strided_slice %267 {offsets = [0, 0], sizes = [8, 384], strides = [1, 1]} : vector<8x512xf32> to vector<8x384xf32>
    %cst_108 = arith.constant 5.000000e-01 : f32
    %269 = vector.broadcast %cst_108 : f32 to vector<8x384xf32>
    %270 = arith.mulf %269, %268 : vector<8x384xf32>
    %271 = math.tanh %270 : vector<8x384xf32>
    %cst_109 = arith.constant 5.000000e-01 : f32
    %272 = vector.broadcast %cst_109 : f32 to vector<8x384xf32>
    %273 = arith.mulf %272, %271 : vector<8x384xf32>
    %cst_110 = arith.constant 5.000000e-01 : f32
    %274 = vector.broadcast %cst_110 : f32 to vector<8x384xf32>
    %275 = arith.addf %273, %274 : vector<8x384xf32>
    %276 = vector.extract_strided_slice %267 {offsets = [0, 384], sizes = [8, 128], strides = [1, 1]} : vector<8x512xf32> to vector<8x128xf32>
    %277 = math.tanh %276 : vector<8x128xf32>
    %278 = vector.extract_strided_slice %275 {offsets = [0, 0], sizes = [8, 128], strides = [1, 1]} : vector<8x384xf32> to vector<8x128xf32>
    %279 = vector.extract_strided_slice %275 {offsets = [0, 128], sizes = [8, 128], strides = [1, 1]} : vector<8x384xf32> to vector<8x128xf32>
    %280 = vector.extract_strided_slice %275 {offsets = [0, 256], sizes = [8, 128], strides = [1, 1]} : vector<8x384xf32> to vector<8x128xf32>
    %281 = arith.mulf %279, %256 : vector<8x128xf32>
    %282 = arith.mulf %278, %277 : vector<8x128xf32>
    %283 = arith.addf %281, %282 : vector<8x128xf32>
    %284 = math.tanh %283 : vector<8x128xf32>
    %285 = arith.mulf %280, %284 : vector<8x128xf32>
    %286 = arith.index_cast %262 : i32 to index
    %c0_111 = arith.constant 0 : index
    %287 = vector.load %arg12[%286, %c0_111] : memref<64x128xf32, #tpu.memory_space<vmem>>, vector<8x128xf32>
    tpu.vector_store %arg12[%286, %c0_111], %285 {strides = array<i32>} : memref<64x128xf32, #tpu.memory_space<vmem>>, vector<8x128xf32>,
    %c2_i32_112 = arith.constant 2 : i32
    %c8_i32_113 = arith.constant 8 : i32
    %288 = arith.muli %c2_i32_112, %c8_i32_113 : i32
    %289 = tpu.assume_multiple %288, 8 : i32
    %290 = arith.index_cast %289 : i32 to index
    %c0_114 = arith.constant 0 : index
    %291 = vector.load %arg11[%290, %c0_114] : memref<64x512xf32, #tpu.memory_space<vmem>>, vector<8x512xf32>
    %c0_115 = arith.constant 0 : index
    %c0_116 = arith.constant 0 : index
    %292 = vector.load %arg6[%c0_115, %c0_116] : memref<128x512xf32, #tpu.memory_space<vmem>>, vector<128x512xf32>
    %cst_117 = arith.constant dense<0.000000e+00> : vector<8x512xf32>
    %293 = tpu.matmul %285, %292, %cst_117 {dimension_numbers = #tpu.dot_dimension_numbers<[1], [0], [0], [1], [0, 0, 1, 1], [], []>} : vector<8x128xf32>, vector<128x512xf32>, vector<8x512xf32> -> vector<8x512xf32>
    %294 = arith.addf %291, %293 : vector<8x512xf32>
    %295 = vector.extract_strided_slice %294 {offsets = [0, 0], sizes = [8, 384], strides = [1, 1]} : vector<8x512xf32> to vector<8x384xf32>
    %cst_118 = arith.constant 5.000000e-01 : f32
    %296 = vector.broadcast %cst_118 : f32 to vector<8x384xf32>
    %297 = arith.mulf %296, %295 : vector<8x384xf32>
    %298 = math.tanh %297 : vector<8x384xf32>
    %cst_119 = arith.constant 5.000000e-01 : f32
    %299 = vector.broadcast %cst_119 : f32 to vector<8x384xf32>
    %300 = arith.mulf %299, %298 : vector<8x384xf32>
    %cst_120 = arith.constant 5.000000e-01 : f32
    %301 = vector.broadcast %cst_120 : f32 to vector<8x384xf32>
    %302 = arith.addf %300, %301 : vector<8x384xf32>
    %303 = vector.extract_strided_slice %294 {offsets = [0, 384], sizes = [8, 128], strides = [1, 1]} : vector<8x512xf32> to vector<8x128xf32>
    %304 = math.tanh %303 : vector<8x128xf32>
    %305 = vector.extract_strided_slice %302 {offsets = [0, 0], sizes = [8, 128], strides = [1, 1]} : vector<8x384xf32> to vector<8x128xf32>
    %306 = vector.extract_strided_slice %302 {offsets = [0, 128], sizes = [8, 128], strides = [1, 1]} : vector<8x384xf32> to vector<8x128xf32>
    %307 = vector.extract_strided_slice %302 {offsets = [0, 256], sizes = [8, 128], strides = [1, 1]} : vector<8x384xf32> to vector<8x128xf32>
    %308 = arith.mulf %306, %283 : vector<8x128xf32>
    %309 = arith.mulf %305, %304 : vector<8x128xf32>
    %310 = arith.addf %308, %309 : vector<8x128xf32>
    %311 = math.tanh %310 : vector<8x128xf32>
    %312 = arith.mulf %307, %311 : vector<8x128xf32>
    %313 = arith.index_cast %289 : i32 to index
    %c0_121 = arith.constant 0 : index
    %314 = vector.load %arg12[%313, %c0_121] : memref<64x128xf32, #tpu.memory_space<vmem>>, vector<8x128xf32>
    tpu.vector_store %arg12[%313, %c0_121], %312 {strides = array<i32>} : memref<64x128xf32, #tpu.memory_space<vmem>>, vector<8x128xf32>,
    %c3_i32_122 = arith.constant 3 : i32
    %c8_i32_123 = arith.constant 8 : i32
    %315 = arith.muli %c3_i32_122, %c8_i32_123 : i32
    %316 = tpu.assume_multiple %315, 8 : i32
    %317 = arith.index_cast %316 : i32 to index
    %c0_124 = arith.constant 0 : index
    %318 = vector.load %arg11[%317, %c0_124] : memref<64x512xf32, #tpu.memory_space<vmem>>, vector<8x512xf32>
    %c0_125 = arith.constant 0 : index
    %c0_126 = arith.constant 0 : index
    %319 = vector.load %arg6[%c0_125, %c0_126] : memref<128x512xf32, #tpu.memory_space<vmem>>, vector<128x512xf32>
    %cst_127 = arith.constant dense<0.000000e+00> : vector<8x512xf32>
    %320 = tpu.matmul %312, %319, %cst_127 {dimension_numbers = #tpu.dot_dimension_numbers<[1], [0], [0], [1], [0, 0, 1, 1], [], []>} : vector<8x128xf32>, vector<128x512xf32>, vector<8x512xf32> -> vector<8x512xf32>
    %321 = arith.addf %318, %320 : vector<8x512xf32>
    %322 = vector.extract_strided_slice %321 {offsets = [0, 0], sizes = [8, 384], strides = [1, 1]} : vector<8x512xf32> to vector<8x384xf32>
    %cst_128 = arith.constant 5.000000e-01 : f32
    %323 = vector.broadcast %cst_128 : f32 to vector<8x384xf32>
    %324 = arith.mulf %323, %322 : vector<8x384xf32>
    %325 = math.tanh %324 : vector<8x384xf32>
    %cst_129 = arith.constant 5.000000e-01 : f32
    %326 = vector.broadcast %cst_129 : f32 to vector<8x384xf32>
    %327 = arith.mulf %326, %325 : vector<8x384xf32>
    %cst_130 = arith.constant 5.000000e-01 : f32
    %328 = vector.broadcast %cst_130 : f32 to vector<8x384xf32>
    %329 = arith.addf %327, %328 : vector<8x384xf32>
    %330 = vector.extract_strided_slice %321 {offsets = [0, 384], sizes = [8, 128], strides = [1, 1]} : vector<8x512xf32> to vector<8x128xf32>
    %331 = math.tanh %330 : vector<8x128xf32>
    %332 = vector.extract_strided_slice %329 {offsets = [0, 0], sizes = [8, 128], strides = [1, 1]} : vector<8x384xf32> to vector<8x128xf32>
    %333 = vector.extract_strided_slice %329 {offsets = [0, 128], sizes = [8, 128], strides = [1, 1]} : vector<8x384xf32> to vector<8x128xf32>
    %334 = vector.extract_strided_slice %329 {offsets = [0, 256], sizes = [8, 128], strides = [1, 1]} : vector<8x384xf32> to vector<8x128xf32>
    %335 = arith.mulf %333, %310 : vector<8x128xf32>
    %336 = arith.mulf %332, %331 : vector<8x128xf32>
    %337 = arith.addf %335, %336 : vector<8x128xf32>
    %338 = math.tanh %337 : vector<8x128xf32>
    %339 = arith.mulf %334, %338 : vector<8x128xf32>
    %340 = arith.index_cast %316 : i32 to index
    %c0_131 = arith.constant 0 : index
    %341 = vector.load %arg12[%340, %c0_131] : memref<64x128xf32, #tpu.memory_space<vmem>>, vector<8x128xf32>
    tpu.vector_store %arg12[%340, %c0_131], %339 {strides = array<i32>} : memref<64x128xf32, #tpu.memory_space<vmem>>, vector<8x128xf32>,
    %c4_i32_132 = arith.constant 4 : i32
    %c8_i32_133 = arith.constant 8 : i32
    %342 = arith.muli %c4_i32_132, %c8_i32_133 : i32
    %343 = tpu.assume_multiple %342, 8 : i32
    %344 = arith.index_cast %343 : i32 to index
    %c0_134 = arith.constant 0 : index
    %345 = vector.load %arg11[%344, %c0_134] : memref<64x512xf32, #tpu.memory_space<vmem>>, vector<8x512xf32>
    %c0_135 = arith.constant 0 : index
    %c0_136 = arith.constant 0 : index
    %346 = vector.load %arg6[%c0_135, %c0_136] : memref<128x512xf32, #tpu.memory_space<vmem>>, vector<128x512xf32>
    %cst_137 = arith.constant dense<0.000000e+00> : vector<8x512xf32>
    %347 = tpu.matmul %339, %346, %cst_137 {dimension_numbers = #tpu.dot_dimension_numbers<[1], [0], [0], [1], [0, 0, 1, 1], [], []>} : vector<8x128xf32>, vector<128x512xf32>, vector<8x512xf32> -> vector<8x512xf32>
    %348 = arith.addf %345, %347 : vector<8x512xf32>
    %349 = vector.extract_strided_slice %348 {offsets = [0, 0], sizes = [8, 384], strides = [1, 1]} : vector<8x512xf32> to vector<8x384xf32>
    %cst_138 = arith.constant 5.000000e-01 : f32
    %350 = vector.broadcast %cst_138 : f32 to vector<8x384xf32>
    %351 = arith.mulf %350, %349 : vector<8x384xf32>
    %352 = math.tanh %351 : vector<8x384xf32>
    %cst_139 = arith.constant 5.000000e-01 : f32
    %353 = vector.broadcast %cst_139 : f32 to vector<8x384xf32>
    %354 = arith.mulf %353, %352 : vector<8x384xf32>
    %cst_140 = arith.constant 5.000000e-01 : f32
    %355 = vector.broadcast %cst_140 : f32 to vector<8x384xf32>
    %356 = arith.addf %354, %355 : vector<8x384xf32>
    %357 = vector.extract_strided_slice %348 {offsets = [0, 384], sizes = [8, 128], strides = [1, 1]} : vector<8x512xf32> to vector<8x128xf32>
    %358 = math.tanh %357 : vector<8x128xf32>
    %359 = vector.extract_strided_slice %356 {offsets = [0, 0], sizes = [8, 128], strides = [1, 1]} : vector<8x384xf32> to vector<8x128xf32>
    %360 = vector.extract_strided_slice %356 {offsets = [0, 128], sizes = [8, 128], strides = [1, 1]} : vector<8x384xf32> to vector<8x128xf32>
    %361 = vector.extract_strided_slice %356 {offsets = [0, 256], sizes = [8, 128], strides = [1, 1]} : vector<8x384xf32> to vector<8x128xf32>
    %362 = arith.mulf %360, %337 : vector<8x128xf32>
    %363 = arith.mulf %359, %358 : vector<8x128xf32>
    %364 = arith.addf %362, %363 : vector<8x128xf32>
    %365 = math.tanh %364 : vector<8x128xf32>
    %366 = arith.mulf %361, %365 : vector<8x128xf32>
    %367 = arith.index_cast %343 : i32 to index
    %c0_141 = arith.constant 0 : index
    %368 = vector.load %arg12[%367, %c0_141] : memref<64x128xf32, #tpu.memory_space<vmem>>, vector<8x128xf32>
    tpu.vector_store %arg12[%367, %c0_141], %366 {strides = array<i32>} : memref<64x128xf32, #tpu.memory_space<vmem>>, vector<8x128xf32>,
    %c5_i32_142 = arith.constant 5 : i32
    %c8_i32_143 = arith.constant 8 : i32
    %369 = arith.muli %c5_i32_142, %c8_i32_143 : i32
    %370 = tpu.assume_multiple %369, 8 : i32
    %371 = arith.index_cast %370 : i32 to index
    %c0_144 = arith.constant 0 : index
    %372 = vector.load %arg11[%371, %c0_144] : memref<64x512xf32, #tpu.memory_space<vmem>>, vector<8x512xf32>
    %c0_145 = arith.constant 0 : index
    %c0_146 = arith.constant 0 : index
    %373 = vector.load %arg6[%c0_145, %c0_146] : memref<128x512xf32, #tpu.memory_space<vmem>>, vector<128x512xf32>
    %cst_147 = arith.constant dense<0.000000e+00> : vector<8x512xf32>
    %374 = tpu.matmul %366, %373, %cst_147 {dimension_numbers = #tpu.dot_dimension_numbers<[1], [0], [0], [1], [0, 0, 1, 1], [], []>} : vector<8x128xf32>, vector<128x512xf32>, vector<8x512xf32> -> vector<8x512xf32>
    %375 = arith.addf %372, %374 : vector<8x512xf32>
    %376 = vector.extract_strided_slice %375 {offsets = [0, 0], sizes = [8, 384], strides = [1, 1]} : vector<8x512xf32> to vector<8x384xf32>
    %cst_148 = arith.constant 5.000000e-01 : f32
    %377 = vector.broadcast %cst_148 : f32 to vector<8x384xf32>
    %378 = arith.mulf %377, %376 : vector<8x384xf32>
    %379 = math.tanh %378 : vector<8x384xf32>
    %cst_149 = arith.constant 5.000000e-01 : f32
    %380 = vector.broadcast %cst_149 : f32 to vector<8x384xf32>
    %381 = arith.mulf %380, %379 : vector<8x384xf32>
    %cst_150 = arith.constant 5.000000e-01 : f32
    %382 = vector.broadcast %cst_150 : f32 to vector<8x384xf32>
    %383 = arith.addf %381, %382 : vector<8x384xf32>
    %384 = vector.extract_strided_slice %375 {offsets = [0, 384], sizes = [8, 128], strides = [1, 1]} : vector<8x512xf32> to vector<8x128xf32>
    %385 = math.tanh %384 : vector<8x128xf32>
    %386 = vector.extract_strided_slice %383 {offsets = [0, 0], sizes = [8, 128], strides = [1, 1]} : vector<8x384xf32> to vector<8x128xf32>
    %387 = vector.extract_strided_slice %383 {offsets = [0, 128], sizes = [8, 128], strides = [1, 1]} : vector<8x384xf32> to vector<8x128xf32>
    %388 = vector.extract_strided_slice %383 {offsets = [0, 256], sizes = [8, 128], strides = [1, 1]} : vector<8x384xf32> to vector<8x128xf32>
    %389 = arith.mulf %387, %364 : vector<8x128xf32>
    %390 = arith.mulf %386, %385 : vector<8x128xf32>
    %391 = arith.addf %389, %390 : vector<8x128xf32>
    %392 = math.tanh %391 : vector<8x128xf32>
    %393 = arith.mulf %388, %392 : vector<8x128xf32>
    %394 = arith.index_cast %370 : i32 to index
    %c0_151 = arith.constant 0 : index
    %395 = vector.load %arg12[%394, %c0_151] : memref<64x128xf32, #tpu.memory_space<vmem>>, vector<8x128xf32>
    tpu.vector_store %arg12[%394, %c0_151], %393 {strides = array<i32>} : memref<64x128xf32, #tpu.memory_space<vmem>>, vector<8x128xf32>,
    %c6_i32_152 = arith.constant 6 : i32
    %c8_i32_153 = arith.constant 8 : i32
    %396 = arith.muli %c6_i32_152, %c8_i32_153 : i32
    %397 = tpu.assume_multiple %396, 8 : i32
    %398 = arith.index_cast %397 : i32 to index
    %c0_154 = arith.constant 0 : index
    %399 = vector.load %arg11[%398, %c0_154] : memref<64x512xf32, #tpu.memory_space<vmem>>, vector<8x512xf32>
    %c0_155 = arith.constant 0 : index
    %c0_156 = arith.constant 0 : index
    %400 = vector.load %arg6[%c0_155, %c0_156] : memref<128x512xf32, #tpu.memory_space<vmem>>, vector<128x512xf32>
    %cst_157 = arith.constant dense<0.000000e+00> : vector<8x512xf32>
    %401 = tpu.matmul %393, %400, %cst_157 {dimension_numbers = #tpu.dot_dimension_numbers<[1], [0], [0], [1], [0, 0, 1, 1], [], []>} : vector<8x128xf32>, vector<128x512xf32>, vector<8x512xf32> -> vector<8x512xf32>
    %402 = arith.addf %399, %401 : vector<8x512xf32>
    %403 = vector.extract_strided_slice %402 {offsets = [0, 0], sizes = [8, 384], strides = [1, 1]} : vector<8x512xf32> to vector<8x384xf32>
    %cst_158 = arith.constant 5.000000e-01 : f32
    %404 = vector.broadcast %cst_158 : f32 to vector<8x384xf32>
    %405 = arith.mulf %404, %403 : vector<8x384xf32>
    %406 = math.tanh %405 : vector<8x384xf32>
    %cst_159 = arith.constant 5.000000e-01 : f32
    %407 = vector.broadcast %cst_159 : f32 to vector<8x384xf32>
    %408 = arith.mulf %407, %406 : vector<8x384xf32>
    %cst_160 = arith.constant 5.000000e-01 : f32
    %409 = vector.broadcast %cst_160 : f32 to vector<8x384xf32>
    %410 = arith.addf %408, %409 : vector<8x384xf32>
    %411 = vector.extract_strided_slice %402 {offsets = [0, 384], sizes = [8, 128], strides = [1, 1]} : vector<8x512xf32> to vector<8x128xf32>
    %412 = math.tanh %411 : vector<8x128xf32>
    %413 = vector.extract_strided_slice %410 {offsets = [0, 0], sizes = [8, 128], strides = [1, 1]} : vector<8x384xf32> to vector<8x128xf32>
    %414 = vector.extract_strided_slice %410 {offsets = [0, 128], sizes = [8, 128], strides = [1, 1]} : vector<8x384xf32> to vector<8x128xf32>
    %415 = vector.extract_strided_slice %410 {offsets = [0, 256], sizes = [8, 128], strides = [1, 1]} : vector<8x384xf32> to vector<8x128xf32>
    %416 = arith.mulf %414, %391 : vector<8x128xf32>
    %417 = arith.mulf %413, %412 : vector<8x128xf32>
    %418 = arith.addf %416, %417 : vector<8x128xf32>
    %419 = math.tanh %418 : vector<8x128xf32>
    %420 = arith.mulf %415, %419 : vector<8x128xf32>
    %421 = arith.index_cast %397 : i32 to index
    %c0_161 = arith.constant 0 : index
    %422 = vector.load %arg12[%421, %c0_161] : memref<64x128xf32, #tpu.memory_space<vmem>>, vector<8x128xf32>
    tpu.vector_store %arg12[%421, %c0_161], %420 {strides = array<i32>} : memref<64x128xf32, #tpu.memory_space<vmem>>, vector<8x128xf32>,
    %c7_i32_162 = arith.constant 7 : i32
    %c8_i32_163 = arith.constant 8 : i32
    %423 = arith.muli %c7_i32_162, %c8_i32_163 : i32
    %424 = tpu.assume_multiple %423, 8 : i32
    %425 = arith.index_cast %424 : i32 to index
    %c0_164 = arith.constant 0 : index
    %426 = vector.load %arg11[%425, %c0_164] : memref<64x512xf32, #tpu.memory_space<vmem>>, vector<8x512xf32>
    %c0_165 = arith.constant 0 : index
    %c0_166 = arith.constant 0 : index
    %427 = vector.load %arg6[%c0_165, %c0_166] : memref<128x512xf32, #tpu.memory_space<vmem>>, vector<128x512xf32>
    %cst_167 = arith.constant dense<0.000000e+00> : vector<8x512xf32>
    %428 = tpu.matmul %420, %427, %cst_167 {dimension_numbers = #tpu.dot_dimension_numbers<[1], [0], [0], [1], [0, 0, 1, 1], [], []>} : vector<8x128xf32>, vector<128x512xf32>, vector<8x512xf32> -> vector<8x512xf32>
    %429 = arith.addf %426, %428 : vector<8x512xf32>
    %430 = vector.extract_strided_slice %429 {offsets = [0, 0], sizes = [8, 384], strides = [1, 1]} : vector<8x512xf32> to vector<8x384xf32>
    %cst_168 = arith.constant 5.000000e-01 : f32
    %431 = vector.broadcast %cst_168 : f32 to vector<8x384xf32>
    %432 = arith.mulf %431, %430 : vector<8x384xf32>
    %433 = math.tanh %432 : vector<8x384xf32>
    %cst_169 = arith.constant 5.000000e-01 : f32
    %434 = vector.broadcast %cst_169 : f32 to vector<8x384xf32>
    %435 = arith.mulf %434, %433 : vector<8x384xf32>
    %cst_170 = arith.constant 5.000000e-01 : f32
    %436 = vector.broadcast %cst_170 : f32 to vector<8x384xf32>
    %437 = arith.addf %435, %436 : vector<8x384xf32>
    %438 = vector.extract_strided_slice %429 {offsets = [0, 384], sizes = [8, 128], strides = [1, 1]} : vector<8x512xf32> to vector<8x128xf32>
    %439 = math.tanh %438 : vector<8x128xf32>
    %440 = vector.extract_strided_slice %437 {offsets = [0, 0], sizes = [8, 128], strides = [1, 1]} : vector<8x384xf32> to vector<8x128xf32>
    %441 = vector.extract_strided_slice %437 {offsets = [0, 128], sizes = [8, 128], strides = [1, 1]} : vector<8x384xf32> to vector<8x128xf32>
    %442 = vector.extract_strided_slice %437 {offsets = [0, 256], sizes = [8, 128], strides = [1, 1]} : vector<8x384xf32> to vector<8x128xf32>
    %443 = arith.mulf %441, %418 : vector<8x128xf32>
    %444 = arith.mulf %440, %439 : vector<8x128xf32>
    %445 = arith.addf %443, %444 : vector<8x128xf32>
    %446 = math.tanh %445 : vector<8x128xf32>
    %447 = arith.mulf %442, %446 : vector<8x128xf32>
    %448 = arith.index_cast %424 : i32 to index
    %c0_171 = arith.constant 0 : index
    %449 = vector.load %arg12[%448, %c0_171] : memref<64x128xf32, #tpu.memory_space<vmem>>, vector<8x128xf32>
    tpu.vector_store %arg12[%448, %c0_171], %447 {strides = array<i32>} : memref<64x128xf32, #tpu.memory_space<vmem>>, vector<8x128xf32>,
    %c8_i32_172 = arith.constant 8 : i32
    %c0_173 = arith.constant 0 : index
    %c0_174 = arith.constant 0 : index
    %450 = vector.load %arg12[%c0_173, %c0_174] : memref<64x128xf32, #tpu.memory_space<vmem>>, vector<64x128xf32>
    %c0_175 = arith.constant 0 : index
    %c0_176 = arith.constant 0 : index
    %451 = vector.load %arg8[%c0_175, %c0_176] : memref<128x128xf32, #tpu.memory_space<vmem>>, vector<128x128xf32>
    %cst_177 = arith.constant dense<0.000000e+00> : vector<64x128xf32>
    %452 = tpu.matmul %450, %451, %cst_177 {dimension_numbers = #tpu.dot_dimension_numbers<[1], [0], [0], [1], [0, 0, 1, 1], [], []>} : vector<64x128xf32>, vector<128x128xf32>, vector<64x128xf32> -> vector<64x128xf32>
    %c0_178 = arith.constant 0 : index
    %c0_179 = arith.constant 0 : index
    %453 = vector.load %arg9[%c0_178, %c0_179] : memref<1x128xf32, #tpu.memory_space<vmem>>, vector<1x128xf32>
    %454 = vector.broadcast %453 : vector<1x128xf32> to vector<64x128xf32>
    %455 = arith.addf %452, %454 : vector<64x128xf32>
    %c0_180 = arith.constant 0 : index
    %c0_181 = arith.constant 0 : index
    %456 = vector.load %arg10[%c0_180, %c0_181] : memref<64x128xf32, #tpu.memory_space<vmem>>, vector<64x128xf32>
    tpu.vector_store %arg10[%c0_180, %c0_181], %455 {strides = array<i32>} : memref<64x128xf32, #tpu.memory_space<vmem>>, vector<64x128xf32>,
    return
  }
  func.func @transform_0(%arg0: i32) -> (i32, i32) {
    %c0_i32 = arith.constant 0 : i32
    %c0_i32_0 = arith.constant 0 : i32
    %c0_i32_1 = arith.constant 0 : i32
    return %c0_i32, %c0_i32_0 : i32, i32
  }
  func.func @transform_1(%arg0: i32) -> (i32, i32) {
    %c0_i32 = arith.constant 0 : i32
    %c0_i32_0 = arith.constant 0 : i32
    %c0_i32_1 = arith.constant 0 : i32
    return %c0_i32, %c0_i32_0 : i32, i32
  }
  func.func @transform_2(%arg0: i32) -> (i32, i32) {
    %c0_i32 = arith.constant 0 : i32
    %c0_i32_0 = arith.constant 0 : i32
    %c0_i32_1 = arith.constant 0 : i32
    return %c0_i32, %c0_i32_0 : i32, i32
  }
  func.func @transform_3(%arg0: i32) -> (i32, i32) {
    %c0_i32 = arith.constant 0 : i32
    %c0_i32_0 = arith.constant 0 : i32
    %c0_i32_1 = arith.constant 0 : i32
    return %c0_i32, %c0_i32_0 : i32, i32
  }
  func.func @transform_4(%arg0: i32) -> (i32, i32) {
    %c0_i32 = arith.constant 0 : i32
    %c0_i32_0 = arith.constant 0 : i32
    %c0_i32_1 = arith.constant 0 : i32
    return %c0_i32, %c0_i32_0 : i32, i32
  }
  func.func @transform_5(%arg0: i32) -> (i32, i32) {
    %c0_i32 = arith.constant 0 : i32
    %c0_i32_0 = arith.constant 0 : i32
    %c0_i32_1 = arith.constant 0 : i32
    return %c0_i32, %c0_i32_0 : i32, i32
  }
  func.func @transform_6(%arg0: i32) -> (i32, i32) {
    %c0_i32 = arith.constant 0 : i32
    %c0_i32_0 = arith.constant 0 : i32
    %c0_i32_1 = arith.constant 0 : i32
    return %c0_i32, %c0_i32_0 : i32, i32
  }
  func.func @transform_7(%arg0: i32) -> (i32, i32) {
    %c0_i32 = arith.constant 0 : i32
    %c0_i32_0 = arith.constant 0 : i32
    %c0_i32_1 = arith.constant 0 : i32
    return %c0_i32, %c0_i32_0 : i32, i32
  }
  func.func @transform_8(%arg0: i32) -> (i32, i32) {
    %c0_i32 = arith.constant 0 : i32
    %c0_i32_0 = arith.constant 0 : i32
    %c0_i32_1 = arith.constant 0 : i32
    return %c0_i32, %c0_i32_0 : i32, i32
  }
  func.func @transform_9(%arg0: i32) -> (i32, i32) {
    %c0_i32 = arith.constant 0 : i32
    %c0_i32_0 = arith.constant 0 : i32
    %c0_i32_1 = arith.constant 0 : i32
    return %c0_i32, %c0_i32_0 : i32, i32
  }
}

</mosaic_0001>

<llo_original>
// kernel: tpu_custom_call.1
$region0: #{tpu_custom_call.1}
  #allocation0 [shape = 'u32[]', space=smem, size = 0x4, offset = 0x4, fixed_abs, tag = 'smem constant byte address 0x4 - core index']
  #allocation1 [shape = 'u32[72,128]{1,0:T(1,128)}', space=vmem, size = 0x9000, scoped, tag = 'internal scratch']
  #allocation2 [shape = 'f32[64,512]{1,0:T(8,128)}', space=vmem, size = 0x20000, scoped, tag = 'scratch operand']
  #allocation3 [shape = 'f32[64,128]{1,0:T(8,128)}', space=vmem, size = 0x8000, scoped, tag = 'scratch operand']
  %s0 = inlined_call_operand.vmem [shape: f32[64,4], index: 0, kind: input, shape index: {}]
  %s1 = inlined_call_operand.vmem [shape: f32[4,512], index: 1, kind: input, shape index: {}]
  %s2 = inlined_call_operand.hbm [shape: f32[128,512], index: 2, kind: input, shape index: {}]
  %s3 = inlined_call_operand.vmem [shape: f32[1,512], index: 3, kind: input, shape index: {}]
  %s4 = inlined_call_operand.hbm [shape: f32[128,512], index: 4, kind: input, shape index: {}]
  %s5 = inlined_call_operand.hbm [shape: f32[128,512], index: 5, kind: input, shape index: {}]
  %s6 = inlined_call_operand.vmem [shape: f32[1,512], index: 6, kind: input, shape index: {}]
  %s7 = inlined_call_operand.hbm [shape: f32[128,128], index: 7, kind: input, shape index: {}]
  %s8 = inlined_call_operand.vmem [shape: f32[1,128], index: 8, kind: input, shape index: {}]
  %s9 = inlined_call_operand.hbm [shape: f32[64,128], index: 9, kind: output, shape index: {}]
  %s10 = sld [smem:[#allocation0]]
  $region62: #{tpu_custom_call.1} parent=0
    _
  %s12 = ssub.s32 1, %s10
  %s13 = scalar_select 0, %s12, %s10
  $region1: #{tpu_custom_call.1} parent=0
    #allocation4 [shape = 'u8[262144]{0}', space=vmem, size = 0x40000, scoped, tag = 'input window, operand 2, single buffered']
    #allocation5 [shape = 's32[1]{0}', space=sflag, size = 0x4, scoped, tag = 'scoped memory for tpu_custom_call.1']
    #allocation6 [shape = 's32[1]{0}', space=sflag, size = 0x4, scoped, tag = 'scoped memory for tpu_custom_call.1']
    #allocation7 [shape = 'u8[262144]{0}', space=vmem, size = 0x40000, scoped, tag = 'input window, operand 4, single buffered']
    #allocation8 [shape = 's32[1]{0}', space=sflag, size = 0x4, scoped, tag = 'scoped memory for tpu_custom_call.1']
    #allocation9 [shape = 'u8[262144]{0}', space=vmem, size = 0x40000, scoped, tag = 'input window, operand 5, single buffered']
    #allocation10 [shape = 'u8[65536]{0}', space=vmem, size = 0x10000, scoped, tag = 'input window, operand 7, single buffered']
    #allocation11 [shape = 's32[1]{0}', space=sflag, size = 0x4, scoped, tag = 'scoped memory for tpu_custom_call.1']
    #allocation12 [shape = 'u8[32768]{0}', space=vmem, size = 0x8000, scoped, tag = 'output window, operand 0, single buffered']
    %14 = vsyncpa [#allocation5], 0
    %15 = vsyncpa [#allocation8], 0
    %16 = vsyncpa [#allocation11], 0
    %17 = vsyncpa [#allocation6], 0
    // Predicated region
    $region2: #{tpu_custom_call.1} parent=1 // pred_check
      _
    $region3: #{tpu_custom_call.1} parent=1 // pred_check_branch
      %19 = sbr.rel (0) target = $region5
    $region4: #{tpu_custom_call.1} parent=1 // pred_region
      _
    $region5: #{tpu_custom_call.1} parent=1 // pred_fallthru
      _
    // Predicated region
    $region6: #{tpu_custom_call.1} parent=1 // pred_check
      _
    $region7: #{tpu_custom_call.1} parent=1 // pred_check_branch
      %21 = sbr.rel (0) target = $region9
    $region8: #{tpu_custom_call.1} parent=1 // pred_region
      _
    $region9: #{tpu_custom_call.1} parent=1 // pred_fallthru
      _
    // Predicated region
    $region10: #{tpu_custom_call.1} parent=1 // pred_check
      _
    $region11: #{tpu_custom_call.1} parent=1 // pred_check_branch
      %23 = sbr.rel (0) target = $region13
    $region12: #{tpu_custom_call.1} parent=1 // pred_region
      %25 = vsyncadd [#allocation5], 0
      %s26 = sshll.u32 %s2, 4
      %s27 = int_to_ptr.hbm [resolvable:$true] %s26
      %s28 = sshll.u32 [#allocation4], 4
      %s29 = int_to_ptr.vmem [resolvable:$true] %s28
      %34 = dma.hbm_to_vmem [thread:$0]  %s27, 8192, %s29, [#allocation5], 512, 512, 32
    $region13: #{tpu_custom_call.1} parent=1 // pred_fallthru
      _
    // Predicated region
    $region14: #{tpu_custom_call.1} parent=1 // pred_check
      _
    $region15: #{tpu_custom_call.1} parent=1 // pred_check_branch
      %36 = sbr.rel (0) target = $region17
    $region16: #{tpu_custom_call.1} parent=1 // pred_region
      _
    $region17: #{tpu_custom_call.1} parent=1 // pred_fallthru
      _
    // Predicated region
    $region18: #{tpu_custom_call.1} parent=1 // pred_check
      _
    $region19: #{tpu_custom_call.1} parent=1 // pred_check_branch
      %38 = sbr.rel (0) target = $region21
    $region20: #{tpu_custom_call.1} parent=1 // pred_region
      %40 = vsyncadd [#allocation8], 0
      %s41 = sshll.u32 %s4, 4
      %s42 = int_to_ptr.hbm [resolvable:$true] %s41
      %s43 = sshll.u32 [#allocation7], 4
      %s44 = int_to_ptr.vmem [resolvable:$true] %s43
      %49 = dma.hbm_to_vmem [thread:$0]  %s42, 8192, %s44, [#allocation8], 512, 512, 32
    $region21: #{tpu_custom_call.1} parent=1 // pred_fallthru
      _
    // Predicated region
    $region22: #{tpu_custom_call.1} parent=1 // pred_check
      _
    $region23: #{tpu_custom_call.1} parent=1 // pred_check_branch
      %51 = sbr.rel (0) target = $region25
    $region24: #{tpu_custom_call.1} parent=1 // pred_region
      %53 = vsyncadd [#allocation8], 0
      %s54 = sshll.u32 %s5, 4
      %s55 = int_to_ptr.hbm [resolvable:$true] %s54
      %s56 = sshll.u32 [#allocation9], 4
      %s57 = int_to_ptr.vmem [resolvable:$true] %s56
      %62 = dma.hbm_to_vmem [thread:$0]  %s55, 8192, %s57, [#allocation8], 512, 512, 32
    $region25: #{tpu_custom_call.1} parent=1 // pred_fallthru
      _
    // Predicated region
    $region26: #{tpu_custom_call.1} parent=1 // pred_check
      _
    $region27: #{tpu_custom_call.1} parent=1 // pred_check_branch
      %64 = sbr.rel (0) target = $region29
    $region28: #{tpu_custom_call.1} parent=1 // pred_region
      _
    $region29: #{tpu_custom_call.1} parent=1 // pred_fallthru
      _
    // Predicated region
    $region30: #{tpu_custom_call.1} parent=1 // pred_check
      _
    $region31: #{tpu_custom_call.1} parent=1 // pred_check_branch
      %66 = sbr.rel (0) target = $region33
    $region32: #{tpu_custom_call.1} parent=1 // pred_region
      %68 = vsyncadd [#allocation11], 0
      %s69 = sshll.u32 %s7, 4
      %s70 = int_to_ptr.hbm [resolvable:$true] %s69
      %s71 = sshll.u32 [#allocation10], 4
      %s72 = int_to_ptr.vmem [resolvable:$true] %s71
      %77 = dma.hbm_to_vmem [thread:$0]  %s70, 2048, %s72, [#allocation11], 128, 128, 8
    $region33: #{tpu_custom_call.1} parent=1 // pred_fallthru
      _
    // Predicated region
    $region34: #{tpu_custom_call.1} parent=1 // pred_check
      _
    $region35: #{tpu_custom_call.1} parent=1 // pred_check_branch
      %79 = sbr.rel (0) target = $region37
    $region36: #{tpu_custom_call.1} parent=1 // pred_region
      _
    $region37: #{tpu_custom_call.1} parent=1 // pred_fallthru
      _
    // Predicated region
    $region38: #{tpu_custom_call.1} parent=1 // pred_check
      _
    $region39: #{tpu_custom_call.1} parent=1 // pred_check_branch
      %81 = sbr.rel (0) target = $region41
    $region40: #{tpu_custom_call.1} parent=1 // pred_region
      %83 = dma.done [#allocation5], 8192
    $region41: #{tpu_custom_call.1} parent=1 // pred_fallthru
      _
    // Predicated region
    $region42: #{tpu_custom_call.1} parent=1 // pred_check
      _
    $region43: #{tpu_custom_call.1} parent=1 // pred_check_branch
      %85 = sbr.rel (0) target = $region45
    $region44: #{tpu_custom_call.1} parent=1 // pred_region
      %87 = dma.done [#allocation8], 8192
    $region45: #{tpu_custom_call.1} parent=1 // pred_fallthru
      _
    // Predicated region
    $region46: #{tpu_custom_call.1} parent=1 // pred_check
      _
    $region47: #{tpu_custom_call.1} parent=1 // pred_check_branch
      %89 = sbr.rel (0) target = $region49
    $region48: #{tpu_custom_call.1} parent=1 // pred_region
      %91 = dma.done [#allocation8], 8192
    $region49: #{tpu_custom_call.1} parent=1 // pred_fallthru
      _
    // Predicated region
    $region50: #{tpu_custom_call.1} parent=1 // pred_check
      _
    $region51: #{tpu_custom_call.1} parent=1 // pred_check_branch
      %93 = sbr.rel (0) target = $region53
    $region52: #{tpu_custom_call.1} parent=1 // pred_region
      %95 = dma.done [#allocation11], 2048
    $region53: #{tpu_custom_call.1} parent=1 // pred_fallthru
      _
    %v96 = vld [vmem:[%s0] sm:$0xff]
    %v97 = vld [vmem:[%s0 + $0x8] sm:$0xff]
    %v98 = vld [vmem:[%s0 + $0x10] sm:$0xff]
    %v99 = vld [vmem:[%s0 + $0x18] sm:$0xff]
    %v100 = vld [vmem:[%s0 + $0x20] sm:$0xff]
    %v101 = vld [vmem:[%s0 + $0x28] sm:$0xff]
    %v102 = vld [vmem:[%s0 + $0x30] sm:$0xff]
    %v103 = vld [vmem:[%s0 + $0x38] sm:$0xff]
    %v104 = vld [vmem:[%s1] sm:$0xff]
    %v105 = vld [vmem:[%s1 + $0x8] sm:$0xff]
    %v106 = vld [vmem:[%s3] sm:$0xf]
    %v108 = vperm.slane %v106, 0
    %v109 = vperm.slane %v106, 1
    %v110 = vperm.slane %v106, 2
    %v111 = vperm.slane %v106, 3
    %118 = vst [vmem:[#allocation1] ss:$2 sm:$0xff] %v104
    %s119 = scalar_lea.vmem [#allocation1], 16
    %120 = vst [vmem:[%s119] ss:$2 sm:$0xff] %v105
    %v121 = vld.sshfl [vmem:[#allocation1] sm:$0xff pattern:$0x75316420]
    %v122 = vld.sshfl [vmem:[#allocation1 + $0x8] sm:$0xff pattern:$0x75316420]
    %v123 = vld.sshfl [vmem:[#allocation1 + $0x10] sm:$0xff pattern:$0x75316420]
    %v124 = vld.sshfl [vmem:[#allocation1 + $0x18] sm:$0xff pattern:$0x75316420]
    %vm125 = vcmask 31744
    %v127 = vsel %vm125, %v96, 0
    %v130 = vsel %vm125, %v97, 0
    %v133 = vsel %vm125, %v98, 0
    %v136 = vsel %vm125, %v99, 0
    %v139 = vsel %vm125, %v100, 0
    %v142 = vsel %vm125, %v101, 0
    %v145 = vsel %vm125, %v102, 0
    %v148 = vsel %vm125, %v103, 0
    %vm150 = vcmask 1043456
    %v151 = vsel %vm150, %v121, 0
    %v153 = vsel %vm150, %v122, 0
    %v155 = vsel %vm150, %v123, 0
    %v157 = vsel %vm150, %v124, 0
    %159 = vmatpush.msra.mxu0 0.0
    %160 = vmatpush.msra.mxu0 0.0
    %161 = vmatpush.msra.mxu0 0.0
    %162 = vmatpush.msra.mxu0 0.0
    %163 = vmatpush.msra.mxu0 0.0
    %164 = vmatpush.msra.mxu0 0.0
    %165 = vmatpush.msra.mxu0 0.0
    %166 = vmatpush.msra.mxu0 0.0
    %167 = vmatpush.msra.mxu0 0.0
    %168 = vmatpush.msra.mxu0 0.0
    %169 = vmatpush.msra.mxu0 0.0
    %170 = vmatpush.msra.mxu0 0.0
    %171 = vmatpush.msra.mxu0 0.0
    %172 = vmatpush.msra.mxu0 0.0
    %173 = vmatpush.msra.mxu0 0.0
    %174 = vmatpush.msra.mxu0 %v151
    %175 = vmatmul.f32.gmra.mxu0 %v127
    %v176 = vpop.f32.mrf.mxu0
    %v177 = vadd.f32 %v108, %v176
    %178 = vmatmul.f32.gmra.mxu0 %v130
    %v179 = vpop.f32.mrf.mxu0
    %v180 = vadd.f32 %v108, %v179
    %181 = vmatmul.f32.gmra.mxu0 %v133
    %v182 = vpop.f32.mrf.mxu0
    %v183 = vadd.f32 %v108, %v182
    %184 = vmatmul.f32.gmra.mxu0 %v136
    %v185 = vpop.f32.mrf.mxu0
    %v186 = vadd.f32 %v108, %v185
    %187 = vmatmul.f32.gmra.mxu0 %v139
    %v188 = vpop.f32.mrf.mxu0
    %v189 = vadd.f32 %v108, %v188
    %190 = vmatmul.f32.gmra.mxu0 %v142
    %v191 = vpop.f32.mrf.mxu0
    %v192 = vadd.f32 %v108, %v191
    %193 = vmatmul.f32.gmra.mxu0 %v145
    %v194 = vpop.f32.mrf.mxu0
    %v195 = vadd.f32 %v108, %v194
    %196 = vmatmul.f32.gmra.mxu0 %v148
    %v197 = vpop.f32.mrf.mxu0
    %v198 = vadd.f32 %v108, %v197
    %199 = vdwg.mxu0
    %200 = vmatpush.msra.mxu0 0.0
    %201 = vmatpush.msra.mxu0 0.0
    %202 = vmatpush.msra.mxu0 0.0
    %203 = vmatpush.msra.mxu0 0.0
    %204 = vmatpush.msra.mxu0 0.0
    %205 = vmatpush.msra.mxu0 0.0
    %206 = vmatpush.msra.mxu0 0.0
    %207 = vmatpush.msra.mxu0 0.0
    %208 = vmatpush.msra.mxu0 0.0
    %209 = vmatpush.msra.mxu0 0.0
    %210 = vmatpush.msra.mxu0 0.0
    %211 = vmatpush.msra.mxu0 0.0
    %212 = vmatpush.msra.mxu0 0.0
    %213 = vmatpush.msra.mxu0 0.0
    %214 = vmatpush.msra.mxu0 0.0
    %215 = vmatpush.msra.mxu0 %v153
    %216 = vmatmul.f32.gmra.mxu0 %v127
    %v217 = vpop.f32.mrf.mxu0
    %v218 = vadd.f32 %v109, %v217
    %219 = vmatmul.f32.gmra.mxu0 %v130
    %v220 = vpop.f32.mrf.mxu0
    %v221 = vadd.f32 %v109, %v220
    %222 = vmatmul.f32.gmra.mxu0 %v133
    %v223 = vpop.f32.mrf.mxu0
    %v224 = vadd.f32 %v109, %v223
    %225 = vmatmul.f32.gmra.mxu0 %v136
    %v226 = vpop.f32.mrf.mxu0
    %v227 = vadd.f32 %v109, %v226
    %228 = vmatmul.f32.gmra.mxu0 %v139
    %v229 = vpop.f32.mrf.mxu0
    %v230 = vadd.f32 %v109, %v229
    %231 = vmatmul.f32.gmra.mxu0 %v142
    %v232 = vpop.f32.mrf.mxu0
    %v233 = vadd.f32 %v109, %v232
    %234 = vmatmul.f32.gmra.mxu0 %v145
    %v235 = vpop.f32.mrf.mxu0
    %v236 = vadd.f32 %v109, %v235
    %237 = vmatmul.f32.gmra.mxu0 %v148
    %v238 = vpop.f32.mrf.mxu0
    %v239 = vadd.f32 %v109, %v238
    %240 = vdwg.mxu0
    %241 = vmatpush.msra.mxu0 0.0
    %242 = vmatpush.msra.mxu0 0.0
    %243 = vmatpush.msra.mxu0 0.0
    %244 = vmatpush.msra.mxu0 0.0
    %245 = vmatpush.msra.mxu0 0.0
    %246 = vmatpush.msra.mxu0 0.0
    %247 = vmatpush.msra.mxu0 0.0
    %248 = vmatpush.msra.mxu0 0.0
    %249 = vmatpush.msra.mxu0 0.0
    %250 = vmatpush.msra.mxu0 0.0
    %251 = vmatpush.msra.mxu0 0.0
    %252 = vmatpush.msra.mxu0 0.0
    %253 = vmatpush.msra.mxu0 0.0
    %254 = vmatpush.msra.mxu0 0.0
    %255 = vmatpush.msra.mxu0 0.0
    %256 = vmatpush.msra.mxu0 %v155
    %257 = vmatmul.f32.gmra.mxu0 %v127
    %v258 = vpop.f32.mrf.mxu0
    %v259 = vadd.f32 %v110, %v258
    %260 = vmatmul.f32.gmra.mxu0 %v130
    %v261 = vpop.f32.mrf.mxu0
    %v262 = vadd.f32 %v110, %v261
    %263 = vmatmul.f32.gmra.mxu0 %v133
    %v264 = vpop.f32.mrf.mxu0
    %v265 = vadd.f32 %v110, %v264
    %266 = vmatmul.f32.gmra.mxu0 %v136
    %v267 = vpop.f32.mrf.mxu0
    %v268 = vadd.f32 %v110, %v267
    %269 = vmatmul.f32.gmra.mxu0 %v139
    %v270 = vpop.f32.mrf.mxu0
    %v271 = vadd.f32 %v110, %v270
    %272 = vmatmul.f32.gmra.mxu0 %v142
    %v273 = vpop.f32.mrf.mxu0
    %v274 = vadd.f32 %v110, %v273
    %275 = vmatmul.f32.gmra.mxu0 %v145
    %v276 = vpop.f32.mrf.mxu0
    %v277 = vadd.f32 %v110, %v276
    %278 = vmatmul.f32.gmra.mxu0 %v148
    %v279 = vpop.f32.mrf.mxu0
    %v280 = vadd.f32 %v110, %v279
    %281 = vdwg.mxu0
    %282 = vmatpush.msra.mxu0 0.0
    %283 = vmatpush.msra.mxu0 0.0
    %284 = vmatpush.msra.mxu0 0.0
    %285 = vmatpush.msra.mxu0 0.0
    %286 = vmatpush.msra.mxu0 0.0
    %287 = vmatpush.msra.mxu0 0.0
    %288 = vmatpush.msra.mxu0 0.0
    %289 = vmatpush.msra.mxu0 0.0
    %290 = vmatpush.msra.mxu0 0.0
    %291 = vmatpush.msra.mxu0 0.0
    %292 = vmatpush.msra.mxu0 0.0
    %293 = vmatpush.msra.mxu0 0.0
    %294 = vmatpush.msra.mxu0 0.0
    %295 = vmatpush.msra.mxu0 0.0
    %296 = vmatpush.msra.mxu0 0.0
    %297 = vmatpush.msra.mxu0 %v157
    %298 = vmatmul.f32.gmra.mxu0 %v127
    %v299 = vpop.f32.mrf.mxu0
    %v300 = vadd.f32 %v111, %v299
    %301 = vmatmul.f32.gmra.mxu0 %v130
    %v302 = vpop.f32.mrf.mxu0
    %v303 = vadd.f32 %v111, %v302
    %304 = vmatmul.f32.gmra.mxu0 %v133
    %v305 = vpop.f32.mrf.mxu0
    %v306 = vadd.f32 %v111, %v305
    %307 = vmatmul.f32.gmra.mxu0 %v136
    %v308 = vpop.f32.mrf.mxu0
    %v309 = vadd.f32 %v111, %v308
    %310 = vmatmul.f32.gmra.mxu0 %v139
    %v311 = vpop.f32.mrf.mxu0
    %v312 = vadd.f32 %v111, %v311
    %313 = vmatmul.f32.gmra.mxu0 %v142
    %v314 = vpop.f32.mrf.mxu0
    %v315 = vadd.f32 %v111, %v314
    %316 = vmatmul.f32.gmra.mxu0 %v145
    %v317 = vpop.f32.mrf.mxu0
    %v318 = vadd.f32 %v111, %v317
    %319 = vmatmul.f32.gmra.mxu0 %v148
    %v320 = vpop.f32.mrf.mxu0
    %v321 = vadd.f32 %v111, %v320
    %322 = vdwg.mxu0
    %323 = vst [vmem:[#allocation2] sm:$0xff] %v177
    %324 = vst [vmem:[#allocation2 + $0x8] sm:$0xff] %v218
    %325 = vst [vmem:[#allocation2 + $0x10] sm:$0xff] %v259
    %326 = vst [vmem:[#allocation2 + $0x18] sm:$0xff] %v300
    %327 = vst [vmem:[#allocation2 + $0x20] sm:$0xff] %v180
    %328 = vst [vmem:[#allocation2 + $0x28] sm:$0xff] %v221
    %329 = vst [vmem:[#allocation2 + $0x30] sm:$0xff] %v262
    %330 = vst [vmem:[#allocation2 + $0x38] sm:$0xff] %v303
    %331 = vst [vmem:[#allocation2 + $0x40] sm:$0xff] %v183
    %332 = vst [vmem:[#allocation2 + $0x48] sm:$0xff] %v224
    %333 = vst [vmem:[#allocation2 + $0x50] sm:$0xff] %v265
    %334 = vst [vmem:[#allocation2 + $0x58] sm:$0xff] %v306
    %335 = vst [vmem:[#allocation2 + $0x60] sm:$0xff] %v186
    %336 = vst [vmem:[#allocation2 + $0x68] sm:$0xff] %v227
    %337 = vst [vmem:[#allocation2 + $0x70] sm:$0xff] %v268
    %338 = vst [vmem:[#allocation2 + $0x78] sm:$0xff] %v309
    %339 = vst [vmem:[#allocation2 + $0x80] sm:$0xff] %v189
    %340 = vst [vmem:[#allocation2 + $0x88] sm:$0xff] %v230
    %341 = vst [vmem:[#allocation2 + $0x90] sm:$0xff] %v271
    %342 = vst [vmem:[#allocation2 + $0x98] sm:$0xff] %v312
    %343 = vst [vmem:[#allocation2 + $0xa0] sm:$0xff] %v192
    %344 = vst [vmem:[#allocation2 + $0xa8] sm:$0xff] %v233
    %345 = vst [vmem:[#allocation2 + $0xb0] sm:$0xff] %v274
    %346 = vst [vmem:[#allocation2 + $0xb8] sm:$0xff] %v315
    %347 = vst [vmem:[#allocation2 + $0xc0] sm:$0xff] %v195
    %348 = vst [vmem:[#allocation2 + $0xc8] sm:$0xff] %v236
    %349 = vst [vmem:[#allocation2 + $0xd0] sm:$0xff] %v277
    %350 = vst [vmem:[#allocation2 + $0xd8] sm:$0xff] %v318
    %351 = vst [vmem:[#allocation2 + $0xe0] sm:$0xff] %v198
    %352 = vst [vmem:[#allocation2 + $0xe8] sm:$0xff] %v239
    %353 = vst [vmem:[#allocation2 + $0xf0] sm:$0xff] %v280
    %354 = vst [vmem:[#allocation2 + $0xf8] sm:$0xff] %v321
    %s355 = smul.u32 0, 4
    %s356 = smul.addr %s355, 8
    %s357 = scalar_lea.vmem [#allocation2], %s356
    %v358 = vld [vmem:[%s357] sm:$0xff]
    %v359 = vld [vmem:[%s357 + $0x8] sm:$0xff]
    %v360 = vld [vmem:[%s357 + $0x10] sm:$0xff]
    %v361 = vld [vmem:[%s357 + $0x18] sm:$0xff]
    %v362 = vld [vmem:[#allocation4] sm:$0xff]
    %v363 = vld [vmem:[#allocation4 + $0x8] sm:$0xff]
    %v364 = vld [vmem:[#allocation4 + $0x10] sm:$0xff]
    %v365 = vld [vmem:[#allocation4 + $0x18] sm:$0xff]
    %v366 = vld [vmem:[#allocation4 + $0x20] sm:$0xff]
    %v367 = vld [vmem:[#allocation4 + $0x28] sm:$0xff]
    %v368 = vld [vmem:[#allocation4 + $0x30] sm:$0xff]
    %v369 = vld [vmem:[#allocation4 + $0x38] sm:$0xff]
    %v370 = vld [vmem:[#allocation4 + $0x40] sm:$0xff]
    %v371 = vld [vmem:[#allocation4 + $0x48] sm:$0xff]
    %v372 = vld [vmem:[#allocation4 + $0x50] sm:$0xff]
    %v373 = vld [vmem:[#allocation4 + $0x58] sm:$0xff]
    %v374 = vld [vmem:[#allocation4 + $0x60] sm:$0xff]
    %v375 = vld [vmem:[#allocation4 + $0x68] sm:$0xff]
    %v376 = vld [vmem:[#allocation4 + $0x70] sm:$0xff]
    %v377 = vld [vmem:[#allocation4 + $0x78] sm:$0xff]
    %v378 = vld [vmem:[#allocation4 + $0x80] sm:$0xff]
    %v379 = vld [vmem:[#allocation4 + $0x88] sm:$0xff]
    %v380 = vld [vmem:[#allocation4 + $0x90] sm:$0xff]
    %v381 = vld [vmem:[#allocation4 + $0x98] sm:$0xff]
    %v382 = vld [vmem:[#allocation4 + $0xa0] sm:$0xff]
    %v383 = vld [vmem:[#allocation4 + $0xa8] sm:$0xff]
    %v384 = vld [vmem:[#allocation4 + $0xb0] sm:$0xff]
    %v385 = vld [vmem:[#allocation4 + $0xb8] sm:$0xff]
    %v386 = vld [vmem:[#allocation4 + $0xc0] sm:$0xff]
    %v387 = vld [vmem:[#allocation4 + $0xc8] sm:$0xff]
    %v388 = vld [vmem:[#allocation4 + $0xd0] sm:$0xff]
    %v389 = vld [vmem:[#allocation4 + $0xd8] sm:$0xff]
    %v390 = vld [vmem:[#allocation4 + $0xe0] sm:$0xff]
    %v391 = vld [vmem:[#allocation4 + $0xe8] sm:$0xff]
    %v392 = vld [vmem:[#allocation4 + $0xf0] sm:$0xff]
    %v393 = vld [vmem:[#allocation4 + $0xf8] sm:$0xff]
    %v394 = vld [vmem:[#allocation4 + $0x100] sm:$0xff]
    %v395 = vld [vmem:[#allocation4 + $0x108] sm:$0xff]
    %v396 = vld [vmem:[#allocation4 + $0x110] sm:$0xff]
    %v397 = vld [vmem:[#allocation4 + $0x118] sm:$0xff]
    %v398 = vld [vmem:[#allocation4 + $0x120] sm:$0xff]
    %v399 = vld [vmem:[#allocation4 + $0x128] sm:$0xff]
    %v400 = vld [vmem:[#allocation4 + $0x130] sm:$0xff]
    %v401 = vld [vmem:[#allocation4 + $0x138] sm:$0xff]
    %v402 = vld [vmem:[#allocation4 + $0x140] sm:$0xff]
    %v403 = vld [vmem:[#allocation4 + $0x148] sm:$0xff]
    %v404 = vld [vmem:[#allocation4 + $0x150] sm:$0xff]
    %v405 = vld [vmem:[#allocation4 + $0x158] sm:$0xff]
    %v406 = vld [vmem:[#allocation4 + $0x160] sm:$0xff]
    %v407 = vld [vmem:[#allocation4 + $0x168] sm:$0xff]
    %v408 = vld [vmem:[#allocation4 + $0x170] sm:$0xff]
    %v409 = vld [vmem:[#allocation4 + $0x178] sm:$0xff]
    %v410 = vld [vmem:[#allocation4 + $0x180] sm:$0xff]
    %v411 = vld [vmem:[#allocation4 + $0x188] sm:$0xff]
    %v412 = vld [vmem:[#allocation4 + $0x190] sm:$0xff]
    %v413 = vld [vmem:[#allocation4 + $0x198] sm:$0xff]
    %v414 = vld [vmem:[#allocation4 + $0x1a0] sm:$0xff]
    %v415 = vld [vmem:[#allocation4 + $0x1a8] sm:$0xff]
    %v416 = vld [vmem:[#allocation4 + $0x1b0] sm:$0xff]
    %v417 = vld [vmem:[#allocation4 + $0x1b8] sm:$0xff]
    %v418 = vld [vmem:[#allocation4 + $0x1c0] sm:$0xff]
    %v419 = vld [vmem:[#allocation4 + $0x1c8] sm:$0xff]
    %v420 = vld [vmem:[#allocation4 + $0x1d0] sm:$0xff]
    %v421 = vld [vmem:[#allocation4 + $0x1d8] sm:$0xff]
    %v422 = vld [vmem:[#allocation4 + $0x1e0] sm:$0xff]
    %v423 = vld [vmem:[#allocation4 + $0x1e8] sm:$0xff]
    %v424 = vld [vmem:[#allocation4 + $0x1f0] sm:$0xff]
    %v425 = vld [vmem:[#allocation4 + $0x1f8] sm:$0xff]
    %426 = vmatpush.msra.mxu0 %v422
    %427 = vmatpush.msra.mxu0 %v418
    %428 = vmatpush.msra.mxu0 %v414
    %429 = vmatpush.msra.mxu0 %v410
    %430 = vmatpush.msra.mxu0 %v406
    %431 = vmatpush.msra.mxu0 %v402
    %432 = vmatpush.msra.mxu0 %v398
    %433 = vmatpush.msra.mxu0 %v394
    %434 = vmatpush.msra.mxu0 %v390
    %435 = vmatpush.msra.mxu0 %v386
    %436 = vmatpush.msra.mxu0 %v382
    %437 = vmatpush.msra.mxu0 %v378
    %438 = vmatpush.msra.mxu0 %v374
    %439 = vmatpush.msra.mxu0 %v370
    %440 = vmatpush.msra.mxu0 %v366
    %441 = vmatpush.msra.mxu0 %v362
    %442 = vmatmul.f32.gmra.mxu0 0.0
    %v443 = vpop.f32.mrf.mxu0
    %v444 = vadd.f32 0.0, %v443
    %445 = vdwg.mxu0
    %446 = vmatpush.msra.mxu0 %v423
    %447 = vmatpush.msra.mxu0 %v419
    %448 = vmatpush.msra.mxu0 %v415
    %449 = vmatpush.msra.mxu0 %v411
    %450 = vmatpush.msra.mxu0 %v407
    %451 = vmatpush.msra.mxu0 %v403
    %452 = vmatpush.msra.mxu0 %v399
    %453 = vmatpush.msra.mxu0 %v395
    %454 = vmatpush.msra.mxu0 %v391
    %455 = vmatpush.msra.mxu0 %v387
    %456 = vmatpush.msra.mxu0 %v383
    %457 = vmatpush.msra.mxu0 %v379
    %458 = vmatpush.msra.mxu0 %v375
    %459 = vmatpush.msra.mxu0 %v371
    %460 = vmatpush.msra.mxu0 %v367
    %461 = vmatpush.msra.mxu0 %v363
    %462 = vmatmul.f32.gmra.mxu0 0.0
    %v463 = vpop.f32.mrf.mxu0
    %v464 = vadd.f32 0.0, %v463
    %465 = vdwg.mxu0
    %466 = vmatpush.msra.mxu0 %v424
    %467 = vmatpush.msra.mxu0 %v420
    %468 = vmatpush.msra.mxu0 %v416
    %469 = vmatpush.msra.mxu0 %v412
    %470 = vmatpush.msra.mxu0 %v408
    %471 = vmatpush.msra.mxu0 %v404
    %472 = vmatpush.msra.mxu0 %v400
    %473 = vmatpush.msra.mxu0 %v396
    %474 = vmatpush.msra.mxu0 %v392
    %475 = vmatpush.msra.mxu0 %v388
    %476 = vmatpush.msra.mxu0 %v384
    %477 = vmatpush.msra.mxu0 %v380
    %478 = vmatpush.msra.mxu0 %v376
    %479 = vmatpush.msra.mxu0 %v372
    %480 = vmatpush.msra.mxu0 %v368
    %481 = vmatpush.msra.mxu0 %v364
    %482 = vmatmul.f32.gmra.mxu0 0.0
    %v483 = vpop.f32.mrf.mxu0
    %v484 = vadd.f32 0.0, %v483
    %485 = vdwg.mxu0
    %486 = vmatpush.msra.mxu0 %v425
    %487 = vmatpush.msra.mxu0 %v421
    %488 = vmatpush.msra.mxu0 %v417
    %489 = vmatpush.msra.mxu0 %v413
    %490 = vmatpush.msra.mxu0 %v409
    %491 = vmatpush.msra.mxu0 %v405
    %492 = vmatpush.msra.mxu0 %v401
    %493 = vmatpush.msra.mxu0 %v397
    %494 = vmatpush.msra.mxu0 %v393
    %495 = vmatpush.msra.mxu0 %v389
    %496 = vmatpush.msra.mxu0 %v385
    %497 = vmatpush.msra.mxu0 %v381
    %498 = vmatpush.msra.mxu0 %v377
    %499 = vmatpush.msra.mxu0 %v373
    %500 = vmatpush.msra.mxu0 %v369
    %501 = vmatpush.msra.mxu0 %v365
    %502 = vmatmul.f32.gmra.mxu0 0.0
    %v503 = vpop.f32.mrf.mxu0
    %v504 = vadd.f32 0.0, %v503
    %505 = vdwg.mxu0
    %v506 = vadd.f32 %v358, %v444
    %v507 = vadd.f32 %v359, %v464
    %v508 = vadd.f32 %v360, %v484
    %v509 = vadd.f32 %v361, %v504
    %v510 = vmul.f32 %v506, 0.5
    %v511 = vmul.f32 %v507, 0.5
    %v512 = vmul.f32 %v508, 0.5
    %v513 = vtanh.pop %v510
    %v514 = vtanh.pop %v511
    %v515 = vtanh.pop %v512
    %v516 = vmul.f32 %v513, 0.5
    %v517 = vmul.f32 %v514, 0.5
    %v518 = vmul.f32 %v515, 0.5
    %v519 = vadd.f32 %v516, 0.5
    %v520 = vadd.f32 %v517, 0.5
    %v521 = vadd.f32 %v518, 0.5
    %v522 = vtanh.pop %v509
    %v523 = vmul.f32 %v520, 0.0
    %v524 = vmul.f32 %v519, %v522
    %v525 = vadd.f32 %v523, %v524
    %v526 = vtanh.pop %v525
    %v527 = vmul.f32 %v521, %v526
    %528 = vst [vmem:[#allocation3] sm:$0xff] %v527
    %s529 = smul.u32 1, 4
    %s530 = smul.addr %s529, 8
    %s531 = scalar_lea.vmem [#allocation2], %s530
    %v532 = vld [vmem:[%s531] sm:$0xff]
    %v533 = vld [vmem:[%s531 + $0x8] sm:$0xff]
    %v534 = vld [vmem:[%s531 + $0x10] sm:$0xff]
    %v535 = vld [vmem:[%s531 + $0x18] sm:$0xff]
    %v536 = vld [vmem:[#allocation4] sm:$0xff]
    %v537 = vld [vmem:[#allocation4 + $0x8] sm:$0xff]
    %v538 = vld [vmem:[#allocation4 + $0x10] sm:$0xff]
    %v539 = vld [vmem:[#allocation4 + $0x18] sm:$0xff]
    %v540 = vld [vmem:[#allocation4 + $0x20] sm:$0xff]
    %v541 = vld [vmem:[#allocation4 + $0x28] sm:$0xff]
    %v542 = vld [vmem:[#allocation4 + $0x30] sm:$0xff]
    %v543 = vld [vmem:[#allocation4 + $0x38] sm:$0xff]
    %v544 = vld [vmem:[#allocation4 + $0x40] sm:$0xff]
    %v545 = vld [vmem:[#allocation4 + $0x48] sm:$0xff]
    %v546 = vld [vmem:[#allocation4 + $0x50] sm:$0xff]
    %v547 = vld [vmem:[#allocation4 + $0x58] sm:$0xff]
    %v548 = vld [vmem:[#allocation4 + $0x60] sm:$0xff]
    %v549 = vld [vmem:[#allocation4 + $0x68] sm:$0xff]
    %v550 = vld [vmem:[#allocation4 + $0x70] sm:$0xff]
    %v551 = vld [vmem:[#allocation4 + $0x78] sm:$0xff]
    %v552 = vld [vmem:[#allocation4 + $0x80] sm:$0xff]
    %v553 = vld [vmem:[#allocation4 + $0x88] sm:$0xff]
    %v554 = vld [vmem:[#allocation4 + $0x90] sm:$0xff]
    %v555 = vld [vmem:[#allocation4 + $0x98] sm:$0xff]
    %v556 = vld [vmem:[#allocation4 + $0xa0] sm:$0xff]
    %v557 = vld [vmem:[#allocation4 + $0xa8] sm:$0xff]
    %v558 = vld [vmem:[#allocation4 + $0xb0] sm:$0xff]
    %v559 = vld [vmem:[#allocation4 + $0xb8] sm:$0xff]
    %v560 = vld [vmem:[#allocation4 + $0xc0] sm:$0xff]
    %v561 = vld [vmem:[#allocation4 + $0xc8] sm:$0xff]
    %v562 = vld [vmem:[#allocation4 + $0xd0] sm:$0xff]
    %v563 = vld [vmem:[#allocation4 + $0xd8] sm:$0xff]
    %v564 = vld [vmem:[#allocation4 + $0xe0] sm:$0xff]
    %v565 = vld [vmem:[#allocation4 + $0xe8] sm:$0xff]
    %v566 = vld [vmem:[#allocation4 + $0xf0] sm:$0xff]
    %v567 = vld [vmem:[#allocation4 + $0xf8] sm:$0xff]
    %v568 = vld [vmem:[#allocation4 + $0x100] sm:$0xff]
    %v569 = vld [vmem:[#allocation4 + $0x108] sm:$0xff]
    %v570 = vld [vmem:[#allocation4 + $0x110] sm:$0xff]
    %v571 = vld [vmem:[#allocation4 + $0x118] sm:$0xff]
    %v572 = vld [vmem:[#allocation4 + $0x120] sm:$0xff]
    %v573 = vld [vmem:[#allocation4 + $0x128] sm:$0xff]
    %v574 = vld [vmem:[#allocation4 + $0x130] sm:$0xff]
    %v575 = vld [vmem:[#allocation4 + $0x138] sm:$0xff]
    %v576 = vld [vmem:[#allocation4 + $0x140] sm:$0xff]
    %v577 = vld [vmem:[#allocation4 + $0x148] sm:$0xff]
    %v578 = vld [vmem:[#allocation4 + $0x150] sm:$0xff]
    %v579 = vld [vmem:[#allocation4 + $0x158] sm:$0xff]
    %v580 = vld [vmem:[#allocation4 + $0x160] sm:$0xff]
    %v581 = vld [vmem:[#allocation4 + $0x168] sm:$0xff]
    %v582 = vld [vmem:[#allocation4 + $0x170] sm:$0xff]
    %v583 = vld [vmem:[#allocation4 + $0x178] sm:$0xff]
    %v584 = vld [vmem:[#allocation4 + $0x180] sm:$0xff]
    %v585 = vld [vmem:[#allocation4 + $0x188] sm:$0xff]
    %v586 = vld [vmem:[#allocation4 + $0x190] sm:$0xff]
    %v587 = vld [vmem:[#allocation4 + $0x198] sm:$0xff]
    %v588 = vld [vmem:[#allocation4 + $0x1a0] sm:$0xff]
    %v589 = vld [vmem:[#allocation4 + $0x1a8] sm:$0xff]
    %v590 = vld [vmem:[#allocation4 + $0x1b0] sm:$0xff]
    %v591 = vld [vmem:[#allocation4 + $0x1b8] sm:$0xff]
    %v592 = vld [vmem:[#allocation4 + $0x1c0] sm:$0xff]
    %v593 = vld [vmem:[#allocation4 + $0x1c8] sm:$0xff]
    %v594 = vld [vmem:[#allocation4 + $0x1d0] sm:$0xff]
    %v595 = vld [vmem:[#allocation4 + $0x1d8] sm:$0xff]
    %v596 = vld [vmem:[#allocation4 + $0x1e0] sm:$0xff]
    %v597 = vld [vmem:[#allocation4 + $0x1e8] sm:$0xff]
    %v598 = vld [vmem:[#allocation4 + $0x1f0] sm:$0xff]
    %v599 = vld [vmem:[#allocation4 + $0x1f8] sm:$0xff]
    %600 = vmatpush.msra.mxu0 %v596
    %601 = vmatpush.msra.mxu0 %v592
    %602 = vmatpush.msra.mxu0 %v588
    %603 = vmatpush.msra.mxu0 %v584
    %604 = vmatpush.msra.mxu0 %v580
    %605 = vmatpush.msra.mxu0 %v576
    %606 = vmatpush.msra.mxu0 %v572
    %607 = vmatpush.msra.mxu0 %v568
    %608 = vmatpush.msra.mxu0 %v564
    %609 = vmatpush.msra.mxu0 %v560
    %610 = vmatpush.msra.mxu0 %v556
    %611 = vmatpush.msra.mxu0 %v552
    %612 = vmatpush.msra.mxu0 %v548
    %613 = vmatpush.msra.mxu0 %v544
    %614 = vmatpush.msra.mxu0 %v540
    %615 = vmatpush.msra.mxu0 %v536
    %616 = vmatmul.f32.gmra.mxu0 %v527
    %v617 = vpop.f32.mrf.mxu0
    %v618 = vadd.f32 0.0, %v617
    %619 = vdwg.mxu0
    %620 = vmatpush.msra.mxu0 %v597
    %621 = vmatpush.msra.mxu0 %v593
    %622 = vmatpush.msra.mxu0 %v589
    %623 = vmatpush.msra.mxu0 %v585
    %624 = vmatpush.msra.mxu0 %v581
    %625 = vmatpush.msra.mxu0 %v577
    %626 = vmatpush.msra.mxu0 %v573
    %627 = vmatpush.msra.mxu0 %v569
    %628 = vmatpush.msra.mxu0 %v565
    %629 = vmatpush.msra.mxu0 %v561
    %630 = vmatpush.msra.mxu0 %v557
    %631 = vmatpush.msra.mxu0 %v553
    %632 = vmatpush.msra.mxu0 %v549
    %633 = vmatpush.msra.mxu0 %v545
    %634 = vmatpush.msra.mxu0 %v541
    %635 = vmatpush.msra.mxu0 %v537
    %636 = vmatmul.f32.gmra.mxu0 %v527
    %v637 = vpop.f32.mrf.mxu0
    %v638 = vadd.f32 0.0, %v637
    %639 = vdwg.mxu0
    %640 = vmatpush.msra.mxu0 %v598
    %641 = vmatpush.msra.mxu0 %v594
    %642 = vmatpush.msra.mxu0 %v590
    %643 = vmatpush.msra.mxu0 %v586
    %644 = vmatpush.msra.mxu0 %v582
    %645 = vmatpush.msra.mxu0 %v578
    %646 = vmatpush.msra.mxu0 %v574
    %647 = vmatpush.msra.mxu0 %v570
    %648 = vmatpush.msra.mxu0 %v566
    %649 = vmatpush.msra.mxu0 %v562
    %650 = vmatpush.msra.mxu0 %v558
    %651 = vmatpush.msra.mxu0 %v554
    %652 = vmatpush.msra.mxu0 %v550
    %653 = vmatpush.msra.mxu0 %v546
    %654 = vmatpush.msra.mxu0 %v542
    %655 = vmatpush.msra.mxu0 %v538
    %656 = vmatmul.f32.gmra.mxu0 %v527
    %v657 = vpop.f32.mrf.mxu0
    %v658 = vadd.f32 0.0, %v657
    %659 = vdwg.mxu0
    %660 = vmatpush.msra.mxu0 %v599
    %661 = vmatpush.msra.mxu0 %v595
    %662 = vmatpush.msra.mxu0 %v591
    %663 = vmatpush.msra.mxu0 %v587
    %664 = vmatpush.msra.mxu0 %v583
    %665 = vmatpush.msra.mxu0 %v579
    %666 = vmatpush.msra.mxu0 %v575
    %667 = vmatpush.msra.mxu0 %v571
    %668 = vmatpush.msra.mxu0 %v567
    %669 = vmatpush.msra.mxu0 %v563
    %670 = vmatpush.msra.mxu0 %v559
    %671 = vmatpush.msra.mxu0 %v555
    %672 = vmatpush.msra.mxu0 %v551
    %673 = vmatpush.msra.mxu0 %v547
    %674 = vmatpush.msra.mxu0 %v543
    %675 = vmatpush.msra.mxu0 %v539
    %676 = vmatmul.f32.gmra.mxu0 %v527
    %v677 = vpop.f32.mrf.mxu0
    %v678 = vadd.f32 0.0, %v677
    %679 = vdwg.mxu0
    %v680 = vadd.f32 %v532, %v618
    %v681 = vadd.f32 %v533, %v638
    %v682 = vadd.f32 %v534, %v658
    %v683 = vadd.f32 %v535, %v678
    %v684 = vmul.f32 %v680, 0.5
    %v685 = vmul.f32 %v681, 0.5
    %v686 = vmul.f32 %v682, 0.5
    %v687 = vtanh.pop %v684
    %v688 = vtanh.pop %v685
    %v689 = vtanh.pop %v686
    %v690 = vmul.f32 %v687, 0.5
    %v691 = vmul.f32 %v688, 0.5
    %v692 = vmul.f32 %v689, 0.5
    %v693 = vadd.f32 %v690, 0.5
    %v694 = vadd.f32 %v691, 0.5
    %v695 = vadd.f32 %v692, 0.5
    %v696 = vtanh.pop %v683
    %v697 = vmul.f32 %v694, %v525
    %v698 = vmul.f32 %v693, %v696
    %v699 = vadd.f32 %v697, %v698
    %v700 = vtanh.pop %v699
    %v701 = vmul.f32 %v695, %v700
    %s702 = scalar_lea.vmem [#allocation3], 8
    %703 = vst [vmem:[%s702] sm:$0xff] %v701
    %s704 = smul.u32 2, 4
    %s705 = smul.addr %s704, 8
    %s706 = scalar_lea.vmem [#allocation2], %s705
    %v707 = vld [vmem:[%s706] sm:$0xff]
    %v708 = vld [vmem:[%s706 + $0x8] sm:$0xff]
    %v709 = vld [vmem:[%s706 + $0x10] sm:$0xff]
    %v710 = vld [vmem:[%s706 + $0x18] sm:$0xff]
    %v711 = vld [vmem:[#allocation4] sm:$0xff]
    %v712 = vld [vmem:[#allocation4 + $0x8] sm:$0xff]
    %v713 = vld [vmem:[#allocation4 + $0x10] sm:$0xff]
    %v714 = vld [vmem:[#allocation4 + $0x18] sm:$0xff]
    %v715 = vld [vmem:[#allocation4 + $0x20] sm:$0xff]
    %v716 = vld [vmem:[#allocation4 + $0x28] sm:$0xff]
    %v717 = vld [vmem:[#allocation4 + $0x30] sm:$0xff]
    %v718 = vld [vmem:[#allocation4 + $0x38] sm:$0xff]
    %v719 = vld [vmem:[#allocation4 + $0x40] sm:$0xff]
    %v720 = vld [vmem:[#allocation4 + $0x48] sm:$0xff]
    %v721 = vld [vmem:[#allocation4 + $0x50] sm:$0xff]
    %v722 = vld [vmem:[#allocation4 + $0x58] sm:$0xff]
    %v723 = vld [vmem:[#allocation4 + $0x60] sm:$0xff]
    %v724 = vld [vmem:[#allocation4 + $0x68] sm:$0xff]
    %v725 = vld [vmem:[#allocation4 + $0x70] sm:$0xff]
    %v726 = vld [vmem:[#allocation4 + $0x78] sm:$0xff]
    %v727 = vld [vmem:[#allocation4 + $0x80] sm:$0xff]
    %v728 = vld [vmem:[#allocation4 + $0x88] sm:$0xff]
    %v729 = vld [vmem:[#allocation4 + $0x90] sm:$0xff]
    %v730 = vld [vmem:[#allocation4 + $0x98] sm:$0xff]
    %v731 = vld [vmem:[#allocation4 + $0xa0] sm:$0xff]
    %v732 = vld [vmem:[#allocation4 + $0xa8] sm:$0xff]
    %v733 = vld [vmem:[#allocation4 + $0xb0] sm:$0xff]
    %v734 = vld [vmem:[#allocation4 + $0xb8] sm:$0xff]
    %v735 = vld [vmem:[#allocation4 + $0xc0] sm:$0xff]
    %v736 = vld [vmem:[#allocation4 + $0xc8] sm:$0xff]
    %v737 = vld [vmem:[#allocation4 + $0xd0] sm:$0xff]
    %v738 = vld [vmem:[#allocation4 + $0xd8] sm:$0xff]
    %v739 = vld [vmem:[#allocation4 + $0xe0] sm:$0xff]
    %v740 = vld [vmem:[#allocation4 + $0xe8] sm:$0xff]
    %v741 = vld [vmem:[#allocation4 + $0xf0] sm:$0xff]
    %v742 = vld [vmem:[#allocation4 + $0xf8] sm:$0xff]
    %v743 = vld [vmem:[#allocation4 + $0x100] sm:$0xff]
    %v744 = vld [vmem:[#allocation4 + $0x108] sm:$0xff]
    %v745 = vld [vmem:[#allocation4 + $0x110] sm:$0xff]
    %v746 = vld [vmem:[#allocation4 + $0x118] sm:$0xff]
    %v747 = vld [vmem:[#allocation4 + $0x120] sm:$0xff]
    %v748 = vld [vmem:[#allocation4 + $0x128] sm:$0xff]
    %v749 = vld [vmem:[#allocation4 + $0x130] sm:$0xff]
    %v750 = vld [vmem:[#allocation4 + $0x138] sm:$0xff]
    %v751 = vld [vmem:[#allocation4 + $0x140] sm:$0xff]
    %v752 = vld [vmem:[#allocation4 + $0x148] sm:$0xff]
    %v753 = vld [vmem:[#allocation4 + $0x150] sm:$0xff]
    %v754 = vld [vmem:[#allocation4 + $0x158] sm:$0xff]
    %v755 = vld [vmem:[#allocation4 + $0x160] sm:$0xff]
    %v756 = vld [vmem:[#allocation4 + $0x168] sm:$0xff]
    %v757 = vld [vmem:[#allocation4 + $0x170] sm:$0xff]
    %v758 = vld [vmem:[#allocation4 + $0x178] sm:$0xff]
    %v759 = vld [vmem:[#allocation4 + $0x180] sm:$0xff]
    %v760 = vld [vmem:[#allocation4 + $0x188] sm:$0xff]
    %v761 = vld [vmem:[#allocation4 + $0x190] sm:$0xff]
    %v762 = vld [vmem:[#allocation4 + $0x198] sm:$0xff]
    %v763 = vld [vmem:[#allocation4 + $0x1a0] sm:$0xff]
    %v764 = vld [vmem:[#allocation4 + $0x1a8] sm:$0xff]
    %v765 = vld [vmem:[#allocation4 + $0x1b0] sm:$0xff]
    %v766 = vld [vmem:[#allocation4 + $0x1b8] sm:$0xff]
    %v767 = vld [vmem:[#allocation4 + $0x1c0] sm:$0xff]
    %v768 = vld [vmem:[#allocation4 + $0x1c8] sm:$0xff]
    %v769 = vld [vmem:[#allocation4 + $0x1d0] sm:$0xff]
    %v770 = vld [vmem:[#allocation4 + $0x1d8] sm:$0xff]
    %v771 = vld [vmem:[#allocation4 + $0x1e0] sm:$0xff]
    %v772 = vld [vmem:[#allocation4 + $0x1e8] sm:$0xff]
    %v773 = vld [vmem:[#allocation4 + $0x1f0] sm:$0xff]
    %v774 = vld [vmem:[#allocation4 + $0x1f8] sm:$0xff]
    %775 = vmatpush.msra.mxu0 %v771
    %776 = vmatpush.msra.mxu0 %v767
    %777 = vmatpush.msra.mxu0 %v763
    %778 = vmatpush.msra.mxu0 %v759
    %779 = vmatpush.msra.mxu0 %v755
    %780 = vmatpush.msra.mxu0 %v751
    %781 = vmatpush.msra.mxu0 %v747
    %782 = vmatpush.msra.mxu0 %v743
    %783 = vmatpush.msra.mxu0 %v739
    %784 = vmatpush.msra.mxu0 %v735
    %785 = vmatpush.msra.mxu0 %v731
    %786 = vmatpush.msra.mxu0 %v727
    %787 = vmatpush.msra.mxu0 %v723
    %788 = vmatpush.msra.mxu0 %v719
    %789 = vmatpush.msra.mxu0 %v715
    %790 = vmatpush.msra.mxu0 %v711
    %791 = vmatmul.f32.gmra.mxu0 %v701
    %v792 = vpop.f32.mrf.mxu0
    %v793 = vadd.f32 0.0, %v792
    %794 = vdwg.mxu0
    %795 = vmatpush.msra.mxu0 %v772
    %796 = vmatpush.msra.mxu0 %v768
    %797 = vmatpush.msra.mxu0 %v764
    %798 = vmatpush.msra.mxu0 %v760
    %799 = vmatpush.msra.mxu0 %v756
    %800 = vmatpush.msra.mxu0 %v752
    %801 = vmatpush.msra.mxu0 %v748
    %802 = vmatpush.msra.mxu0 %v744
    %803 = vmatpush.msra.mxu0 %v740
    %804 = vmatpush.msra.mxu0 %v736
    %805 = vmatpush.msra.mxu0 %v732
    %806 = vmatpush.msra.mxu0 %v728
    %807 = vmatpush.msra.mxu0 %v724
    %808 = vmatpush.msra.mxu0 %v720
    %809 = vmatpush.msra.mxu0 %v716
    %810 = vmatpush.msra.mxu0 %v712
    %811 = vmatmul.f32.gmra.mxu0 %v701
    %v812 = vpop.f32.mrf.mxu0
    %v813 = vadd.f32 0.0, %v812
    %814 = vdwg.mxu0
    %815 = vmatpush.msra.mxu0 %v773
    %816 = vmatpush.msra.mxu0 %v769
    %817 = vmatpush.msra.mxu0 %v765
    %818 = vmatpush.msra.mxu0 %v761
    %819 = vmatpush.msra.mxu0 %v757
    %820 = vmatpush.msra.mxu0 %v753
    %821 = vmatpush.msra.mxu0 %v749
    %822 = vmatpush.msra.mxu0 %v745
    %823 = vmatpush.msra.mxu0 %v741
    %824 = vmatpush.msra.mxu0 %v737
    %825 = vmatpush.msra.mxu0 %v733
    %826 = vmatpush.msra.mxu0 %v729
    %827 = vmatpush.msra.mxu0 %v725
    %828 = vmatpush.msra.mxu0 %v721
    %829 = vmatpush.msra.mxu0 %v717
    %830 = vmatpush.msra.mxu0 %v713
    %831 = vmatmul.f32.gmra.mxu0 %v701
    %v832 = vpop.f32.mrf.mxu0
    %v833 = vadd.f32 0.0, %v832
    %834 = vdwg.mxu0
    %835 = vmatpush.msra.mxu0 %v774
    %836 = vmatpush.msra.mxu0 %v770
    %837 = vmatpush.msra.mxu0 %v766
    %838 = vmatpush.msra.mxu0 %v762
    %839 = vmatpush.msra.mxu0 %v758
    %840 = vmatpush.msra.mxu0 %v754
    %841 = vmatpush.msra.mxu0 %v750
    %842 = vmatpush.msra.mxu0 %v746
    %843 = vmatpush.msra.mxu0 %v742
    %844 = vmatpush.msra.mxu0 %v738
    %845 = vmatpush.msra.mxu0 %v734
    %846 = vmatpush.msra.mxu0 %v730
    %847 = vmatpush.msra.mxu0 %v726
    %848 = vmatpush.msra.mxu0 %v722
    %849 = vmatpush.msra.mxu0 %v718
    %850 = vmatpush.msra.mxu0 %v714
    %851 = vmatmul.f32.gmra.mxu0 %v701
    %v852 = vpop.f32.mrf.mxu0
    %v853 = vadd.f32 0.0, %v852
    %854 = vdwg.mxu0
    %v855 = vadd.f32 %v707, %v793
    %v856 = vadd.f32 %v708, %v813
    %v857 = vadd.f32 %v709, %v833
    %v858 = vadd.f32 %v710, %v853
    %v859 = vmul.f32 %v855, 0.5
    %v860 = vmul.f32 %v856, 0.5
    %v861 = vmul.f32 %v857, 0.5
    %v862 = vtanh.pop %v859
    %v863 = vtanh.pop %v860
    %v864 = vtanh.pop %v861
    %v865 = vmul.f32 %v862, 0.5
    %v866 = vmul.f32 %v863, 0.5
    %v867 = vmul.f32 %v864, 0.5
    %v868 = vadd.f32 %v865, 0.5
    %v869 = vadd.f32 %v866, 0.5
    %v870 = vadd.f32 %v867, 0.5
    %v871 = vtanh.pop %v858
    %v872 = vmul.f32 %v869, %v699
    %v873 = vmul.f32 %v868, %v871
    %v874 = vadd.f32 %v872, %v873
    %v875 = vtanh.pop %v874
    %v876 = vmul.f32 %v870, %v875
    %s877 = scalar_lea.vmem [#allocation3], 16
    %878 = vst [vmem:[%s877] sm:$0xff] %v876
    %s879 = smul.u32 3, 4
    %s880 = smul.addr %s879, 8
    %s881 = scalar_lea.vmem [#allocation2], %s880
    %v882 = vld [vmem:[%s881] sm:$0xff]
    %v883 = vld [vmem:[%s881 + $0x8] sm:$0xff]
    %v884 = vld [vmem:[%s881 + $0x10] sm:$0xff]
    %v885 = vld [vmem:[%s881 + $0x18] sm:$0xff]
    %v886 = vld [vmem:[#allocation4] sm:$0xff]
    %v887 = vld [vmem:[#allocation4 + $0x8] sm:$0xff]
    %v888 = vld [vmem:[#allocation4 + $0x10] sm:$0xff]
    %v889 = vld [vmem:[#allocation4 + $0x18] sm:$0xff]
    %v890 = vld [vmem:[#allocation4 + $0x20] sm:$0xff]
    %v891 = vld [vmem:[#allocation4 + $0x28] sm:$0xff]
    %v892 = vld [vmem:[#allocation4 + $0x30] sm:$0xff]
    %v893 = vld [vmem:[#allocation4 + $0x38] sm:$0xff]
    %v894 = vld [vmem:[#allocation4 + $0x40] sm:$0xff]
    %v895 = vld [vmem:[#allocation4 + $0x48] sm:$0xff]
    %v896 = vld [vmem:[#allocation4 + $0x50] sm:$0xff]
    %v897 = vld [vmem:[#allocation4 + $0x58] sm:$0xff]
    %v898 = vld [vmem:[#allocation4 + $0x60] sm:$0xff]
    %v899 = vld [vmem:[#allocation4 + $0x68] sm:$0xff]
    %v900 = vld [vmem:[#allocation4 + $0x70] sm:$0xff]
    %v901 = vld [vmem:[#allocation4 + $0x78] sm:$0xff]
    %v902 = vld [vmem:[#allocation4 + $0x80] sm:$0xff]
    %v903 = vld [vmem:[#allocation4 + $0x88] sm:$0xff]
    %v904 = vld [vmem:[#allocation4 + $0x90] sm:$0xff]
    %v905 = vld [vmem:[#allocation4 + $0x98] sm:$0xff]
    %v906 = vld [vmem:[#allocation4 + $0xa0] sm:$0xff]
    %v907 = vld [vmem:[#allocation4 + $0xa8] sm:$0xff]
    %v908 = vld [vmem:[#allocation4 + $0xb0] sm:$0xff]
    %v909 = vld [vmem:[#allocation4 + $0xb8] sm:$0xff]
    %v910 = vld [vmem:[#allocation4 + $0xc0] sm:$0xff]
    %v911 = vld [vmem:[#allocation4 + $0xc8] sm:$0xff]
    %v912 = vld [vmem:[#allocation4 + $0xd0] sm:$0xff]
    %v913 = vld [vmem:[#allocation4 + $0xd8] sm:$0xff]
    %v914 = vld [vmem:[#allocation4 + $0xe0] sm:$0xff]
    %v915 = vld [vmem:[#allocation4 + $0xe8] sm:$0xff]
    %v916 = vld [vmem:[#allocation4 + $0xf0] sm:$0xff]
    %v917 = vld [vmem:[#allocation4 + $0xf8] sm:$0xff]
    %v918 = vld [vmem:[#allocation4 + $0x100] sm:$0xff]
    %v919 = vld [vmem:[#allocation4 + $0x108] sm:$0xff]
    %v920 = vld [vmem:[#allocation4 + $0x110] sm:$0xff]
    %v921 = vld [vmem:[#allocation4 + $0x118] sm:$0xff]
    %v922 = vld [vmem:[#allocation4 + $0x120] sm:$0xff]
    %v923 = vld [vmem:[#allocation4 + $0x128] sm:$0xff]
    %v924 = vld [vmem:[#allocation4 + $0x130] sm:$0xff]
    %v925 = vld [vmem:[#allocation4 + $0x138] sm:$0xff]
    %v926 = vld [vmem:[#allocation4 + $0x140] sm:$0xff]
    %v927 = vld [vmem:[#allocation4 + $0x148] sm:$0xff]
    %v928 = vld [vmem:[#allocation4 + $0x150] sm:$0xff]
    %v929 = vld [vmem:[#allocation4 + $0x158] sm:$0xff]
    %v930 = vld [vmem:[#allocation4 + $0x160] sm:$0xff]
    %v931 = vld [vmem:[#allocation4 + $0x168] sm:$0xff]
    %v932 = vld [vmem:[#allocation4 + $0x170] sm:$0xff]
    %v933 = vld [vmem:[#allocation4 + $0x178] sm:$0xff]
    %v934 = vld [vmem:[#allocation4 + $0x180] sm:$0xff]
    %v935 = vld [vmem:[#allocation4 + $0x188] sm:$0xff]
    %v936 = vld [vmem:[#allocation4 + $0x190] sm:$0xff]
    %v937 = vld [vmem:[#allocation4 + $0x198] sm:$0xff]
    %v938 = vld [vmem:[#allocation4 + $0x1a0] sm:$0xff]
    %v939 = vld [vmem:[#allocation4 + $0x1a8] sm:$0xff]
    %v940 = vld [vmem:[#allocation4 + $0x1b0] sm:$0xff]
    %v941 = vld [vmem:[#allocation4 + $0x1b8] sm:$0xff]
    %v942 = vld [vmem:[#allocation4 + $0x1c0] sm:$0xff]
    %v943 = vld [vmem:[#allocation4 + $0x1c8] sm:$0xff]
    %v944 = vld [vmem:[#allocation4 + $0x1d0] sm:$0xff]
    %v945 = vld [vmem:[#allocation4 + $0x1d8] sm:$0xff]
    %v946 = vld [vmem:[#allocation4 + $0x1e0] sm:$0xff]
    %v947 = vld [vmem:[#allocation4 + $0x1e8] sm:$0xff]
    %v948 = vld [vmem:[#allocation4 + $0x1f0] sm:$0xff]
    %v949 = vld [vmem:[#allocation4 + $0x1f8] sm:$0xff]
    %950 = vmatpush.msra.mxu0 %v946
    %951 = vmatpush.msra.mxu0 %v942
    %952 = vmatpush.msra.mxu0 %v938
    %953 = vmatpush.msra.mxu0 %v934
    %954 = vmatpush.msra.mxu0 %v930
    %955 = vmatpush.msra.mxu0 %v926
    %956 = vmatpush.msra.mxu0 %v922
    %957 = vmatpush.msra.mxu0 %v918
    %958 = vmatpush.msra.mxu0 %v914
    %959 = vmatpush.msra.mxu0 %v910
    %960 = vmatpush.msra.mxu0 %v906
    %961 = vmatpush.msra.mxu0 %v902
    %962 = vmatpush.msra.mxu0 %v898
    %963 = vmatpush.msra.mxu0 %v894
    %964 = vmatpush.msra.mxu0 %v890
    %965 = vmatpush.msra.mxu0 %v886
    %966 = vmatmul.f32.gmra.mxu0 %v876
    %v967 = vpop.f32.mrf.mxu0
    %v968 = vadd.f32 0.0, %v967
    %969 = vdwg.mxu0
    %970 = vmatpush.msra.mxu0 %v947
    %971 = vmatpush.msra.mxu0 %v943
    %972 = vmatpush.msra.mxu0 %v939
    %973 = vmatpush.msra.mxu0 %v935
    %974 = vmatpush.msra.mxu0 %v931
    %975 = vmatpush.msra.mxu0 %v927
    %976 = vmatpush.msra.mxu0 %v923
    %977 = vmatpush.msra.mxu0 %v919
    %978 = vmatpush.msra.mxu0 %v915
    %979 = vmatpush.msra.mxu0 %v911
    %980 = vmatpush.msra.mxu0 %v907
    %981 = vmatpush.msra.mxu0 %v903
    %982 = vmatpush.msra.mxu0 %v899
    %983 = vmatpush.msra.mxu0 %v895
    %984 = vmatpush.msra.mxu0 %v891
    %985 = vmatpush.msra.mxu0 %v887
    %986 = vmatmul.f32.gmra.mxu0 %v876
    %v987 = vpop.f32.mrf.mxu0
    %v988 = vadd.f32 0.0, %v987
    %989 = vdwg.mxu0
    %990 = vmatpush.msra.mxu0 %v948
    %991 = vmatpush.msra.mxu0 %v944
    %992 = vmatpush.msra.mxu0 %v940
    %993 = vmatpush.msra.mxu0 %v936
    %994 = vmatpush.msra.mxu0 %v932
    %995 = vmatpush.msra.mxu0 %v928
    %996 = vmatpush.msra.mxu0 %v924
    %997 = vmatpush.msra.mxu0 %v920
    %998 = vmatpush.msra.mxu0 %v916
    %999 = vmatpush.msra.mxu0 %v912
    %1000 = vmatpush.msra.mxu0 %v908
    %1001 = vmatpush.msra.mxu0 %v904
    %1002 = vmatpush.msra.mxu0 %v900
    %1003 = vmatpush.msra.mxu0 %v896
    %1004 = vmatpush.msra.mxu0 %v892
    %1005 = vmatpush.msra.mxu0 %v888
    %1006 = vmatmul.f32.gmra.mxu0 %v876
    %v1007 = vpop.f32.mrf.mxu0
    %v1008 = vadd.f32 0.0, %v1007
    %1009 = vdwg.mxu0
    %1010 = vmatpush.msra.mxu0 %v949
    %1011 = vmatpush.msra.mxu0 %v945
    %1012 = vmatpush.msra.mxu0 %v941
    %1013 = vmatpush.msra.mxu0 %v937
    %1014 = vmatpush.msra.mxu0 %v933
    %1015 = vmatpush.msra.mxu0 %v929
    %1016 = vmatpush.msra.mxu0 %v925
    %1017 = vmatpush.msra.mxu0 %v921
    %1018 = vmatpush.msra.mxu0 %v917
    %1019 = vmatpush.msra.mxu0 %v913
    %1020 = vmatpush.msra.mxu0 %v909
    %1021 = vmatpush.msra.mxu0 %v905
    %1022 = vmatpush.msra.mxu0 %v901
    %1023 = vmatpush.msra.mxu0 %v897
    %1024 = vmatpush.msra.mxu0 %v893
    %1025 = vmatpush.msra.mxu0 %v889
    %1026 = vmatmul.f32.gmra.mxu0 %v876
    %v1027 = vpop.f32.mrf.mxu0
    %v1028 = vadd.f32 0.0, %v1027
    %1029 = vdwg.mxu0
    %v1030 = vadd.f32 %v882, %v968
    %v1031 = vadd.f32 %v883, %v988
    %v1032 = vadd.f32 %v884, %v1008
    %v1033 = vadd.f32 %v885, %v1028
    %v1034 = vmul.f32 %v1030, 0.5
    %v1035 = vmul.f32 %v1031, 0.5
    %v1036 = vmul.f32 %v1032, 0.5
    %v1037 = vtanh.pop %v1034
    %v1038 = vtanh.pop %v1035
    %v1039 = vtanh.pop %v1036
    %v1040 = vmul.f32 %v1037, 0.5
    %v1041 = vmul.f32 %v1038, 0.5
    %v1042 = vmul.f32 %v1039, 0.5
    %v1043 = vadd.f32 %v1040, 0.5
    %v1044 = vadd.f32 %v1041, 0.5
    %v1045 = vadd.f32 %v1042, 0.5
    %v1046 = vtanh.pop %v1033
    %v1047 = vmul.f32 %v1044, %v874
    %v1048 = vmul.f32 %v1043, %v1046
    %v1049 = vadd.f32 %v1047, %v1048
    %v1050 = vtanh.pop %v1049
    %v1051 = vmul.f32 %v1045, %v1050
    %s1052 = scalar_lea.vmem [#allocation3], 24
    %1053 = vst [vmem:[%s1052] sm:$0xff] %v1051
    %s1054 = smul.u32 4, 4
    %s1055 = smul.addr %s1054, 8
    %s1056 = scalar_lea.vmem [#allocation2], %s1055
    %v1057 = vld [vmem:[%s1056] sm:$0xff]
    %v1058 = vld [vmem:[%s1056 + $0x8] sm:$0xff]
    %v1059 = vld [vmem:[%s1056 + $0x10] sm:$0xff]
    %v1060 = vld [vmem:[%s1056 + $0x18] sm:$0xff]
    %v1061 = vld [vmem:[#allocation4] sm:$0xff]
    %v1062 = vld [vmem:[#allocation4 + $0x8] sm:$0xff]
    %v1063 = vld [vmem:[#allocation4 + $0x10] sm:$0xff]
    %v1064 = vld [vmem:[#allocation4 + $0x18] sm:$0xff]
    %v1065 = vld [vmem:[#allocation4 + $0x20] sm:$0xff]
    %v1066 = vld [vmem:[#allocation4 + $0x28] sm:$0xff]
    %v1067 = vld [vmem:[#allocation4 + $0x30] sm:$0xff]
    %v1068 = vld [vmem:[#allocation4 + $0x38] sm:$0xff]
    %v1069 = vld [vmem:[#allocation4 + $0x40] sm:$0xff]
    %v1070 = vld [vmem:[#allocation4 + $0x48] sm:$0xff]
    %v1071 = vld [vmem:[#allocation4 + $0x50] sm:$0xff]
    %v1072 = vld [vmem:[#allocation4 + $0x58] sm:$0xff]
    %v1073 = vld [vmem:[#allocation4 + $0x60] sm:$0xff]
    %v1074 = vld [vmem:[#allocation4 + $0x68] sm:$0xff]
    %v1075 = vld [vmem:[#allocation4 + $0x70] sm:$0xff]
    %v1076 = vld [vmem:[#allocation4 + $0x78] sm:$0xff]
    %v1077 = vld [vmem:[#allocation4 + $0x80] sm:$0xff]
    %v1078 = vld [vmem:[#allocation4 + $0x88] sm:$0xff]
    %v1079 = vld [vmem:[#allocation4 + $0x90] sm:$0xff]
    %v1080 = vld [vmem:[#allocation4 + $0x98] sm:$0xff]
    %v1081 = vld [vmem:[#allocation4 + $0xa0] sm:$0xff]
    %v1082 = vld [vmem:[#allocation4 + $0xa8] sm:$0xff]
    %v1083 = vld [vmem:[#allocation4 + $0xb0] sm:$0xff]
    %v1084 = vld [vmem:[#allocation4 + $0xb8] sm:$0xff]
    %v1085 = vld [vmem:[#allocation4 + $0xc0] sm:$0xff]
    %v1086 = vld [vmem:[#allocation4 + $0xc8] sm:$0xff]
    %v1087 = vld [vmem:[#allocation4 + $0xd0] sm:$0xff]
    %v1088 = vld [vmem:[#allocation4 + $0xd8] sm:$0xff]
    %v1089 = vld [vmem:[#allocation4 + $0xe0] sm:$0xff]
    %v1090 = vld [vmem:[#allocation4 + $0xe8] sm:$0xff]
    %v1091 = vld [vmem:[#allocation4 + $0xf0] sm:$0xff]
    %v1092 = vld [vmem:[#allocation4 + $0xf8] sm:$0xff]
    %v1093 = vld [vmem:[#allocation4 + $0x100] sm:$0xff]
    %v1094 = vld [vmem:[#allocation4 + $0x108] sm:$0xff]
    %v1095 = vld [vmem:[#allocation4 + $0x110] sm:$0xff]
    %v1096 = vld [vmem:[#allocation4 + $0x118] sm:$0xff]
    %v1097 = vld [vmem:[#allocation4 + $0x120] sm:$0xff]
    %v1098 = vld [vmem:[#allocation4 + $0x128] sm:$0xff]
    %v1099 = vld [vmem:[#allocation4 + $0x130] sm:$0xff]
    %v1100 = vld [vmem:[#allocation4 + $0x138] sm:$0xff]
    %v1101 = vld [vmem:[#allocation4 + $0x140] sm:$0xff]
    %v1102 = vld [vmem:[#allocation4 + $0x148] sm:$0xff]
    %v1103 = vld [vmem:[#allocation4 + $0x150] sm:$0xff]
    %v1104 = vld [vmem:[#allocation4 + $0x158] sm:$0xff]
    %v1105 = vld [vmem:[#allocation4 + $0x160] sm:$0xff]
    %v1106 = vld [vmem:[#allocation4 + $0x168] sm:$0xff]
    %v1107 = vld [vmem:[#allocation4 + $0x170] sm:$0xff]
    %v1108 = vld [vmem:[#allocation4 + $0x178] sm:$0xff]
    %v1109 = vld [vmem:[#allocation4 + $0x180] sm:$0xff]
    %v1110 = vld [vmem:[#allocation4 + $0x188] sm:$0xff]
    %v1111 = vld [vmem:[#allocation4 + $0x190] sm:$0xff]
    %v1112 = vld [vmem:[#allocation4 + $0x198] sm:$0xff]
    %v1113 = vld [vmem:[#allocation4 + $0x1a0] sm:$0xff]
    %v1114 = vld [vmem:[#allocation4 + $0x1a8] sm:$0xff]
    %v1115 = vld [vmem:[#allocation4 + $0x1b0] sm:$0xff]
    %v1116 = vld [vmem:[#allocation4 + $0x1b8] sm:$0xff]
    %v1117 = vld [vmem:[#allocation4 + $0x1c0] sm:$0xff]
    %v1118 = vld [vmem:[#allocation4 + $0x1c8] sm:$0xff]
    %v1119 = vld [vmem:[#allocation4 + $0x1d0] sm:$0xff]
    %v1120 = vld [vmem:[#allocation4 + $0x1d8] sm:$0xff]
    %v1121 = vld [vmem:[#allocation4 + $0x1e0] sm:$0xff]
    %v1122 = vld [vmem:[#allocation4 + $0x1e8] sm:$0xff]
    %v1123 = vld [vmem:[#allocation4 + $0x1f0] sm:$0xff]
    %v1124 = vld [vmem:[#allocation4 + $0x1f8] sm:$0xff]
    %1125 = vmatpush.msra.mxu0 %v1121
    %1126 = vmatpush.msra.mxu0 %v1117
    %1127 = vmatpush.msra.mxu0 %v1113
    %1128 = vmatpush.msra.mxu0 %v1109
    %1129 = vmatpush.msra.mxu0 %v1105
    %1130 = vmatpush.msra.mxu0 %v1101
    %1131 = vmatpush.msra.mxu0 %v1097
    %1132 = vmatpush.msra.mxu0 %v1093
    %1133 = vmatpush.msra.mxu0 %v1089
    %1134 = vmatpush.msra.mxu0 %v1085
    %1135 = vmatpush.msra.mxu0 %v1081
    %1136 = vmatpush.msra.mxu0 %v1077
    %1137 = vmatpush.msra.mxu0 %v1073
    %1138 = vmatpush.msra.mxu0 %v1069
    %1139 = vmatpush.msra.mxu0 %v1065
    %1140 = vmatpush.msra.mxu0 %v1061
    %1141 = vmatmul.f32.gmra.mxu0 %v1051
    %v1142 = vpop.f32.mrf.mxu0
    %v1143 = vadd.f32 0.0, %v1142
    %1144 = vdwg.mxu0
    %1145 = vmatpush.msra.mxu0 %v1122
    %1146 = vmatpush.msra.mxu0 %v1118
    %1147 = vmatpush.msra.mxu0 %v1114
    %1148 = vmatpush.msra.mxu0 %v1110
    %1149 = vmatpush.msra.mxu0 %v1106
    %1150 = vmatpush.msra.mxu0 %v1102
    %1151 = vmatpush.msra.mxu0 %v1098
    %1152 = vmatpush.msra.mxu0 %v1094
    %1153 = vmatpush.msra.mxu0 %v1090
    %1154 = vmatpush.msra.mxu0 %v1086
    %1155 = vmatpush.msra.mxu0 %v1082
    %1156 = vmatpush.msra.mxu0 %v1078
    %1157 = vmatpush.msra.mxu0 %v1074
    %1158 = vmatpush.msra.mxu0 %v1070
    %1159 = vmatpush.msra.mxu0 %v1066
    %1160 = vmatpush.msra.mxu0 %v1062
    %1161 = vmatmul.f32.gmra.mxu0 %v1051
    %v1162 = vpop.f32.mrf.mxu0
    %v1163 = vadd.f32 0.0, %v1162
    %1164 = vdwg.mxu0
    %1165 = vmatpush.msra.mxu0 %v1123
    %1166 = vmatpush.msra.mxu0 %v1119
    %1167 = vmatpush.msra.mxu0 %v1115
    %1168 = vmatpush.msra.mxu0 %v1111
    %1169 = vmatpush.msra.mxu0 %v1107
    %1170 = vmatpush.msra.mxu0 %v1103
    %1171 = vmatpush.msra.mxu0 %v1099
    %1172 = vmatpush.msra.mxu0 %v1095
    %1173 = vmatpush.msra.mxu0 %v1091
    %1174 = vmatpush.msra.mxu0 %v1087
    %1175 = vmatpush.msra.mxu0 %v1083
    %1176 = vmatpush.msra.mxu0 %v1079
    %1177 = vmatpush.msra.mxu0 %v1075
    %1178 = vmatpush.msra.mxu0 %v1071
    %1179 = vmatpush.msra.mxu0 %v1067
    %1180 = vmatpush.msra.mxu0 %v1063
    %1181 = vmatmul.f32.gmra.mxu0 %v1051
    %v1182 = vpop.f32.mrf.mxu0
    %v1183 = vadd.f32 0.0, %v1182
    %1184 = vdwg.mxu0
    %1185 = vmatpush.msra.mxu0 %v1124
    %1186 = vmatpush.msra.mxu0 %v1120
    %1187 = vmatpush.msra.mxu0 %v1116
    %1188 = vmatpush.msra.mxu0 %v1112
    %1189 = vmatpush.msra.mxu0 %v1108
    %1190 = vmatpush.msra.mxu0 %v1104
    %1191 = vmatpush.msra.mxu0 %v1100
    %1192 = vmatpush.msra.mxu0 %v1096
    %1193 = vmatpush.msra.mxu0 %v1092
    %1194 = vmatpush.msra.mxu0 %v1088
    %1195 = vmatpush.msra.mxu0 %v1084
    %1196 = vmatpush.msra.mxu0 %v1080
    %1197 = vmatpush.msra.mxu0 %v1076
    %1198 = vmatpush.msra.mxu0 %v1072
    %1199 = vmatpush.msra.mxu0 %v1068
    %1200 = vmatpush.msra.mxu0 %v1064
    %1201 = vmatmul.f32.gmra.mxu0 %v1051
    %v1202 = vpop.f32.mrf.mxu0
    %v1203 = vadd.f32 0.0, %v1202
    %1204 = vdwg.mxu0
    %v1205 = vadd.f32 %v1057, %v1143
    %v1206 = vadd.f32 %v1058, %v1163
    %v1207 = vadd.f32 %v1059, %v1183
    %v1208 = vadd.f32 %v1060, %v1203
    %v1209 = vmul.f32 %v1205, 0.5
    %v1210 = vmul.f32 %v1206, 0.5
    %v1211 = vmul.f32 %v1207, 0.5
    %v1212 = vtanh.pop %v1209
    %v1213 = vtanh.pop %v1210
    %v1214 = vtanh.pop %v1211
    %v1215 = vmul.f32 %v1212, 0.5
    %v1216 = vmul.f32 %v1213, 0.5
    %v1217 = vmul.f32 %v1214, 0.5
    %v1218 = vadd.f32 %v1215, 0.5
    %v1219 = vadd.f32 %v1216, 0.5
    %v1220 = vadd.f32 %v1217, 0.5
    %v1221 = vtanh.pop %v1208
    %v1222 = vmul.f32 %v1219, %v1049
    %v1223 = vmul.f32 %v1218, %v1221
    %v1224 = vadd.f32 %v1222, %v1223
    %v1225 = vtanh.pop %v1224
    %v1226 = vmul.f32 %v1220, %v1225
    %s1227 = scalar_lea.vmem [#allocation3], 32
    %1228 = vst [vmem:[%s1227] sm:$0xff] %v1226
    %s1229 = smul.u32 5, 4
    %s1230 = smul.addr %s1229, 8
    %s1231 = scalar_lea.vmem [#allocation2], %s1230
    %v1232 = vld [vmem:[%s1231] sm:$0xff]
    %v1233 = vld [vmem:[%s1231 + $0x8] sm:$0xff]
    %v1234 = vld [vmem:[%s1231 + $0x10] sm:$0xff]
    %v1235 = vld [vmem:[%s1231 + $0x18] sm:$0xff]
    %v1236 = vld [vmem:[#allocation4] sm:$0xff]
    %v1237 = vld [vmem:[#allocation4 + $0x8] sm:$0xff]
    %v1238 = vld [vmem:[#allocation4 + $0x10] sm:$0xff]
    %v1239 = vld [vmem:[#allocation4 + $0x18] sm:$0xff]
    %v1240 = vld [vmem:[#allocation4 + $0x20] sm:$0xff]
    %v1241 = vld [vmem:[#allocation4 + $0x28] sm:$0xff]
    %v1242 = vld [vmem:[#allocation4 + $0x30] sm:$0xff]
    %v1243 = vld [vmem:[#allocation4 + $0x38] sm:$0xff]
    %v1244 = vld [vmem:[#allocation4 + $0x40] sm:$0xff]
    %v1245 = vld [vmem:[#allocation4 + $0x48] sm:$0xff]
    %v1246 = vld [vmem:[#allocation4 + $0x50] sm:$0xff]
    %v1247 = vld [vmem:[#allocation4 + $0x58] sm:$0xff]
    %v1248 = vld [vmem:[#allocation4 + $0x60] sm:$0xff]
    %v1249 = vld [vmem:[#allocation4 + $0x68] sm:$0xff]
    %v1250 = vld [vmem:[#allocation4 + $0x70] sm:$0xff]
    %v1251 = vld [vmem:[#allocation4 + $0x78] sm:$0xff]
    %v1252 = vld [vmem:[#allocation4 + $0x80] sm:$0xff]
    %v1253 = vld [vmem:[#allocation4 + $0x88] sm:$0xff]
    %v1254 = vld [vmem:[#allocation4 + $0x90] sm:$0xff]
    %v1255 = vld [vmem:[#allocation4 + $0x98] sm:$0xff]
    %v1256 = vld [vmem:[#allocation4 + $0xa0] sm:$0xff]
    %v1257 = vld [vmem:[#allocation4 + $0xa8] sm:$0xff]
    %v1258 = vld [vmem:[#allocation4 + $0xb0] sm:$0xff]
    %v1259 = vld [vmem:[#allocation4 + $0xb8] sm:$0xff]
    %v1260 = vld [vmem:[#allocation4 + $0xc0] sm:$0xff]
    %v1261 = vld [vmem:[#allocation4 + $0xc8] sm:$0xff]
    %v1262 = vld [vmem:[#allocation4 + $0xd0] sm:$0xff]
    %v1263 = vld [vmem:[#allocation4 + $0xd8] sm:$0xff]
    %v1264 = vld [vmem:[#allocation4 + $0xe0] sm:$0xff]
    %v1265 = vld [vmem:[#allocation4 + $0xe8] sm:$0xff]
    %v1266 = vld [vmem:[#allocation4 + $0xf0] sm:$0xff]
    %v1267 = vld [vmem:[#allocation4 + $0xf8] sm:$0xff]
    %v1268 = vld [vmem:[#allocation4 + $0x100] sm:$0xff]
    %v1269 = vld [vmem:[#allocation4 + $0x108] sm:$0xff]
    %v1270 = vld [vmem:[#allocation4 + $0x110] sm:$0xff]
    %v1271 = vld [vmem:[#allocation4 + $0x118] sm:$0xff]
    %v1272 = vld [vmem:[#allocation4 + $0x120] sm:$0xff]
    %v1273 = vld [vmem:[#allocation4 + $0x128] sm:$0xff]
    %v1274 = vld [vmem:[#allocation4 + $0x130] sm:$0xff]
    %v1275 = vld [vmem:[#allocation4 + $0x138] sm:$0xff]
    %v1276 = vld [vmem:[#allocation4 + $0x140] sm:$0xff]
    %v1277 = vld [vmem:[#allocation4 + $0x148] sm:$0xff]
    %v1278 = vld [vmem:[#allocation4 + $0x150] sm:$0xff]
    %v1279 = vld [vmem:[#allocation4 + $0x158] sm:$0xff]
    %v1280 = vld [vmem:[#allocation4 + $0x160] sm:$0xff]
    %v1281 = vld [vmem:[#allocation4 + $0x168] sm:$0xff]
    %v1282 = vld [vmem:[#allocation4 + $0x170] sm:$0xff]
    %v1283 = vld [vmem:[#allocation4 + $0x178] sm:$0xff]
    %v1284 = vld [vmem:[#allocation4 + $0x180] sm:$0xff]
    %v1285 = vld [vmem:[#allocation4 + $0x188] sm:$0xff]
    %v1286 = vld [vmem:[#allocation4 + $0x190] sm:$0xff]
    %v1287 = vld [vmem:[#allocation4 + $0x198] sm:$0xff]
    %v1288 = vld [vmem:[#allocation4 + $0x1a0] sm:$0xff]
    %v1289 = vld [vmem:[#allocation4 + $0x1a8] sm:$0xff]
    %v1290 = vld [vmem:[#allocation4 + $0x1b0] sm:$0xff]
    %v1291 = vld [vmem:[#allocation4 + $0x1b8] sm:$0xff]
    %v1292 = vld [vmem:[#allocation4 + $0x1c0] sm:$0xff]
    %v1293 = vld [vmem:[#allocation4 + $0x1c8] sm:$0xff]
    %v1294 = vld [vmem:[#allocation4 + $0x1d0] sm:$0xff]
    %v1295 = vld [vmem:[#allocation4 + $0x1d8] sm:$0xff]
    %v1296 = vld [vmem:[#allocation4 + $0x1e0] sm:$0xff]
    %v1297 = vld [vmem:[#allocation4 + $0x1e8] sm:$0xff]
    %v1298 = vld [vmem:[#allocation4 + $0x1f0] sm:$0xff]
    %v1299 = vld [vmem:[#allocation4 + $0x1f8] sm:$0xff]
    %1300 = vmatpush.msra.mxu0 %v1296
    %1301 = vmatpush.msra.mxu0 %v1292
    %1302 = vmatpush.msra.mxu0 %v1288
    %1303 = vmatpush.msra.mxu0 %v1284
    %1304 = vmatpush.msra.mxu0 %v1280
    %1305 = vmatpush.msra.mxu0 %v1276
    %1306 = vmatpush.msra.mxu0 %v1272
    %1307 = vmatpush.msra.mxu0 %v1268
    %1308 = vmatpush.msra.mxu0 %v1264
    %1309 = vmatpush.msra.mxu0 %v1260
    %1310 = vmatpush.msra.mxu0 %v1256
    %1311 = vmatpush.msra.mxu0 %v1252
    %1312 = vmatpush.msra.mxu0 %v1248
    %1313 = vmatpush.msra.mxu0 %v1244
    %1314 = vmatpush.msra.mxu0 %v1240
    %1315 = vmatpush.msra.mxu0 %v1236
    %1316 = vmatmul.f32.gmra.mxu0 %v1226
    %v1317 = vpop.f32.mrf.mxu0
    %v1318 = vadd.f32 0.0, %v1317
    %1319 = vdwg.mxu0
    %1320 = vmatpush.msra.mxu0 %v1297
    %1321 = vmatpush.msra.mxu0 %v1293
    %1322 = vmatpush.msra.mxu0 %v1289
    %1323 = vmatpush.msra.mxu0 %v1285
    %1324 = vmatpush.msra.mxu0 %v1281
    %1325 = vmatpush.msra.mxu0 %v1277
    %1326 = vmatpush.msra.mxu0 %v1273
    %1327 = vmatpush.msra.mxu0 %v1269
    %1328 = vmatpush.msra.mxu0 %v1265
    %1329 = vmatpush.msra.mxu0 %v1261
    %1330 = vmatpush.msra.mxu0 %v1257
    %1331 = vmatpush.msra.mxu0 %v1253
    %1332 = vmatpush.msra.mxu0 %v1249
    %1333 = vmatpush.msra.mxu0 %v1245
    %1334 = vmatpush.msra.mxu0 %v1241
    %1335 = vmatpush.msra.mxu0 %v1237
    %1336 = vmatmul.f32.gmra.mxu0 %v1226
    %v1337 = vpop.f32.mrf.mxu0
    %v1338 = vadd.f32 0.0, %v1337
    %1339 = vdwg.mxu0
    %1340 = vmatpush.msra.mxu0 %v1298
    %1341 = vmatpush.msra.mxu0 %v1294
    %1342 = vmatpush.msra.mxu0 %v1290
    %1343 = vmatpush.msra.mxu0 %v1286
    %1344 = vmatpush.msra.mxu0 %v1282
    %1345 = vmatpush.msra.mxu0 %v1278
    %1346 = vmatpush.msra.mxu0 %v1274
    %1347 = vmatpush.msra.mxu0 %v1270
    %1348 = vmatpush.msra.mxu0 %v1266
    %1349 = vmatpush.msra.mxu0 %v1262
    %1350 = vmatpush.msra.mxu0 %v1258
    %1351 = vmatpush.msra.mxu0 %v1254
    %1352 = vmatpush.msra.mxu0 %v1250
    %1353 = vmatpush.msra.mxu0 %v1246
    %1354 = vmatpush.msra.mxu0 %v1242
    %1355 = vmatpush.msra.mxu0 %v1238
    %1356 = vmatmul.f32.gmra.mxu0 %v1226
    %v1357 = vpop.f32.mrf.mxu0
    %v1358 = vadd.f32 0.0, %v1357
    %1359 = vdwg.mxu0
    %1360 = vmatpush.msra.mxu0 %v1299
    %1361 = vmatpush.msra.mxu0 %v1295
    %1362 = vmatpush.msra.mxu0 %v1291
    %1363 = vmatpush.msra.mxu0 %v1287
    %1364 = vmatpush.msra.mxu0 %v1283
    %1365 = vmatpush.msra.mxu0 %v1279
    %1366 = vmatpush.msra.mxu0 %v1275
    %1367 = vmatpush.msra.mxu0 %v1271
    %1368 = vmatpush.msra.mxu0 %v1267
    %1369 = vmatpush.msra.mxu0 %v1263
    %1370 = vmatpush.msra.mxu0 %v1259
    %1371 = vmatpush.msra.mxu0 %v1255
    %1372 = vmatpush.msra.mxu0 %v1251
    %1373 = vmatpush.msra.mxu0 %v1247
    %1374 = vmatpush.msra.mxu0 %v1243
    %1375 = vmatpush.msra.mxu0 %v1239
    %1376 = vmatmul.f32.gmra.mxu0 %v1226
    %v1377 = vpop.f32.mrf.mxu0
    %v1378 = vadd.f32 0.0, %v1377
    %1379 = vdwg.mxu0
    %v1380 = vadd.f32 %v1232, %v1318
    %v1381 = vadd.f32 %v1233, %v1338
    %v1382 = vadd.f32 %v1234, %v1358
    %v1383 = vadd.f32 %v1235, %v1378
    %v1384 = vmul.f32 %v1380, 0.5
    %v1385 = vmul.f32 %v1381, 0.5
    %v1386 = vmul.f32 %v1382, 0.5
    %v1387 = vtanh.pop %v1384
    %v1388 = vtanh.pop %v1385
    %v1389 = vtanh.pop %v1386
    %v1390 = vmul.f32 %v1387, 0.5
    %v1391 = vmul.f32 %v1388, 0.5
    %v1392 = vmul.f32 %v1389, 0.5
    %v1393 = vadd.f32 %v1390, 0.5
    %v1394 = vadd.f32 %v1391, 0.5
    %v1395 = vadd.f32 %v1392, 0.5
    %v1396 = vtanh.pop %v1383
    %v1397 = vmul.f32 %v1394, %v1224
    %v1398 = vmul.f32 %v1393, %v1396
    %v1399 = vadd.f32 %v1397, %v1398
    %v1400 = vtanh.pop %v1399
    %v1401 = vmul.f32 %v1395, %v1400
    %s1402 = scalar_lea.vmem [#allocation3], 40
    %1403 = vst [vmem:[%s1402] sm:$0xff] %v1401
    %s1404 = smul.u32 6, 4
    %s1405 = smul.addr %s1404, 8
    %s1406 = scalar_lea.vmem [#allocation2], %s1405
    %v1407 = vld [vmem:[%s1406] sm:$0xff]
    %v1408 = vld [vmem:[%s1406 + $0x8] sm:$0xff]
    %v1409 = vld [vmem:[%s1406 + $0x10] sm:$0xff]
    %v1410 = vld [vmem:[%s1406 + $0x18] sm:$0xff]
    %v1411 = vld [vmem:[#allocation4] sm:$0xff]
    %v1412 = vld [vmem:[#allocation4 + $0x8] sm:$0xff]
    %v1413 = vld [vmem:[#allocation4 + $0x10] sm:$0xff]
    %v1414 = vld [vmem:[#allocation4 + $0x18] sm:$0xff]
    %v1415 = vld [vmem:[#allocation4 + $0x20] sm:$0xff]
    %v1416 = vld [vmem:[#allocation4 + $0x28] sm:$0xff]
    %v1417 = vld [vmem:[#allocation4 + $0x30] sm:$0xff]
    %v1418 = vld [vmem:[#allocation4 + $0x38] sm:$0xff]
    %v1419 = vld [vmem:[#allocation4 + $0x40] sm:$0xff]
    %v1420 = vld [vmem:[#allocation4 + $0x48] sm:$0xff]
    %v1421 = vld [vmem:[#allocation4 + $0x50] sm:$0xff]
    %v1422 = vld [vmem:[#allocation4 + $0x58] sm:$0xff]
    %v1423 = vld [vmem:[#allocation4 + $0x60] sm:$0xff]
    %v1424 = vld [vmem:[#allocation4 + $0x68] sm:$0xff]
    %v1425 = vld [vmem:[#allocation4 + $0x70] sm:$0xff]
    %v1426 = vld [vmem:[#allocation4 + $0x78] sm:$0xff]
    %v1427 = vld [vmem:[#allocation4 + $0x80] sm:$0xff]
    %v1428 = vld [vmem:[#allocation4 + $0x88] sm:$0xff]
    %v1429 = vld [vmem:[#allocation4 + $0x90] sm:$0xff]
    %v1430 = vld [vmem:[#allocation4 + $0x98] sm:$0xff]
    %v1431 = vld [vmem:[#allocation4 + $0xa0] sm:$0xff]
    %v1432 = vld [vmem:[#allocation4 + $0xa8] sm:$0xff]
    %v1433 = vld [vmem:[#allocation4 + $0xb0] sm:$0xff]
    %v1434 = vld [vmem:[#allocation4 + $0xb8] sm:$0xff]
    %v1435 = vld [vmem:[#allocation4 + $0xc0] sm:$0xff]
    %v1436 = vld [vmem:[#allocation4 + $0xc8] sm:$0xff]
    %v1437 = vld [vmem:[#allocation4 + $0xd0] sm:$0xff]
    %v1438 = vld [vmem:[#allocation4 + $0xd8] sm:$0xff]
    %v1439 = vld [vmem:[#allocation4 + $0xe0] sm:$0xff]
    %v1440 = vld [vmem:[#allocation4 + $0xe8] sm:$0xff]
    %v1441 = vld [vmem:[#allocation4 + $0xf0] sm:$0xff]
    %v1442 = vld [vmem:[#allocation4 + $0xf8] sm:$0xff]
    %v1443 = vld [vmem:[#allocation4 + $0x100] sm:$0xff]
    %v1444 = vld [vmem:[#allocation4 + $0x108] sm:$0xff]
    %v1445 = vld [vmem:[#allocation4 + $0x110] sm:$0xff]
    %v1446 = vld [vmem:[#allocation4 + $0x118] sm:$0xff]
    %v1447 = vld [vmem:[#allocation4 + $0x120] sm:$0xff]
    %v1448 = vld [vmem:[#allocation4 + $0x128] sm:$0xff]
    %v1449 = vld [vmem:[#allocation4 + $0x130] sm:$0xff]
    %v1450 = vld [vmem:[#allocation4 + $0x138] sm:$0xff]
    %v1451 = vld [vmem:[#allocation4 + $0x140] sm:$0xff]
    %v1452 = vld [vmem:[#allocation4 + $0x148] sm:$0xff]
    %v1453 = vld [vmem:[#allocation4 + $0x150] sm:$0xff]
    %v1454 = vld [vmem:[#allocation4 + $0x158] sm:$0xff]
    %v1455 = vld [vmem:[#allocation4 + $0x160] sm:$0xff]
    %v1456 = vld [vmem:[#allocation4 + $0x168] sm:$0xff]
    %v1457 = vld [vmem:[#allocation4 + $0x170] sm:$0xff]
    %v1458 = vld [vmem:[#allocation4 + $0x178] sm:$0xff]
    %v1459 = vld [vmem:[#allocation4 + $0x180] sm:$0xff]
    %v1460 = vld [vmem:[#allocation4 + $0x188] sm:$0xff]
    %v1461 = vld [vmem:[#allocation4 + $0x190] sm:$0xff]
    %v1462 = vld [vmem:[#allocation4 + $0x198] sm:$0xff]
    %v1463 = vld [vmem:[#allocation4 + $0x1a0] sm:$0xff]
    %v1464 = vld [vmem:[#allocation4 + $0x1a8] sm:$0xff]
    %v1465 = vld [vmem:[#allocation4 + $0x1b0] sm:$0xff]
    %v1466 = vld [vmem:[#allocation4 + $0x1b8] sm:$0xff]
    %v1467 = vld [vmem:[#allocation4 + $0x1c0] sm:$0xff]
    %v1468 = vld [vmem:[#allocation4 + $0x1c8] sm:$0xff]
    %v1469 = vld [vmem:[#allocation4 + $0x1d0] sm:$0xff]
    %v1470 = vld [vmem:[#allocation4 + $0x1d8] sm:$0xff]
    %v1471 = vld [vmem:[#allocation4 + $0x1e0] sm:$0xff]
    %v1472 = vld [vmem:[#allocation4 + $0x1e8] sm:$0xff]
    %v1473 = vld [vmem:[#allocation4 + $0x1f0] sm:$0xff]
    %v1474 = vld [vmem:[#allocation4 + $0x1f8] sm:$0xff]
    %1475 = vmatpush.msra.mxu0 %v1471
    %1476 = vmatpush.msra.mxu0 %v1467
    %1477 = vmatpush.msra.mxu0 %v1463
    %1478 = vmatpush.msra.mxu0 %v1459
    %1479 = vmatpush.msra.mxu0 %v1455
    %1480 = vmatpush.msra.mxu0 %v1451
    %1481 = vmatpush.msra.mxu0 %v1447
    %1482 = vmatpush.msra.mxu0 %v1443
    %1483 = vmatpush.msra.mxu0 %v1439
    %1484 = vmatpush.msra.mxu0 %v1435
    %1485 = vmatpush.msra.mxu0 %v1431
    %1486 = vmatpush.msra.mxu0 %v1427
    %1487 = vmatpush.msra.mxu0 %v1423
    %1488 = vmatpush.msra.mxu0 %v1419
    %1489 = vmatpush.msra.mxu0 %v1415
    %1490 = vmatpush.msra.mxu0 %v1411
    %1491 = vmatmul.f32.gmra.mxu0 %v1401
    %v1492 = vpop.f32.mrf.mxu0
    %v1493 = vadd.f32 0.0, %v1492
    %1494 = vdwg.mxu0
    %1495 = vmatpush.msra.mxu0 %v1472
    %1496 = vmatpush.msra.mxu0 %v1468
    %1497 = vmatpush.msra.mxu0 %v1464
    %1498 = vmatpush.msra.mxu0 %v1460
    %1499 = vmatpush.msra.mxu0 %v1456
    %1500 = vmatpush.msra.mxu0 %v1452
    %1501 = vmatpush.msra.mxu0 %v1448
    %1502 = vmatpush.msra.mxu0 %v1444
    %1503 = vmatpush.msra.mxu0 %v1440
    %1504 = vmatpush.msra.mxu0 %v1436
    %1505 = vmatpush.msra.mxu0 %v1432
    %1506 = vmatpush.msra.mxu0 %v1428
    %1507 = vmatpush.msra.mxu0 %v1424
    %1508 = vmatpush.msra.mxu0 %v1420
    %1509 = vmatpush.msra.mxu0 %v1416
    %1510 = vmatpush.msra.mxu0 %v1412
    %1511 = vmatmul.f32.gmra.mxu0 %v1401
    %v1512 = vpop.f32.mrf.mxu0
    %v1513 = vadd.f32 0.0, %v1512
    %1514 = vdwg.mxu0
    %1515 = vmatpush.msra.mxu0 %v1473
    %1516 = vmatpush.msra.mxu0 %v1469
    %1517 = vmatpush.msra.mxu0 %v1465
    %1518 = vmatpush.msra.mxu0 %v1461
    %1519 = vmatpush.msra.mxu0 %v1457
    %1520 = vmatpush.msra.mxu0 %v1453
    %1521 = vmatpush.msra.mxu0 %v1449
    %1522 = vmatpush.msra.mxu0 %v1445
    %1523 = vmatpush.msra.mxu0 %v1441
    %1524 = vmatpush.msra.mxu0 %v1437
    %1525 = vmatpush.msra.mxu0 %v1433
    %1526 = vmatpush.msra.mxu0 %v1429
    %1527 = vmatpush.msra.mxu0 %v1425
    %1528 = vmatpush.msra.mxu0 %v1421
    %1529 = vmatpush.msra.mxu0 %v1417
    %1530 = vmatpush.msra.mxu0 %v1413
    %1531 = vmatmul.f32.gmra.mxu0 %v1401
    %v1532 = vpop.f32.mrf.mxu0
    %v1533 = vadd.f32 0.0, %v1532
    %1534 = vdwg.mxu0
    %1535 = vmatpush.msra.mxu0 %v1474
    %1536 = vmatpush.msra.mxu0 %v1470
    %1537 = vmatpush.msra.mxu0 %v1466
    %1538 = vmatpush.msra.mxu0 %v1462
    %1539 = vmatpush.msra.mxu0 %v1458
    %1540 = vmatpush.msra.mxu0 %v1454
    %1541 = vmatpush.msra.mxu0 %v1450
    %1542 = vmatpush.msra.mxu0 %v1446
    %1543 = vmatpush.msra.mxu0 %v1442
    %1544 = vmatpush.msra.mxu0 %v1438
    %1545 = vmatpush.msra.mxu0 %v1434
    %1546 = vmatpush.msra.mxu0 %v1430
    %1547 = vmatpush.msra.mxu0 %v1426
    %1548 = vmatpush.msra.mxu0 %v1422
    %1549 = vmatpush.msra.mxu0 %v1418
    %1550 = vmatpush.msra.mxu0 %v1414
    %1551 = vmatmul.f32.gmra.mxu0 %v1401
    %v1552 = vpop.f32.mrf.mxu0
    %v1553 = vadd.f32 0.0, %v1552
    %1554 = vdwg.mxu0
    %v1555 = vadd.f32 %v1407, %v1493
    %v1556 = vadd.f32 %v1408, %v1513
    %v1557 = vadd.f32 %v1409, %v1533
    %v1558 = vadd.f32 %v1410, %v1553
    %v1559 = vmul.f32 %v1555, 0.5
    %v1560 = vmul.f32 %v1556, 0.5
    %v1561 = vmul.f32 %v1557, 0.5
    %v1562 = vtanh.pop %v1559
    %v1563 = vtanh.pop %v1560
    %v1564 = vtanh.pop %v1561
    %v1565 = vmul.f32 %v1562, 0.5
    %v1566 = vmul.f32 %v1563, 0.5
    %v1567 = vmul.f32 %v1564, 0.5
    %v1568 = vadd.f32 %v1565, 0.5
    %v1569 = vadd.f32 %v1566, 0.5
    %v1570 = vadd.f32 %v1567, 0.5
    %v1571 = vtanh.pop %v1558
    %v1572 = vmul.f32 %v1569, %v1399
    %v1573 = vmul.f32 %v1568, %v1571
    %v1574 = vadd.f32 %v1572, %v1573
    %v1575 = vtanh.pop %v1574
    %v1576 = vmul.f32 %v1570, %v1575
    %s1577 = scalar_lea.vmem [#allocation3], 48
    %1578 = vst [vmem:[%s1577] sm:$0xff] %v1576
    %s1579 = smul.u32 7, 4
    %s1580 = smul.addr %s1579, 8
    %s1581 = scalar_lea.vmem [#allocation2], %s1580
    %v1582 = vld [vmem:[%s1581] sm:$0xff]
    %v1583 = vld [vmem:[%s1581 + $0x8] sm:$0xff]
    %v1584 = vld [vmem:[%s1581 + $0x10] sm:$0xff]
    %v1585 = vld [vmem:[%s1581 + $0x18] sm:$0xff]
    %v1586 = vld [vmem:[#allocation4] sm:$0xff]
    %v1587 = vld [vmem:[#allocation4 + $0x8] sm:$0xff]
    %v1588 = vld [vmem:[#allocation4 + $0x10] sm:$0xff]
    %v1589 = vld [vmem:[#allocation4 + $0x18] sm:$0xff]
    %v1590 = vld [vmem:[#allocation4 + $0x20] sm:$0xff]
    %v1591 = vld [vmem:[#allocation4 + $0x28] sm:$0xff]
    %v1592 = vld [vmem:[#allocation4 + $0x30] sm:$0xff]
    %v1593 = vld [vmem:[#allocation4 + $0x38] sm:$0xff]
    %v1594 = vld [vmem:[#allocation4 + $0x40] sm:$0xff]
    %v1595 = vld [vmem:[#allocation4 + $0x48] sm:$0xff]
    %v1596 = vld [vmem:[#allocation4 + $0x50] sm:$0xff]
    %v1597 = vld [vmem:[#allocation4 + $0x58] sm:$0xff]
    %v1598 = vld [vmem:[#allocation4 + $0x60] sm:$0xff]
    %v1599 = vld [vmem:[#allocation4 + $0x68] sm:$0xff]
    %v1600 = vld [vmem:[#allocation4 + $0x70] sm:$0xff]
    %v1601 = vld [vmem:[#allocation4 + $0x78] sm:$0xff]
    %v1602 = vld [vmem:[#allocation4 + $0x80] sm:$0xff]
    %v1603 = vld [vmem:[#allocation4 + $0x88] sm:$0xff]
    %v1604 = vld [vmem:[#allocation4 + $0x90] sm:$0xff]
    %v1605 = vld [vmem:[#allocation4 + $0x98] sm:$0xff]
    %v1606 = vld [vmem:[#allocation4 + $0xa0] sm:$0xff]
    %v1607 = vld [vmem:[#allocation4 + $0xa8] sm:$0xff]
    %v1608 = vld [vmem:[#allocation4 + $0xb0] sm:$0xff]
    %v1609 = vld [vmem:[#allocation4 + $0xb8] sm:$0xff]
    %v1610 = vld [vmem:[#allocation4 + $0xc0] sm:$0xff]
    %v1611 = vld [vmem:[#allocation4 + $0xc8] sm:$0xff]
    %v1612 = vld [vmem:[#allocation4 + $0xd0] sm:$0xff]
    %v1613 = vld [vmem:[#allocation4 + $0xd8] sm:$0xff]
    %v1614 = vld [vmem:[#allocation4 + $0xe0] sm:$0xff]
    %v1615 = vld [vmem:[#allocation4 + $0xe8] sm:$0xff]
    %v1616 = vld [vmem:[#allocation4 + $0xf0] sm:$0xff]
    %v1617 = vld [vmem:[#allocation4 + $0xf8] sm:$0xff]
    %v1618 = vld [vmem:[#allocation4 + $0x100] sm:$0xff]
    %v1619 = vld [vmem:[#allocation4 + $0x108] sm:$0xff]
    %v1620 = vld [vmem:[#allocation4 + $0x110] sm:$0xff]
    %v1621 = vld [vmem:[#allocation4 + $0x118] sm:$0xff]
    %v1622 = vld [vmem:[#allocation4 + $0x120] sm:$0xff]
    %v1623 = vld [vmem:[#allocation4 + $0x128] sm:$0xff]
    %v1624 = vld [vmem:[#allocation4 + $0x130] sm:$0xff]
    %v1625 = vld [vmem:[#allocation4 + $0x138] sm:$0xff]
    %v1626 = vld [vmem:[#allocation4 + $0x140] sm:$0xff]
    %v1627 = vld [vmem:[#allocation4 + $0x148] sm:$0xff]
    %v1628 = vld [vmem:[#allocation4 + $0x150] sm:$0xff]
    %v1629 = vld [vmem:[#allocation4 + $0x158] sm:$0xff]
    %v1630 = vld [vmem:[#allocation4 + $0x160] sm:$0xff]
    %v1631 = vld [vmem:[#allocation4 + $0x168] sm:$0xff]
    %v1632 = vld [vmem:[#allocation4 + $0x170] sm:$0xff]
    %v1633 = vld [vmem:[#allocation4 + $0x178] sm:$0xff]
    %v1634 = vld [vmem:[#allocation4 + $0x180] sm:$0xff]
    %v1635 = vld [vmem:[#allocation4 + $0x188] sm:$0xff]
    %v1636 = vld [vmem:[#allocation4 + $0x190] sm:$0xff]
    %v1637 = vld [vmem:[#allocation4 + $0x198] sm:$0xff]
    %v1638 = vld [vmem:[#allocation4 + $0x1a0] sm:$0xff]
    %v1639 = vld [vmem:[#allocation4 + $0x1a8] sm:$0xff]
    %v1640 = vld [vmem:[#allocation4 + $0x1b0] sm:$0xff]
    %v1641 = vld [vmem:[#allocation4 + $0x1b8] sm:$0xff]
    %v1642 = vld [vmem:[#allocation4 + $0x1c0] sm:$0xff]
    %v1643 = vld [vmem:[#allocation4 + $0x1c8] sm:$0xff]
    %v1644 = vld [vmem:[#allocation4 + $0x1d0] sm:$0xff]
    %v1645 = vld [vmem:[#allocation4 + $0x1d8] sm:$0xff]
    %v1646 = vld [vmem:[#allocation4 + $0x1e0] sm:$0xff]
    %v1647 = vld [vmem:[#allocation4 + $0x1e8] sm:$0xff]
    %v1648 = vld [vmem:[#allocation4 + $0x1f0] sm:$0xff]
    %v1649 = vld [vmem:[#allocation4 + $0x1f8] sm:$0xff]
    %1650 = vmatpush.msra.mxu0 %v1646
    %1651 = vmatpush.msra.mxu0 %v1642
    %1652 = vmatpush.msra.mxu0 %v1638
    %1653 = vmatpush.msra.mxu0 %v1634
    %1654 = vmatpush.msra.mxu0 %v1630
    %1655 = vmatpush.msra.mxu0 %v1626
    %1656 = vmatpush.msra.mxu0 %v1622
    %1657 = vmatpush.msra.mxu0 %v1618
    %1658 = vmatpush.msra.mxu0 %v1614
    %1659 = vmatpush.msra.mxu0 %v1610
    %1660 = vmatpush.msra.mxu0 %v1606
    %1661 = vmatpush.msra.mxu0 %v1602
    %1662 = vmatpush.msra.mxu0 %v1598
    %1663 = vmatpush.msra.mxu0 %v1594
    %1664 = vmatpush.msra.mxu0 %v1590
    %1665 = vmatpush.msra.mxu0 %v1586
    %1666 = vmatmul.f32.gmra.mxu0 %v1576
    %v1667 = vpop.f32.mrf.mxu0
    %v1668 = vadd.f32 0.0, %v1667
    %1669 = vdwg.mxu0
    %1670 = vmatpush.msra.mxu0 %v1647
    %1671 = vmatpush.msra.mxu0 %v1643
    %1672 = vmatpush.msra.mxu0 %v1639
    %1673 = vmatpush.msra.mxu0 %v1635
    %1674 = vmatpush.msra.mxu0 %v1631
    %1675 = vmatpush.msra.mxu0 %v1627
    %1676 = vmatpush.msra.mxu0 %v1623
    %1677 = vmatpush.msra.mxu0 %v1619
    %1678 = vmatpush.msra.mxu0 %v1615
    %1679 = vmatpush.msra.mxu0 %v1611
    %1680 = vmatpush.msra.mxu0 %v1607
    %1681 = vmatpush.msra.mxu0 %v1603
    %1682 = vmatpush.msra.mxu0 %v1599
    %1683 = vmatpush.msra.mxu0 %v1595
    %1684 = vmatpush.msra.mxu0 %v1591
    %1685 = vmatpush.msra.mxu0 %v1587
    %1686 = vmatmul.f32.gmra.mxu0 %v1576
    %v1687 = vpop.f32.mrf.mxu0
    %v1688 = vadd.f32 0.0, %v1687
    %1689 = vdwg.mxu0
    %1690 = vmatpush.msra.mxu0 %v1648
    %1691 = vmatpush.msra.mxu0 %v1644
    %1692 = vmatpush.msra.mxu0 %v1640
    %1693 = vmatpush.msra.mxu0 %v1636
    %1694 = vmatpush.msra.mxu0 %v1632
    %1695 = vmatpush.msra.mxu0 %v1628
    %1696 = vmatpush.msra.mxu0 %v1624
    %1697 = vmatpush.msra.mxu0 %v1620
    %1698 = vmatpush.msra.mxu0 %v1616
    %1699 = vmatpush.msra.mxu0 %v1612
    %1700 = vmatpush.msra.mxu0 %v1608
    %1701 = vmatpush.msra.mxu0 %v1604
    %1702 = vmatpush.msra.mxu0 %v1600
    %1703 = vmatpush.msra.mxu0 %v1596
    %1704 = vmatpush.msra.mxu0 %v1592
    %1705 = vmatpush.msra.mxu0 %v1588
    %1706 = vmatmul.f32.gmra.mxu0 %v1576
    %v1707 = vpop.f32.mrf.mxu0
    %v1708 = vadd.f32 0.0, %v1707
    %1709 = vdwg.mxu0
    %1710 = vmatpush.msra.mxu0 %v1649
    %1711 = vmatpush.msra.mxu0 %v1645
    %1712 = vmatpush.msra.mxu0 %v1641
    %1713 = vmatpush.msra.mxu0 %v1637
    %1714 = vmatpush.msra.mxu0 %v1633
    %1715 = vmatpush.msra.mxu0 %v1629
    %1716 = vmatpush.msra.mxu0 %v1625
    %1717 = vmatpush.msra.mxu0 %v1621
    %1718 = vmatpush.msra.mxu0 %v1617
    %1719 = vmatpush.msra.mxu0 %v1613
    %1720 = vmatpush.msra.mxu0 %v1609
    %1721 = vmatpush.msra.mxu0 %v1605
    %1722 = vmatpush.msra.mxu0 %v1601
    %1723 = vmatpush.msra.mxu0 %v1597
    %1724 = vmatpush.msra.mxu0 %v1593
    %1725 = vmatpush.msra.mxu0 %v1589
    %1726 = vmatmul.f32.gmra.mxu0 %v1576
    %v1727 = vpop.f32.mrf.mxu0
    %v1728 = vadd.f32 0.0, %v1727
    %1729 = vdwg.mxu0
    %v1730 = vadd.f32 %v1582, %v1668
    %v1731 = vadd.f32 %v1583, %v1688
    %v1732 = vadd.f32 %v1584, %v1708
    %v1733 = vadd.f32 %v1585, %v1728
    %v1734 = vmul.f32 %v1730, 0.5
    %v1735 = vmul.f32 %v1731, 0.5
    %v1736 = vmul.f32 %v1732, 0.5
    %v1737 = vtanh.pop %v1734
    %v1738 = vtanh.pop %v1735
    %v1739 = vtanh.pop %v1736
    %v1740 = vmul.f32 %v1737, 0.5
    %v1741 = vmul.f32 %v1738, 0.5
    %v1742 = vmul.f32 %v1739, 0.5
    %v1743 = vadd.f32 %v1740, 0.5
    %v1744 = vadd.f32 %v1741, 0.5
    %v1745 = vadd.f32 %v1742, 0.5
    %v1746 = vtanh.pop %v1733
    %v1747 = vmul.f32 %v1744, %v1574
    %v1748 = vmul.f32 %v1743, %v1746
    %v1749 = vadd.f32 %v1747, %v1748
    %v1750 = vtanh.pop %v1749
    %v1751 = vmul.f32 %v1745, %v1750
    %s1752 = scalar_lea.vmem [#allocation3], 56
    %1753 = vst [vmem:[%s1752] sm:$0xff] %v1751
    %v1754 = vld [vmem:[#allocation3] sm:$0xff]
    %v1755 = vld [vmem:[#allocation3 + $0x8] sm:$0xff]
    %v1756 = vld [vmem:[#allocation3 + $0x10] sm:$0xff]
    %v1757 = vld [vmem:[#allocation3 + $0x18] sm:$0xff]
    %v1758 = vld [vmem:[#allocation3 + $0x20] sm:$0xff]
    %v1759 = vld [vmem:[#allocation3 + $0x28] sm:$0xff]
    %v1760 = vld [vmem:[#allocation3 + $0x30] sm:$0xff]
    %v1761 = vld [vmem:[#allocation3 + $0x38] sm:$0xff]
    %v1762 = vld [vmem:[#allocation7] sm:$0xff]
    %v1763 = vld [vmem:[#allocation7 + $0x8] sm:$0xff]
    %v1764 = vld [vmem:[#allocation7 + $0x10] sm:$0xff]
    %v1765 = vld [vmem:[#allocation7 + $0x18] sm:$0xff]
    %v1766 = vld [vmem:[#allocation7 + $0x20] sm:$0xff]
    %v1767 = vld [vmem:[#allocation7 + $0x28] sm:$0xff]
    %v1768 = vld [vmem:[#allocation7 + $0x30] sm:$0xff]
    %v1769 = vld [vmem:[#allocation7 + $0x38] sm:$0xff]
    %v1770 = vld [vmem:[#allocation7 + $0x40] sm:$0xff]
    %v1771 = vld [vmem:[#allocation7 + $0x48] sm:$0xff]
    %v1772 = vld [vmem:[#allocation7 + $0x50] sm:$0xff]
    %v1773 = vld [vmem:[#allocation7 + $0x58] sm:$0xff]
    %v1774 = vld [vmem:[#allocation7 + $0x60] sm:$0xff]
    %v1775 = vld [vmem:[#allocation7 + $0x68] sm:$0xff]
    %v1776 = vld [vmem:[#allocation7 + $0x70] sm:$0xff]
    %v1777 = vld [vmem:[#allocation7 + $0x78] sm:$0xff]
    %v1778 = vld [vmem:[#allocation7 + $0x80] sm:$0xff]
    %v1779 = vld [vmem:[#allocation7 + $0x88] sm:$0xff]
    %v1780 = vld [vmem:[#allocation7 + $0x90] sm:$0xff]
    %v1781 = vld [vmem:[#allocation7 + $0x98] sm:$0xff]
    %v1782 = vld [vmem:[#allocation7 + $0xa0] sm:$0xff]
    %v1783 = vld [vmem:[#allocation7 + $0xa8] sm:$0xff]
    %v1784 = vld [vmem:[#allocation7 + $0xb0] sm:$0xff]
    %v1785 = vld [vmem:[#allocation7 + $0xb8] sm:$0xff]
    %v1786 = vld [vmem:[#allocation7 + $0xc0] sm:$0xff]
    %v1787 = vld [vmem:[#allocation7 + $0xc8] sm:$0xff]
    %v1788 = vld [vmem:[#allocation7 + $0xd0] sm:$0xff]
    %v1789 = vld [vmem:[#allocation7 + $0xd8] sm:$0xff]
    %v1790 = vld [vmem:[#allocation7 + $0xe0] sm:$0xff]
    %v1791 = vld [vmem:[#allocation7 + $0xe8] sm:$0xff]
    %v1792 = vld [vmem:[#allocation7 + $0xf0] sm:$0xff]
    %v1793 = vld [vmem:[#allocation7 + $0xf8] sm:$0xff]
    %v1794 = vld [vmem:[#allocation7 + $0x100] sm:$0xff]
    %v1795 = vld [vmem:[#allocation7 + $0x108] sm:$0xff]
    %v1796 = vld [vmem:[#allocation7 + $0x110] sm:$0xff]
    %v1797 = vld [vmem:[#allocation7 + $0x118] sm:$0xff]
    %v1798 = vld [vmem:[#allocation7 + $0x120] sm:$0xff]
    %v1799 = vld [vmem:[#allocation7 + $0x128] sm:$0xff]
    %v1800 = vld [vmem:[#allocation7 + $0x130] sm:$0xff]
    %v1801 = vld [vmem:[#allocation7 + $0x138] sm:$0xff]
    %v1802 = vld [vmem:[#allocation7 + $0x140] sm:$0xff]
    %v1803 = vld [vmem:[#allocation7 + $0x148] sm:$0xff]
    %v1804 = vld [vmem:[#allocation7 + $0x150] sm:$0xff]
    %v1805 = vld [vmem:[#allocation7 + $0x158] sm:$0xff]
    %v1806 = vld [vmem:[#allocation7 + $0x160] sm:$0xff]
    %v1807 = vld [vmem:[#allocation7 + $0x168] sm:$0xff]
    %v1808 = vld [vmem:[#allocation7 + $0x170] sm:$0xff]
    %v1809 = vld [vmem:[#allocation7 + $0x178] sm:$0xff]
    %v1810 = vld [vmem:[#allocation7 + $0x180] sm:$0xff]
    %v1811 = vld [vmem:[#allocation7 + $0x188] sm:$0xff]
    %v1812 = vld [vmem:[#allocation7 + $0x190] sm:$0xff]
    %v1813 = vld [vmem:[#allocation7 + $0x198] sm:$0xff]
    %v1814 = vld [vmem:[#allocation7 + $0x1a0] sm:$0xff]
    %v1815 = vld [vmem:[#allocation7 + $0x1a8] sm:$0xff]
    %v1816 = vld [vmem:[#allocation7 + $0x1b0] sm:$0xff]
    %v1817 = vld [vmem:[#allocation7 + $0x1b8] sm:$0xff]
    %v1818 = vld [vmem:[#allocation7 + $0x1c0] sm:$0xff]
    %v1819 = vld [vmem:[#allocation7 + $0x1c8] sm:$0xff]
    %v1820 = vld [vmem:[#allocation7 + $0x1d0] sm:$0xff]
    %v1821 = vld [vmem:[#allocation7 + $0x1d8] sm:$0xff]
    %v1822 = vld [vmem:[#allocation7 + $0x1e0] sm:$0xff]
    %v1823 = vld [vmem:[#allocation7 + $0x1e8] sm:$0xff]
    %v1824 = vld [vmem:[#allocation7 + $0x1f0] sm:$0xff]
    %v1825 = vld [vmem:[#allocation7 + $0x1f8] sm:$0xff]
    %v1826 = vld [vmem:[%s6] sm:$0xf]
    %v1828 = vperm.slane %v1826, 0
    %v1829 = vperm.slane %v1826, 1
    %v1830 = vperm.slane %v1826, 2
    %v1831 = vperm.slane %v1826, 3
    %1836 = vmatpush.msra.mxu0 %v1822
    %1837 = vmatpush.msra.mxu0 %v1818
    %1838 = vmatpush.msra.mxu0 %v1814
    %1839 = vmatpush.msra.mxu0 %v1810
    %1840 = vmatpush.msra.mxu0 %v1806
    %1841 = vmatpush.msra.mxu0 %v1802
    %1842 = vmatpush.msra.mxu0 %v1798
    %1843 = vmatpush.msra.mxu0 %v1794
    %1844 = vmatpush.msra.mxu0 %v1790
    %1845 = vmatpush.msra.mxu0 %v1786
    %1846 = vmatpush.msra.mxu0 %v1782
    %1847 = vmatpush.msra.mxu0 %v1778
    %1848 = vmatpush.msra.mxu0 %v1774
    %1849 = vmatpush.msra.mxu0 %v1770
    %1850 = vmatpush.msra.mxu0 %v1766
    %1851 = vmatpush.msra.mxu0 %v1762
    %1852 = vmatmul.f32.gmra.mxu0 %v1754
    %v1853 = vpop.f32.mrf.mxu0
    %v1854 = vadd.f32 %v1828, %v1853
    %1855 = vmatmul.f32.gmra.mxu0 %v1755
    %v1856 = vpop.f32.mrf.mxu0
    %v1857 = vadd.f32 %v1828, %v1856
    %1858 = vmatmul.f32.gmra.mxu0 %v1756
    %v1859 = vpop.f32.mrf.mxu0
    %v1860 = vadd.f32 %v1828, %v1859
    %1861 = vmatmul.f32.gmra.mxu0 %v1757
    %v1862 = vpop.f32.mrf.mxu0
    %v1863 = vadd.f32 %v1828, %v1862
    %1864 = vmatmul.f32.gmra.mxu0 %v1758
    %v1865 = vpop.f32.mrf.mxu0
    %v1866 = vadd.f32 %v1828, %v1865
    %1867 = vmatmul.f32.gmra.mxu0 %v1759
    %v1868 = vpop.f32.mrf.mxu0
    %v1869 = vadd.f32 %v1828, %v1868
    %1870 = vmatmul.f32.gmra.mxu0 %v1760
    %v1871 = vpop.f32.mrf.mxu0
    %v1872 = vadd.f32 %v1828, %v1871
    %1873 = vmatmul.f32.gmra.mxu0 %v1761
    %v1874 = vpop.f32.mrf.mxu0
    %v1875 = vadd.f32 %v1828, %v1874
    %1876 = vdwg.mxu0
    %1877 = vmatpush.msra.mxu0 %v1823
    %1878 = vmatpush.msra.mxu0 %v1819
    %1879 = vmatpush.msra.mxu0 %v1815
    %1880 = vmatpush.msra.mxu0 %v1811
    %1881 = vmatpush.msra.mxu0 %v1807
    %1882 = vmatpush.msra.mxu0 %v1803
    %1883 = vmatpush.msra.mxu0 %v1799
    %1884 = vmatpush.msra.mxu0 %v1795
    %1885 = vmatpush.msra.mxu0 %v1791
    %1886 = vmatpush.msra.mxu0 %v1787
    %1887 = vmatpush.msra.mxu0 %v1783
    %1888 = vmatpush.msra.mxu0 %v1779
    %1889 = vmatpush.msra.mxu0 %v1775
    %1890 = vmatpush.msra.mxu0 %v1771
    %1891 = vmatpush.msra.mxu0 %v1767
    %1892 = vmatpush.msra.mxu0 %v1763
    %1893 = vmatmul.f32.gmra.mxu0 %v1754
    %v1894 = vpop.f32.mrf.mxu0
    %v1895 = vadd.f32 %v1829, %v1894
    %1896 = vmatmul.f32.gmra.mxu0 %v1755
    %v1897 = vpop.f32.mrf.mxu0
    %v1898 = vadd.f32 %v1829, %v1897
    %1899 = vmatmul.f32.gmra.mxu0 %v1756
    %v1900 = vpop.f32.mrf.mxu0
    %v1901 = vadd.f32 %v1829, %v1900
    %1902 = vmatmul.f32.gmra.mxu0 %v1757
    %v1903 = vpop.f32.mrf.mxu0
    %v1904 = vadd.f32 %v1829, %v1903
    %1905 = vmatmul.f32.gmra.mxu0 %v1758
    %v1906 = vpop.f32.mrf.mxu0
    %v1907 = vadd.f32 %v1829, %v1906
    %1908 = vmatmul.f32.gmra.mxu0 %v1759
    %v1909 = vpop.f32.mrf.mxu0
    %v1910 = vadd.f32 %v1829, %v1909
    %1911 = vmatmul.f32.gmra.mxu0 %v1760
    %v1912 = vpop.f32.mrf.mxu0
    %v1913 = vadd.f32 %v1829, %v1912
    %1914 = vmatmul.f32.gmra.mxu0 %v1761
    %v1915 = vpop.f32.mrf.mxu0
    %v1916 = vadd.f32 %v1829, %v1915
    %1917 = vdwg.mxu0
    %1918 = vmatpush.msra.mxu0 %v1824
    %1919 = vmatpush.msra.mxu0 %v1820
    %1920 = vmatpush.msra.mxu0 %v1816
    %1921 = vmatpush.msra.mxu0 %v1812
    %1922 = vmatpush.msra.mxu0 %v1808
    %1923 = vmatpush.msra.mxu0 %v1804
    %1924 = vmatpush.msra.mxu0 %v1800
    %1925 = vmatpush.msra.mxu0 %v1796
    %1926 = vmatpush.msra.mxu0 %v1792
    %1927 = vmatpush.msra.mxu0 %v1788
    %1928 = vmatpush.msra.mxu0 %v1784
    %1929 = vmatpush.msra.mxu0 %v1780
    %1930 = vmatpush.msra.mxu0 %v1776
    %1931 = vmatpush.msra.mxu0 %v1772
    %1932 = vmatpush.msra.mxu0 %v1768
    %1933 = vmatpush.msra.mxu0 %v1764
    %1934 = vmatmul.f32.gmra.mxu0 %v1754
    %v1935 = vpop.f32.mrf.mxu0
    %v1936 = vadd.f32 %v1830, %v1935
    %1937 = vmatmul.f32.gmra.mxu0 %v1755
    %v1938 = vpop.f32.mrf.mxu0
    %v1939 = vadd.f32 %v1830, %v1938
    %1940 = vmatmul.f32.gmra.mxu0 %v1756
    %v1941 = vpop.f32.mrf.mxu0
    %v1942 = vadd.f32 %v1830, %v1941
    %1943 = vmatmul.f32.gmra.mxu0 %v1757
    %v1944 = vpop.f32.mrf.mxu0
    %v1945 = vadd.f32 %v1830, %v1944
    %1946 = vmatmul.f32.gmra.mxu0 %v1758
    %v1947 = vpop.f32.mrf.mxu0
    %v1948 = vadd.f32 %v1830, %v1947
    %1949 = vmatmul.f32.gmra.mxu0 %v1759
    %v1950 = vpop.f32.mrf.mxu0
    %v1951 = vadd.f32 %v1830, %v1950
    %1952 = vmatmul.f32.gmra.mxu0 %v1760
    %v1953 = vpop.f32.mrf.mxu0
    %v1954 = vadd.f32 %v1830, %v1953
    %1955 = vmatmul.f32.gmra.mxu0 %v1761
    %v1956 = vpop.f32.mrf.mxu0
    %v1957 = vadd.f32 %v1830, %v1956
    %1958 = vdwg.mxu0
    %1959 = vmatpush.msra.mxu0 %v1825
    %1960 = vmatpush.msra.mxu0 %v1821
    %1961 = vmatpush.msra.mxu0 %v1817
    %1962 = vmatpush.msra.mxu0 %v1813
    %1963 = vmatpush.msra.mxu0 %v1809
    %1964 = vmatpush.msra.mxu0 %v1805
    %1965 = vmatpush.msra.mxu0 %v1801
    %1966 = vmatpush.msra.mxu0 %v1797
    %1967 = vmatpush.msra.mxu0 %v1793
    %1968 = vmatpush.msra.mxu0 %v1789
    %1969 = vmatpush.msra.mxu0 %v1785
    %1970 = vmatpush.msra.mxu0 %v1781
    %1971 = vmatpush.msra.mxu0 %v1777
    %1972 = vmatpush.msra.mxu0 %v1773
    %1973 = vmatpush.msra.mxu0 %v1769
    %1974 = vmatpush.msra.mxu0 %v1765
    %1975 = vmatmul.f32.gmra.mxu0 %v1754
    %v1976 = vpop.f32.mrf.mxu0
    %v1977 = vadd.f32 %v1831, %v1976
    %1978 = vmatmul.f32.gmra.mxu0 %v1755
    %v1979 = vpop.f32.mrf.mxu0
    %v1980 = vadd.f32 %v1831, %v1979
    %1981 = vmatmul.f32.gmra.mxu0 %v1756
    %v1982 = vpop.f32.mrf.mxu0
    %v1983 = vadd.f32 %v1831, %v1982
    %1984 = vmatmul.f32.gmra.mxu0 %v1757
    %v1985 = vpop.f32.mrf.mxu0
    %v1986 = vadd.f32 %v1831, %v1985
    %1987 = vmatmul.f32.gmra.mxu0 %v1758
    %v1988 = vpop.f32.mrf.mxu0
    %v1989 = vadd.f32 %v1831, %v1988
    %1990 = vmatmul.f32.gmra.mxu0 %v1759
    %v1991 = vpop.f32.mrf.mxu0
    %v1992 = vadd.f32 %v1831, %v1991
    %1993 = vmatmul.f32.gmra.mxu0 %v1760
    %v1994 = vpop.f32.mrf.mxu0
    %v1995 = vadd.f32 %v1831, %v1994
    %1996 = vmatmul.f32.gmra.mxu0 %v1761
    %v1997 = vpop.f32.mrf.mxu0
    %v1998 = vadd.f32 %v1831, %v1997
    %1999 = vdwg.mxu0
    %2000 = vst [vmem:[#allocation2] sm:$0xff] %v1854
    %2001 = vst [vmem:[#allocation2 + $0x8] sm:$0xff] %v1895
    %2002 = vst [vmem:[#allocation2 + $0x10] sm:$0xff] %v1936
    %2003 = vst [vmem:[#allocation2 + $0x18] sm:$0xff] %v1977
    %2004 = vst [vmem:[#allocation2 + $0x20] sm:$0xff] %v1857
    %2005 = vst [vmem:[#allocation2 + $0x28] sm:$0xff] %v1898
    %2006 = vst [vmem:[#allocation2 + $0x30] sm:$0xff] %v1939
    %2007 = vst [vmem:[#allocation2 + $0x38] sm:$0xff] %v1980
    %2008 = vst [vmem:[#allocation2 + $0x40] sm:$0xff] %v1860
    %2009 = vst [vmem:[#allocation2 + $0x48] sm:$0xff] %v1901
    %2010 = vst [vmem:[#allocation2 + $0x50] sm:$0xff] %v1942
    %2011 = vst [vmem:[#allocation2 + $0x58] sm:$0xff] %v1983
    %2012 = vst [vmem:[#allocation2 + $0x60] sm:$0xff] %v1863
    %2013 = vst [vmem:[#allocation2 + $0x68] sm:$0xff] %v1904
    %2014 = vst [vmem:[#allocation2 + $0x70] sm:$0xff] %v1945
    %2015 = vst [vmem:[#allocation2 + $0x78] sm:$0xff] %v1986
    %2016 = vst [vmem:[#allocation2 + $0x80] sm:$0xff] %v1866
    %2017 = vst [vmem:[#allocation2 + $0x88] sm:$0xff] %v1907
    %2018 = vst [vmem:[#allocation2 + $0x90] sm:$0xff] %v1948
    %2019 = vst [vmem:[#allocation2 + $0x98] sm:$0xff] %v1989
    %2020 = vst [vmem:[#allocation2 + $0xa0] sm:$0xff] %v1869
    %2021 = vst [vmem:[#allocation2 + $0xa8] sm:$0xff] %v1910
    %2022 = vst [vmem:[#allocation2 + $0xb0] sm:$0xff] %v1951
    %2023 = vst [vmem:[#allocation2 + $0xb8] sm:$0xff] %v1992
    %2024 = vst [vmem:[#allocation2 + $0xc0] sm:$0xff] %v1872
    %2025 = vst [vmem:[#allocation2 + $0xc8] sm:$0xff] %v1913
    %2026 = vst [vmem:[#allocation2 + $0xd0] sm:$0xff] %v1954
    %2027 = vst [vmem:[#allocation2 + $0xd8] sm:$0xff] %v1995
    %2028 = vst [vmem:[#allocation2 + $0xe0] sm:$0xff] %v1875
    %2029 = vst [vmem:[#allocation2 + $0xe8] sm:$0xff] %v1916
    %2030 = vst [vmem:[#allocation2 + $0xf0] sm:$0xff] %v1957
    %2031 = vst [vmem:[#allocation2 + $0xf8] sm:$0xff] %v1998
    %v2032 = vld [vmem:[%s357] sm:$0xff]
    %v2033 = vld [vmem:[%s357 + $0x8] sm:$0xff]
    %v2034 = vld [vmem:[%s357 + $0x10] sm:$0xff]
    %v2035 = vld [vmem:[%s357 + $0x18] sm:$0xff]
    %v2036 = vld [vmem:[#allocation9] sm:$0xff]
    %v2037 = vld [vmem:[#allocation9 + $0x8] sm:$0xff]
    %v2038 = vld [vmem:[#allocation9 + $0x10] sm:$0xff]
    %v2039 = vld [vmem:[#allocation9 + $0x18] sm:$0xff]
    %v2040 = vld [vmem:[#allocation9 + $0x20] sm:$0xff]
    %v2041 = vld [vmem:[#allocation9 + $0x28] sm:$0xff]
    %v2042 = vld [vmem:[#allocation9 + $0x30] sm:$0xff]
    %v2043 = vld [vmem:[#allocation9 + $0x38] sm:$0xff]
    %v2044 = vld [vmem:[#allocation9 + $0x40] sm:$0xff]
    %v2045 = vld [vmem:[#allocation9 + $0x48] sm:$0xff]
    %v2046 = vld [vmem:[#allocation9 + $0x50] sm:$0xff]
    %v2047 = vld [vmem:[#allocation9 + $0x58] sm:$0xff]
    %v2048 = vld [vmem:[#allocation9 + $0x60] sm:$0xff]
    %v2049 = vld [vmem:[#allocation9 + $0x68] sm:$0xff]
    %v2050 = vld [vmem:[#allocation9 + $0x70] sm:$0xff]
    %v2051 = vld [vmem:[#allocation9 + $0x78] sm:$0xff]
    %v2052 = vld [vmem:[#allocation9 + $0x80] sm:$0xff]
    %v2053 = vld [vmem:[#allocation9 + $0x88] sm:$0xff]
    %v2054 = vld [vmem:[#allocation9 + $0x90] sm:$0xff]
    %v2055 = vld [vmem:[#allocation9 + $0x98] sm:$0xff]
    %v2056 = vld [vmem:[#allocation9 + $0xa0] sm:$0xff]
    %v2057 = vld [vmem:[#allocation9 + $0xa8] sm:$0xff]
    %v2058 = vld [vmem:[#allocation9 + $0xb0] sm:$0xff]
    %v2059 = vld [vmem:[#allocation9 + $0xb8] sm:$0xff]
    %v2060 = vld [vmem:[#allocation9 + $0xc0] sm:$0xff]
    %v2061 = vld [vmem:[#allocation9 + $0xc8] sm:$0xff]
    %v2062 = vld [vmem:[#allocation9 + $0xd0] sm:$0xff]
    %v2063 = vld [vmem:[#allocation9 + $0xd8] sm:$0xff]
    %v2064 = vld [vmem:[#allocation9 + $0xe0] sm:$0xff]
    %v2065 = vld [vmem:[#allocation9 + $0xe8] sm:$0xff]
    %v2066 = vld [vmem:[#allocation9 + $0xf0] sm:$0xff]
    %v2067 = vld [vmem:[#allocation9 + $0xf8] sm:$0xff]
    %v2068 = vld [vmem:[#allocation9 + $0x100] sm:$0xff]
    %v2069 = vld [vmem:[#allocation9 + $0x108] sm:$0xff]
    %v2070 = vld [vmem:[#allocation9 + $0x110] sm:$0xff]
    %v2071 = vld [vmem:[#allocation9 + $0x118] sm:$0xff]
    %v2072 = vld [vmem:[#allocation9 + $0x120] sm:$0xff]
    %v2073 = vld [vmem:[#allocation9 + $0x128] sm:$0xff]
    %v2074 = vld [vmem:[#allocation9 + $0x130] sm:$0xff]
    %v2075 = vld [vmem:[#allocation9 + $0x138] sm:$0xff]
    %v2076 = vld [vmem:[#allocation9 + $0x140] sm:$0xff]
    %v2077 = vld [vmem:[#allocation9 + $0x148] sm:$0xff]
    %v2078 = vld [vmem:[#allocation9 + $0x150] sm:$0xff]
    %v2079 = vld [vmem:[#allocation9 + $0x158] sm:$0xff]
    %v2080 = vld [vmem:[#allocation9 + $0x160] sm:$0xff]
    %v2081 = vld [vmem:[#allocation9 + $0x168] sm:$0xff]
    %v2082 = vld [vmem:[#allocation9 + $0x170] sm:$0xff]
    %v2083 = vld [vmem:[#allocation9 + $0x178] sm:$0xff]
    %v2084 = vld [vmem:[#allocation9 + $0x180] sm:$0xff]
    %v2085 = vld [vmem:[#allocation9 + $0x188] sm:$0xff]
    %v2086 = vld [vmem:[#allocation9 + $0x190] sm:$0xff]
    %v2087 = vld [vmem:[#allocation9 + $0x198] sm:$0xff]
    %v2088 = vld [vmem:[#allocation9 + $0x1a0] sm:$0xff]
    %v2089 = vld [vmem:[#allocation9 + $0x1a8] sm:$0xff]
    %v2090 = vld [vmem:[#allocation9 + $0x1b0] sm:$0xff]
    %v2091 = vld [vmem:[#allocation9 + $0x1b8] sm:$0xff]
    %v2092 = vld [vmem:[#allocation9 + $0x1c0] sm:$0xff]
    %v2093 = vld [vmem:[#allocation9 + $0x1c8] sm:$0xff]
    %v2094 = vld [vmem:[#allocation9 + $0x1d0] sm:$0xff]
    %v2095 = vld [vmem:[#allocation9 + $0x1d8] sm:$0xff]
    %v2096 = vld [vmem:[#allocation9 + $0x1e0] sm:$0xff]
    %v2097 = vld [vmem:[#allocation9 + $0x1e8] sm:$0xff]
    %v2098 = vld [vmem:[#allocation9 + $0x1f0] sm:$0xff]
    %v2099 = vld [vmem:[#allocation9 + $0x1f8] sm:$0xff]
    %2100 = vmatpush.msra.mxu0 %v2096
    %2101 = vmatpush.msra.mxu0 %v2092
    %2102 = vmatpush.msra.mxu0 %v2088
    %2103 = vmatpush.msra.mxu0 %v2084
    %2104 = vmatpush.msra.mxu0 %v2080
    %2105 = vmatpush.msra.mxu0 %v2076
    %2106 = vmatpush.msra.mxu0 %v2072
    %2107 = vmatpush.msra.mxu0 %v2068
    %2108 = vmatpush.msra.mxu0 %v2064
    %2109 = vmatpush.msra.mxu0 %v2060
    %2110 = vmatpush.msra.mxu0 %v2056
    %2111 = vmatpush.msra.mxu0 %v2052
    %2112 = vmatpush.msra.mxu0 %v2048
    %2113 = vmatpush.msra.mxu0 %v2044
    %2114 = vmatpush.msra.mxu0 %v2040
    %2115 = vmatpush.msra.mxu0 %v2036
    %2116 = vmatmul.f32.gmra.mxu0 0.0
    %v2117 = vpop.f32.mrf.mxu0
    %v2118 = vadd.f32 0.0, %v2117
    %2119 = vdwg.mxu0
    %2120 = vmatpush.msra.mxu0 %v2097
    %2121 = vmatpush.msra.mxu0 %v2093
    %2122 = vmatpush.msra.mxu0 %v2089
    %2123 = vmatpush.msra.mxu0 %v2085
    %2124 = vmatpush.msra.mxu0 %v2081
    %2125 = vmatpush.msra.mxu0 %v2077
    %2126 = vmatpush.msra.mxu0 %v2073
    %2127 = vmatpush.msra.mxu0 %v2069
    %2128 = vmatpush.msra.mxu0 %v2065
    %2129 = vmatpush.msra.mxu0 %v2061
    %2130 = vmatpush.msra.mxu0 %v2057
    %2131 = vmatpush.msra.mxu0 %v2053
    %2132 = vmatpush.msra.mxu0 %v2049
    %2133 = vmatpush.msra.mxu0 %v2045
    %2134 = vmatpush.msra.mxu0 %v2041
    %2135 = vmatpush.msra.mxu0 %v2037
    %2136 = vmatmul.f32.gmra.mxu0 0.0
    %v2137 = vpop.f32.mrf.mxu0
    %v2138 = vadd.f32 0.0, %v2137
    %2139 = vdwg.mxu0
    %2140 = vmatpush.msra.mxu0 %v2098
    %2141 = vmatpush.msra.mxu0 %v2094
    %2142 = vmatpush.msra.mxu0 %v2090
    %2143 = vmatpush.msra.mxu0 %v2086
    %2144 = vmatpush.msra.mxu0 %v2082
    %2145 = vmatpush.msra.mxu0 %v2078
    %2146 = vmatpush.msra.mxu0 %v2074
    %2147 = vmatpush.msra.mxu0 %v2070
    %2148 = vmatpush.msra.mxu0 %v2066
    %2149 = vmatpush.msra.mxu0 %v2062
    %2150 = vmatpush.msra.mxu0 %v2058
    %2151 = vmatpush.msra.mxu0 %v2054
    %2152 = vmatpush.msra.mxu0 %v2050
    %2153 = vmatpush.msra.mxu0 %v2046
    %2154 = vmatpush.msra.mxu0 %v2042
    %2155 = vmatpush.msra.mxu0 %v2038
    %2156 = vmatmul.f32.gmra.mxu0 0.0
    %v2157 = vpop.f32.mrf.mxu0
    %v2158 = vadd.f32 0.0, %v2157
    %2159 = vdwg.mxu0
    %2160 = vmatpush.msra.mxu0 %v2099
    %2161 = vmatpush.msra.mxu0 %v2095
    %2162 = vmatpush.msra.mxu0 %v2091
    %2163 = vmatpush.msra.mxu0 %v2087
    %2164 = vmatpush.msra.mxu0 %v2083
    %2165 = vmatpush.msra.mxu0 %v2079
    %2166 = vmatpush.msra.mxu0 %v2075
    %2167 = vmatpush.msra.mxu0 %v2071
    %2168 = vmatpush.msra.mxu0 %v2067
    %2169 = vmatpush.msra.mxu0 %v2063
    %2170 = vmatpush.msra.mxu0 %v2059
    %2171 = vmatpush.msra.mxu0 %v2055
    %2172 = vmatpush.msra.mxu0 %v2051
    %2173 = vmatpush.msra.mxu0 %v2047
    %2174 = vmatpush.msra.mxu0 %v2043
    %2175 = vmatpush.msra.mxu0 %v2039
    %2176 = vmatmul.f32.gmra.mxu0 0.0
    %v2177 = vpop.f32.mrf.mxu0
    %v2178 = vadd.f32 0.0, %v2177
    %2179 = vdwg.mxu0
    %v2180 = vadd.f32 %v2032, %v2118
    %v2181 = vadd.f32 %v2033, %v2138
    %v2182 = vadd.f32 %v2034, %v2158
    %v2183 = vadd.f32 %v2035, %v2178
    %v2184 = vmul.f32 %v2180, 0.5
    %v2185 = vmul.f32 %v2181, 0.5
    %v2186 = vmul.f32 %v2182, 0.5
    %v2187 = vtanh.pop %v2184
    %v2188 = vtanh.pop %v2185
    %v2189 = vtanh.pop %v2186
    %v2190 = vmul.f32 %v2187, 0.5
    %v2191 = vmul.f32 %v2188, 0.5
    %v2192 = vmul.f32 %v2189, 0.5
    %v2193 = vadd.f32 %v2190, 0.5
    %v2194 = vadd.f32 %v2191, 0.5
    %v2195 = vadd.f32 %v2192, 0.5
    %v2196 = vtanh.pop %v2183
    %v2197 = vmul.f32 %v2194, 0.0
    %v2198 = vmul.f32 %v2193, %v2196
    %v2199 = vadd.f32 %v2197, %v2198
    %v2200 = vtanh.pop %v2199
    %v2201 = vmul.f32 %v2195, %v2200
    %2202 = vst [vmem:[#allocation3] sm:$0xff] %v2201
    %v2203 = vld [vmem:[%s531] sm:$0xff]
    %v2204 = vld [vmem:[%s531 + $0x8] sm:$0xff]
    %v2205 = vld [vmem:[%s531 + $0x10] sm:$0xff]
    %v2206 = vld [vmem:[%s531 + $0x18] sm:$0xff]
    %v2207 = vld [vmem:[#allocation9] sm:$0xff]
    %v2208 = vld [vmem:[#allocation9 + $0x8] sm:$0xff]
    %v2209 = vld [vmem:[#allocation9 + $0x10] sm:$0xff]
    %v2210 = vld [vmem:[#allocation9 + $0x18] sm:$0xff]
    %v2211 = vld [vmem:[#allocation9 + $0x20] sm:$0xff]
    %v2212 = vld [vmem:[#allocation9 + $0x28] sm:$0xff]
    %v2213 = vld [vmem:[#allocation9 + $0x30] sm:$0xff]
    %v2214 = vld [vmem:[#allocation9 + $0x38] sm:$0xff]
    %v2215 = vld [vmem:[#allocation9 + $0x40] sm:$0xff]
    %v2216 = vld [vmem:[#allocation9 + $0x48] sm:$0xff]
    %v2217 = vld [vmem:[#allocation9 + $0x50] sm:$0xff]
    %v2218 = vld [vmem:[#allocation9 + $0x58] sm:$0xff]
    %v2219 = vld [vmem:[#allocation9 + $0x60] sm:$0xff]
    %v2220 = vld [vmem:[#allocation9 + $0x68] sm:$0xff]
    %v2221 = vld [vmem:[#allocation9 + $0x70] sm:$0xff]
    %v2222 = vld [vmem:[#allocation9 + $0x78] sm:$0xff]
    %v2223 = vld [vmem:[#allocation9 + $0x80] sm:$0xff]
    %v2224 = vld [vmem:[#allocation9 + $0x88] sm:$0xff]
    %v2225 = vld [vmem:[#allocation9 + $0x90] sm:$0xff]
    %v2226 = vld [vmem:[#allocation9 + $0x98] sm:$0xff]
    %v2227 = vld [vmem:[#allocation9 + $0xa0] sm:$0xff]
    %v2228 = vld [vmem:[#allocation9 + $0xa8] sm:$0xff]
    %v2229 = vld [vmem:[#allocation9 + $0xb0] sm:$0xff]
    %v2230 = vld [vmem:[#allocation9 + $0xb8] sm:$0xff]
    %v2231 = vld [vmem:[#allocation9 + $0xc0] sm:$0xff]
    %v2232 = vld [vmem:[#allocation9 + $0xc8] sm:$0xff]
    %v2233 = vld [vmem:[#allocation9 + $0xd0] sm:$0xff]
    %v2234 = vld [vmem:[#allocation9 + $0xd8] sm:$0xff]
    %v2235 = vld [vmem:[#allocation9 + $0xe0] sm:$0xff]
    %v2236 = vld [vmem:[#allocation9 + $0xe8] sm:$0xff]
    %v2237 = vld [vmem:[#allocation9 + $0xf0] sm:$0xff]
    %v2238 = vld [vmem:[#allocation9 + $0xf8] sm:$0xff]
    %v2239 = vld [vmem:[#allocation9 + $0x100] sm:$0xff]
    %v2240 = vld [vmem:[#allocation9 + $0x108] sm:$0xff]
    %v2241 = vld [vmem:[#allocation9 + $0x110] sm:$0xff]
    %v2242 = vld [vmem:[#allocation9 + $0x118] sm:$0xff]
    %v2243 = vld [vmem:[#allocation9 + $0x120] sm:$0xff]
    %v2244 = vld [vmem:[#allocation9 + $0x128] sm:$0xff]
    %v2245 = vld [vmem:[#allocation9 + $0x130] sm:$0xff]
    %v2246 = vld [vmem:[#allocation9 + $0x138] sm:$0xff]
    %v2247 = vld [vmem:[#allocation9 + $0x140] sm:$0xff]
    %v2248 = vld [vmem:[#allocation9 + $0x148] sm:$0xff]
    %v2249 = vld [vmem:[#allocation9 + $0x150] sm:$0xff]
    %v2250 = vld [vmem:[#allocation9 + $0x158] sm:$0xff]
    %v2251 = vld [vmem:[#allocation9 + $0x160] sm:$0xff]
    %v2252 = vld [vmem:[#allocation9 + $0x168] sm:$0xff]
    %v2253 = vld [vmem:[#allocation9 + $0x170] sm:$0xff]
    %v2254 = vld [vmem:[#allocation9 + $0x178] sm:$0xff]
    %v2255 = vld [vmem:[#allocation9 + $0x180] sm:$0xff]
    %v2256 = vld [vmem:[#allocation9 + $0x188] sm:$0xff]
    %v2257 = vld [vmem:[#allocation9 + $0x190] sm:$0xff]
    %v2258 = vld [vmem:[#allocation9 + $0x198] sm:$0xff]
    %v2259 = vld [vmem:[#allocation9 + $0x1a0] sm:$0xff]
    %v2260 = vld [vmem:[#allocation9 + $0x1a8] sm:$0xff]
    %v2261 = vld [vmem:[#allocation9 + $0x1b0] sm:$0xff]
    %v2262 = vld [vmem:[#allocation9 + $0x1b8] sm:$0xff]
    %v2263 = vld [vmem:[#allocation9 + $0x1c0] sm:$0xff]
    %v2264 = vld [vmem:[#allocation9 + $0x1c8] sm:$0xff]
    %v2265 = vld [vmem:[#allocation9 + $0x1d0] sm:$0xff]
    %v2266 = vld [vmem:[#allocation9 + $0x1d8] sm:$0xff]
    %v2267 = vld [vmem:[#allocation9 + $0x1e0] sm:$0xff]
    %v2268 = vld [vmem:[#allocation9 + $0x1e8] sm:$0xff]
    %v2269 = vld [vmem:[#allocation9 + $0x1f0] sm:$0xff]
    %v2270 = vld [vmem:[#allocation9 + $0x1f8] sm:$0xff]
    %2271 = vmatpush.msra.mxu0 %v2267
    %2272 = vmatpush.msra.mxu0 %v2263
    %2273 = vmatpush.msra.mxu0 %v2259
    %2274 = vmatpush.msra.mxu0 %v2255
    %2275 = vmatpush.msra.mxu0 %v2251
    %2276 = vmatpush.msra.mxu0 %v2247
    %2277 = vmatpush.msra.mxu0 %v2243
    %2278 = vmatpush.msra.mxu0 %v2239
    %2279 = vmatpush.msra.mxu0 %v2235
    %2280 = vmatpush.msra.mxu0 %v2231
    %2281 = vmatpush.msra.mxu0 %v2227
    %2282 = vmatpush.msra.mxu0 %v2223
    %2283 = vmatpush.msra.mxu0 %v2219
    %2284 = vmatpush.msra.mxu0 %v2215
    %2285 = vmatpush.msra.mxu0 %v2211
    %2286 = vmatpush.msra.mxu0 %v2207
    %2287 = vmatmul.f32.gmra.mxu0 %v2201
    %v2288 = vpop.f32.mrf.mxu0
    %v2289 = vadd.f32 0.0, %v2288
    %2290 = vdwg.mxu0
    %2291 = vmatpush.msra.mxu0 %v2268
    %2292 = vmatpush.msra.mxu0 %v2264
    %2293 = vmatpush.msra.mxu0 %v2260
    %2294 = vmatpush.msra.mxu0 %v2256
    %2295 = vmatpush.msra.mxu0 %v2252
    %2296 = vmatpush.msra.mxu0 %v2248
    %2297 = vmatpush.msra.mxu0 %v2244
    %2298 = vmatpush.msra.mxu0 %v2240
    %2299 = vmatpush.msra.mxu0 %v2236
    %2300 = vmatpush.msra.mxu0 %v2232
    %2301 = vmatpush.msra.mxu0 %v2228
    %2302 = vmatpush.msra.mxu0 %v2224
    %2303 = vmatpush.msra.mxu0 %v2220
    %2304 = vmatpush.msra.mxu0 %v2216
    %2305 = vmatpush.msra.mxu0 %v2212
    %2306 = vmatpush.msra.mxu0 %v2208
    %2307 = vmatmul.f32.gmra.mxu0 %v2201
    %v2308 = vpop.f32.mrf.mxu0
    %v2309 = vadd.f32 0.0, %v2308
    %2310 = vdwg.mxu0
    %2311 = vmatpush.msra.mxu0 %v2269
    %2312 = vmatpush.msra.mxu0 %v2265
    %2313 = vmatpush.msra.mxu0 %v2261
    %2314 = vmatpush.msra.mxu0 %v2257
    %2315 = vmatpush.msra.mxu0 %v2253
    %2316 = vmatpush.msra.mxu0 %v2249
    %2317 = vmatpush.msra.mxu0 %v2245
    %2318 = vmatpush.msra.mxu0 %v2241
    %2319 = vmatpush.msra.mxu0 %v2237
    %2320 = vmatpush.msra.mxu0 %v2233
    %2321 = vmatpush.msra.mxu0 %v2229
    %2322 = vmatpush.msra.mxu0 %v2225
    %2323 = vmatpush.msra.mxu0 %v2221
    %2324 = vmatpush.msra.mxu0 %v2217
    %2325 = vmatpush.msra.mxu0 %v2213
    %2326 = vmatpush.msra.mxu0 %v2209
    %2327 = vmatmul.f32.gmra.mxu0 %v2201
    %v2328 = vpop.f32.mrf.mxu0
    %v2329 = vadd.f32 0.0, %v2328
    %2330 = vdwg.mxu0
    %2331 = vmatpush.msra.mxu0 %v2270
    %2332 = vmatpush.msra.mxu0 %v2266
    %2333 = vmatpush.msra.mxu0 %v2262
    %2334 = vmatpush.msra.mxu0 %v2258
    %2335 = vmatpush.msra.mxu0 %v2254
    %2336 = vmatpush.msra.mxu0 %v2250
    %2337 = vmatpush.msra.mxu0 %v2246
    %2338 = vmatpush.msra.mxu0 %v2242
    %2339 = vmatpush.msra.mxu0 %v2238
    %2340 = vmatpush.msra.mxu0 %v2234
    %2341 = vmatpush.msra.mxu0 %v2230
    %2342 = vmatpush.msra.mxu0 %v2226
    %2343 = vmatpush.msra.mxu0 %v2222
    %2344 = vmatpush.msra.mxu0 %v2218
    %2345 = vmatpush.msra.mxu0 %v2214
    %2346 = vmatpush.msra.mxu0 %v2210
    %2347 = vmatmul.f32.gmra.mxu0 %v2201
    %v2348 = vpop.f32.mrf.mxu0
    %v2349 = vadd.f32 0.0, %v2348
    %2350 = vdwg.mxu0
    %v2351 = vadd.f32 %v2203, %v2289
    %v2352 = vadd.f32 %v2204, %v2309
    %v2353 = vadd.f32 %v2205, %v2329
    %v2354 = vadd.f32 %v2206, %v2349
    %v2355 = vmul.f32 %v2351, 0.5
    %v2356 = vmul.f32 %v2352, 0.5
    %v2357 = vmul.f32 %v2353, 0.5
    %v2358 = vtanh.pop %v2355
    %v2359 = vtanh.pop %v2356
    %v2360 = vtanh.pop %v2357
    %v2361 = vmul.f32 %v2358, 0.5
    %v2362 = vmul.f32 %v2359, 0.5
    %v2363 = vmul.f32 %v2360, 0.5
    %v2364 = vadd.f32 %v2361, 0.5
    %v2365 = vadd.f32 %v2362, 0.5
    %v2366 = vadd.f32 %v2363, 0.5
    %v2367 = vtanh.pop %v2354
    %v2368 = vmul.f32 %v2365, %v2199
    %v2369 = vmul.f32 %v2364, %v2367
    %v2370 = vadd.f32 %v2368, %v2369
    %v2371 = vtanh.pop %v2370
    %v2372 = vmul.f32 %v2366, %v2371
    %2373 = vst [vmem:[%s702] sm:$0xff] %v2372
    %v2374 = vld [vmem:[%s706] sm:$0xff]
    %v2375 = vld [vmem:[%s706 + $0x8] sm:$0xff]
    %v2376 = vld [vmem:[%s706 + $0x10] sm:$0xff]
    %v2377 = vld [vmem:[%s706 + $0x18] sm:$0xff]
    %v2378 = vld [vmem:[#allocation9] sm:$0xff]
    %v2379 = vld [vmem:[#allocation9 + $0x8] sm:$0xff]
    %v2380 = vld [vmem:[#allocation9 + $0x10] sm:$0xff]
    %v2381 = vld [vmem:[#allocation9 + $0x18] sm:$0xff]
    %v2382 = vld [vmem:[#allocation9 + $0x20] sm:$0xff]
    %v2383 = vld [vmem:[#allocation9 + $0x28] sm:$0xff]
    %v2384 = vld [vmem:[#allocation9 + $0x30] sm:$0xff]
    %v2385 = vld [vmem:[#allocation9 + $0x38] sm:$0xff]
    %v2386 = vld [vmem:[#allocation9 + $0x40] sm:$0xff]
    %v2387 = vld [vmem:[#allocation9 + $0x48] sm:$0xff]
    %v2388 = vld [vmem:[#allocation9 + $0x50] sm:$0xff]
    %v2389 = vld [vmem:[#allocation9 + $0x58] sm:$0xff]
    %v2390 = vld [vmem:[#allocation9 + $0x60] sm:$0xff]
    %v2391 = vld [vmem:[#allocation9 + $0x68] sm:$0xff]
    %v2392 = vld [vmem:[#allocation9 + $0x70] sm:$0xff]
    %v2393 = vld [vmem:[#allocation9 + $0x78] sm:$0xff]
    %v2394 = vld [vmem:[#allocation9 + $0x80] sm:$0xff]
    %v2395 = vld [vmem:[#allocation9 + $0x88] sm:$0xff]
    %v2396 = vld [vmem:[#allocation9 + $0x90] sm:$0xff]
    %v2397 = vld [vmem:[#allocation9 + $0x98] sm:$0xff]
    %v2398 = vld [vmem:[#allocation9 + $0xa0] sm:$0xff]
    %v2399 = vld [vmem:[#allocation9 + $0xa8] sm:$0xff]
    %v2400 = vld [vmem:[#allocation9 + $0xb0] sm:$0xff]
    %v2401 = vld [vmem:[#allocation9 + $0xb8] sm:$0xff]
    %v2402 = vld [vmem:[#allocation9 + $0xc0] sm:$0xff]
    %v2403 = vld [vmem:[#allocation9 + $0xc8] sm:$0xff]
    %v2404 = vld [vmem:[#allocation9 + $0xd0] sm:$0xff]
    %v2405 = vld [vmem:[#allocation9 + $0xd8] sm:$0xff]
    %v2406 = vld [vmem:[#allocation9 + $0xe0] sm:$0xff]
    %v2407 = vld [vmem:[#allocation9 + $0xe8] sm:$0xff]
    %v2408 = vld [vmem:[#allocation9 + $0xf0] sm:$0xff]
    %v2409 = vld [vmem:[#allocation9 + $0xf8] sm:$0xff]
    %v2410 = vld [vmem:[#allocation9 + $0x100] sm:$0xff]
    %v2411 = vld [vmem:[#allocation9 + $0x108] sm:$0xff]
    %v2412 = vld [vmem:[#allocation9 + $0x110] sm:$0xff]
    %v2413 = vld [vmem:[#allocation9 + $0x118] sm:$0xff]
    %v2414 = vld [vmem:[#allocation9 + $0x120] sm:$0xff]
    %v2415 = vld [vmem:[#allocation9 + $0x128] sm:$0xff]
    %v2416 = vld [vmem:[#allocation9 + $0x130] sm:$0xff]
    %v2417 = vld [vmem:[#allocation9 + $0x138] sm:$0xff]
    %v2418 = vld [vmem:[#allocation9 + $0x140] sm:$0xff]
    %v2419 = vld [vmem:[#allocation9 + $0x148] sm:$0xff]
    %v2420 = vld [vmem:[#allocation9 + $0x150] sm:$0xff]
    %v2421 = vld [vmem:[#allocation9 + $0x158] sm:$0xff]
    %v2422 = vld [vmem:[#allocation9 + $0x160] sm:$0xff]
    %v2423 = vld [vmem:[#allocation9 + $0x168] sm:$0xff]
    %v2424 = vld [vmem:[#allocation9 + $0x170] sm:$0xff]
    %v2425 = vld [vmem:[#allocation9 + $0x178] sm:$0xff]
    %v2426 = vld [vmem:[#allocation9 + $0x180] sm:$0xff]
    %v2427 = vld [vmem:[#allocation9 + $0x188] sm:$0xff]
    %v2428 = vld [vmem:[#allocation9 + $0x190] sm:$0xff]
    %v2429 = vld [vmem:[#allocation9 + $0x198] sm:$0xff]
    %v2430 = vld [vmem:[#allocation9 + $0x1a0] sm:$0xff]
    %v2431 = vld [vmem:[#allocation9 + $0x1a8] sm:$0xff]
    %v2432 = vld [vmem:[#allocation9 + $0x1b0] sm:$0xff]
    %v2433 = vld [vmem:[#allocation9 + $0x1b8] sm:$0xff]
    %v2434 = vld [vmem:[#allocation9 + $0x1c0] sm:$0xff]
    %v2435 = vld [vmem:[#allocation9 + $0x1c8] sm:$0xff]
    %v2436 = vld [vmem:[#allocation9 + $0x1d0] sm:$0xff]
    %v2437 = vld [vmem:[#allocation9 + $0x1d8] sm:$0xff]
    %v2438 = vld [vmem:[#allocation9 + $0x1e0] sm:$0xff]
    %v2439 = vld [vmem:[#allocation9 + $0x1e8] sm:$0xff]
    %v2440 = vld [vmem:[#allocation9 + $0x1f0] sm:$0xff]
    %v2441 = vld [vmem:[#allocation9 + $0x1f8] sm:$0xff]
    %2442 = vmatpush.msra.mxu0 %v2438
    %2443 = vmatpush.msra.mxu0 %v2434
    %2444 = vmatpush.msra.mxu0 %v2430
    %2445 = vmatpush.msra.mxu0 %v2426
    %2446 = vmatpush.msra.mxu0 %v2422
    %2447 = vmatpush.msra.mxu0 %v2418
    %2448 = vmatpush.msra.mxu0 %v2414
    %2449 = vmatpush.msra.mxu0 %v2410
    %2450 = vmatpush.msra.mxu0 %v2406
    %2451 = vmatpush.msra.mxu0 %v2402
    %2452 = vmatpush.msra.mxu0 %v2398
    %2453 = vmatpush.msra.mxu0 %v2394
    %2454 = vmatpush.msra.mxu0 %v2390
    %2455 = vmatpush.msra.mxu0 %v2386
    %2456 = vmatpush.msra.mxu0 %v2382
    %2457 = vmatpush.msra.mxu0 %v2378
    %2458 = vmatmul.f32.gmra.mxu0 %v2372
    %v2459 = vpop.f32.mrf.mxu0
    %v2460 = vadd.f32 0.0, %v2459
    %2461 = vdwg.mxu0
    %2462 = vmatpush.msra.mxu0 %v2439
    %2463 = vmatpush.msra.mxu0 %v2435
    %2464 = vmatpush.msra.mxu0 %v2431
    %2465 = vmatpush.msra.mxu0 %v2427
    %2466 = vmatpush.msra.mxu0 %v2423
    %2467 = vmatpush.msra.mxu0 %v2419
    %2468 = vmatpush.msra.mxu0 %v2415
    %2469 = vmatpush.msra.mxu0 %v2411
    %2470 = vmatpush.msra.mxu0 %v2407
    %2471 = vmatpush.msra.mxu0 %v2403
    %2472 = vmatpush.msra.mxu0 %v2399
    %2473 = vmatpush.msra.mxu0 %v2395
    %2474 = vmatpush.msra.mxu0 %v2391
    %2475 = vmatpush.msra.mxu0 %v2387
    %2476 = vmatpush.msra.mxu0 %v2383
    %2477 = vmatpush.msra.mxu0 %v2379
    %2478 = vmatmul.f32.gmra.mxu0 %v2372
    %v2479 = vpop.f32.mrf.mxu0
    %v2480 = vadd.f32 0.0, %v2479
    %2481 = vdwg.mxu0
    %2482 = vmatpush.msra.mxu0 %v2440
    %2483 = vmatpush.msra.mxu0 %v2436
    %2484 = vmatpush.msra.mxu0 %v2432
    %2485 = vmatpush.msra.mxu0 %v2428
    %2486 = vmatpush.msra.mxu0 %v2424
    %2487 = vmatpush.msra.mxu0 %v2420
    %2488 = vmatpush.msra.mxu0 %v2416
    %2489 = vmatpush.msra.mxu0 %v2412
    %2490 = vmatpush.msra.mxu0 %v2408
    %2491 = vmatpush.msra.mxu0 %v2404
    %2492 = vmatpush.msra.mxu0 %v2400
    %2493 = vmatpush.msra.mxu0 %v2396
    %2494 = vmatpush.msra.mxu0 %v2392
    %2495 = vmatpush.msra.mxu0 %v2388
    %2496 = vmatpush.msra.mxu0 %v2384
    %2497 = vmatpush.msra.mxu0 %v2380
    %2498 = vmatmul.f32.gmra.mxu0 %v2372
    %v2499 = vpop.f32.mrf.mxu0
    %v2500 = vadd.f32 0.0, %v2499
    %2501 = vdwg.mxu0
    %2502 = vmatpush.msra.mxu0 %v2441
    %2503 = vmatpush.msra.mxu0 %v2437
    %2504 = vmatpush.msra.mxu0 %v2433
    %2505 = vmatpush.msra.mxu0 %v2429
    %2506 = vmatpush.msra.mxu0 %v2425
    %2507 = vmatpush.msra.mxu0 %v2421
    %2508 = vmatpush.msra.mxu0 %v2417
    %2509 = vmatpush.msra.mxu0 %v2413
    %2510 = vmatpush.msra.mxu0 %v2409
    %2511 = vmatpush.msra.mxu0 %v2405
    %2512 = vmatpush.msra.mxu0 %v2401
    %2513 = vmatpush.msra.mxu0 %v2397
    %2514 = vmatpush.msra.mxu0 %v2393
    %2515 = vmatpush.msra.mxu0 %v2389
    %2516 = vmatpush.msra.mxu0 %v2385
    %2517 = vmatpush.msra.mxu0 %v2381
    %2518 = vmatmul.f32.gmra.mxu0 %v2372
    %v2519 = vpop.f32.mrf.mxu0
    %v2520 = vadd.f32 0.0, %v2519
    %2521 = vdwg.mxu0
    %v2522 = vadd.f32 %v2374, %v2460
    %v2523 = vadd.f32 %v2375, %v2480
    %v2524 = vadd.f32 %v2376, %v2500
    %v2525 = vadd.f32 %v2377, %v2520
    %v2526 = vmul.f32 %v2522, 0.5
    %v2527 = vmul.f32 %v2523, 0.5
    %v2528 = vmul.f32 %v2524, 0.5
    %v2529 = vtanh.pop %v2526
    %v2530 = vtanh.pop %v2527
    %v2531 = vtanh.pop %v2528
    %v2532 = vmul.f32 %v2529, 0.5
    %v2533 = vmul.f32 %v2530, 0.5
    %v2534 = vmul.f32 %v2531, 0.5
    %v2535 = vadd.f32 %v2532, 0.5
    %v2536 = vadd.f32 %v2533, 0.5
    %v2537 = vadd.f32 %v2534, 0.5
    %v2538 = vtanh.pop %v2525
    %v2539 = vmul.f32 %v2536, %v2370
    %v2540 = vmul.f32 %v2535, %v2538
    %v2541 = vadd.f32 %v2539, %v2540
    %v2542 = vtanh.pop %v2541
    %v2543 = vmul.f32 %v2537, %v2542
    %2544 = vst [vmem:[%s877] sm:$0xff] %v2543
    %v2545 = vld [vmem:[%s881] sm:$0xff]
    %v2546 = vld [vmem:[%s881 + $0x8] sm:$0xff]
    %v2547 = vld [vmem:[%s881 + $0x10] sm:$0xff]
    %v2548 = vld [vmem:[%s881 + $0x18] sm:$0xff]
    %v2549 = vld [vmem:[#allocation9] sm:$0xff]
    %v2550 = vld [vmem:[#allocation9 + $0x8] sm:$0xff]
    %v2551 = vld [vmem:[#allocation9 + $0x10] sm:$0xff]
    %v2552 = vld [vmem:[#allocation9 + $0x18] sm:$0xff]
    %v2553 = vld [vmem:[#allocation9 + $0x20] sm:$0xff]
    %v2554 = vld [vmem:[#allocation9 + $0x28] sm:$0xff]
    %v2555 = vld [vmem:[#allocation9 + $0x30] sm:$0xff]
    %v2556 = vld [vmem:[#allocation9 + $0x38] sm:$0xff]
    %v2557 = vld [vmem:[#allocation9 + $0x40] sm:$0xff]
    %v2558 = vld [vmem:[#allocation9 + $0x48] sm:$0xff]
    %v2559 = vld [vmem:[#allocation9 + $0x50] sm:$0xff]
    %v2560 = vld [vmem:[#allocation9 + $0x58] sm:$0xff]
    %v2561 = vld [vmem:[#allocation9 + $0x60] sm:$0xff]
    %v2562 = vld [vmem:[#allocation9 + $0x68] sm:$0xff]
    %v2563 = vld [vmem:[#allocation9 + $0x70] sm:$0xff]
    %v2564 = vld [vmem:[#allocation9 + $0x78] sm:$0xff]
    %v2565 = vld [vmem:[#allocation9 + $0x80] sm:$0xff]
    %v2566 = vld [vmem:[#allocation9 + $0x88] sm:$0xff]
    %v2567 = vld [vmem:[#allocation9 + $0x90] sm:$0xff]
    %v2568 = vld [vmem:[#allocation9 + $0x98] sm:$0xff]
    %v2569 = vld [vmem:[#allocation9 + $0xa0] sm:$0xff]
    %v2570 = vld [vmem:[#allocation9 + $0xa8] sm:$0xff]
    %v2571 = vld [vmem:[#allocation9 + $0xb0] sm:$0xff]
    %v2572 = vld [vmem:[#allocation9 + $0xb8] sm:$0xff]
    %v2573 = vld [vmem:[#allocation9 + $0xc0] sm:$0xff]
    %v2574 = vld [vmem:[#allocation9 + $0xc8] sm:$0xff]
    %v2575 = vld [vmem:[#allocation9 + $0xd0] sm:$0xff]
    %v2576 = vld [vmem:[#allocation9 + $0xd8] sm:$0xff]
    %v2577 = vld [vmem:[#allocation9 + $0xe0] sm:$0xff]
    %v2578 = vld [vmem:[#allocation9 + $0xe8] sm:$0xff]
    %v2579 = vld [vmem:[#allocation9 + $0xf0] sm:$0xff]
    %v2580 = vld [vmem:[#allocation9 + $0xf8] sm:$0xff]
    %v2581 = vld [vmem:[#allocation9 + $0x100] sm:$0xff]
    %v2582 = vld [vmem:[#allocation9 + $0x108] sm:$0xff]
    %v2583 = vld [vmem:[#allocation9 + $0x110] sm:$0xff]
    %v2584 = vld [vmem:[#allocation9 + $0x118] sm:$0xff]
    %v2585 = vld [vmem:[#allocation9 + $0x120] sm:$0xff]
    %v2586 = vld [vmem:[#allocation9 + $0x128] sm:$0xff]
    %v2587 = vld [vmem:[#allocation9 + $0x130] sm:$0xff]
    %v2588 = vld [vmem:[#allocation9 + $0x138] sm:$0xff]
    %v2589 = vld [vmem:[#allocation9 + $0x140] sm:$0xff]
    %v2590 = vld [vmem:[#allocation9 + $0x148] sm:$0xff]
    %v2591 = vld [vmem:[#allocation9 + $0x150] sm:$0xff]
    %v2592 = vld [vmem:[#allocation9 + $0x158] sm:$0xff]
    %v2593 = vld [vmem:[#allocation9 + $0x160] sm:$0xff]
    %v2594 = vld [vmem:[#allocation9 + $0x168] sm:$0xff]
    %v2595 = vld [vmem:[#allocation9 + $0x170] sm:$0xff]
    %v2596 = vld [vmem:[#allocation9 + $0x178] sm:$0xff]
    %v2597 = vld [vmem:[#allocation9 + $0x180] sm:$0xff]
    %v2598 = vld [vmem:[#allocation9 + $0x188] sm:$0xff]
    %v2599 = vld [vmem:[#allocation9 + $0x190] sm:$0xff]
    %v2600 = vld [vmem:[#allocation9 + $0x198] sm:$0xff]
    %v2601 = vld [vmem:[#allocation9 + $0x1a0] sm:$0xff]
    %v2602 = vld [vmem:[#allocation9 + $0x1a8] sm:$0xff]
    %v2603 = vld [vmem:[#allocation9 + $0x1b0] sm:$0xff]
    %v2604 = vld [vmem:[#allocation9 + $0x1b8] sm:$0xff]
    %v2605 = vld [vmem:[#allocation9 + $0x1c0] sm:$0xff]
    %v2606 = vld [vmem:[#allocation9 + $0x1c8] sm:$0xff]
    %v2607 = vld [vmem:[#allocation9 + $0x1d0] sm:$0xff]
    %v2608 = vld [vmem:[#allocation9 + $0x1d8] sm:$0xff]
    %v2609 = vld [vmem:[#allocation9 + $0x1e0] sm:$0xff]
    %v2610 = vld [vmem:[#allocation9 + $0x1e8] sm:$0xff]
    %v2611 = vld [vmem:[#allocation9 + $0x1f0] sm:$0xff]
    %v2612 = vld [vmem:[#allocation9 + $0x1f8] sm:$0xff]
    %2613 = vmatpush.msra.mxu0 %v2609
    %2614 = vmatpush.msra.mxu0 %v2605
    %2615 = vmatpush.msra.mxu0 %v2601
    %2616 = vmatpush.msra.mxu0 %v2597
    %2617 = vmatpush.msra.mxu0 %v2593
    %2618 = vmatpush.msra.mxu0 %v2589
    %2619 = vmatpush.msra.mxu0 %v2585
    %2620 = vmatpush.msra.mxu0 %v2581
    %2621 = vmatpush.msra.mxu0 %v2577
    %2622 = vmatpush.msra.mxu0 %v2573
    %2623 = vmatpush.msra.mxu0 %v2569
    %2624 = vmatpush.msra.mxu0 %v2565
    %2625 = vmatpush.msra.mxu0 %v2561
    %2626 = vmatpush.msra.mxu0 %v2557
    %2627 = vmatpush.msra.mxu0 %v2553
    %2628 = vmatpush.msra.mxu0 %v2549
    %2629 = vmatmul.f32.gmra.mxu0 %v2543
    %v2630 = vpop.f32.mrf.mxu0
    %v2631 = vadd.f32 0.0, %v2630
    %2632 = vdwg.mxu0
    %2633 = vmatpush.msra.mxu0 %v2610
    %2634 = vmatpush.msra.mxu0 %v2606
    %2635 = vmatpush.msra.mxu0 %v2602
    %2636 = vmatpush.msra.mxu0 %v2598
    %2637 = vmatpush.msra.mxu0 %v2594
    %2638 = vmatpush.msra.mxu0 %v2590
    %2639 = vmatpush.msra.mxu0 %v2586
    %2640 = vmatpush.msra.mxu0 %v2582
    %2641 = vmatpush.msra.mxu0 %v2578
    %2642 = vmatpush.msra.mxu0 %v2574
    %2643 = vmatpush.msra.mxu0 %v2570
    %2644 = vmatpush.msra.mxu0 %v2566
    %2645 = vmatpush.msra.mxu0 %v2562
    %2646 = vmatpush.msra.mxu0 %v2558
    %2647 = vmatpush.msra.mxu0 %v2554
    %2648 = vmatpush.msra.mxu0 %v2550
    %2649 = vmatmul.f32.gmra.mxu0 %v2543
    %v2650 = vpop.f32.mrf.mxu0
    %v2651 = vadd.f32 0.0, %v2650
    %2652 = vdwg.mxu0
    %2653 = vmatpush.msra.mxu0 %v2611
    %2654 = vmatpush.msra.mxu0 %v2607
    %2655 = vmatpush.msra.mxu0 %v2603
    %2656 = vmatpush.msra.mxu0 %v2599
    %2657 = vmatpush.msra.mxu0 %v2595
    %2658 = vmatpush.msra.mxu0 %v2591
    %2659 = vmatpush.msra.mxu0 %v2587
    %2660 = vmatpush.msra.mxu0 %v2583
    %2661 = vmatpush.msra.mxu0 %v2579
    %2662 = vmatpush.msra.mxu0 %v2575
    %2663 = vmatpush.msra.mxu0 %v2571
    %2664 = vmatpush.msra.mxu0 %v2567
    %2665 = vmatpush.msra.mxu0 %v2563
    %2666 = vmatpush.msra.mxu0 %v2559
    %2667 = vmatpush.msra.mxu0 %v2555
    %2668 = vmatpush.msra.mxu0 %v2551
    %2669 = vmatmul.f32.gmra.mxu0 %v2543
    %v2670 = vpop.f32.mrf.mxu0
    %v2671 = vadd.f32 0.0, %v2670
    %2672 = vdwg.mxu0
    %2673 = vmatpush.msra.mxu0 %v2612
    %2674 = vmatpush.msra.mxu0 %v2608
    %2675 = vmatpush.msra.mxu0 %v2604
    %2676 = vmatpush.msra.mxu0 %v2600
    %2677 = vmatpush.msra.mxu0 %v2596
    %2678 = vmatpush.msra.mxu0 %v2592
    %2679 = vmatpush.msra.mxu0 %v2588
    %2680 = vmatpush.msra.mxu0 %v2584
    %2681 = vmatpush.msra.mxu0 %v2580
    %2682 = vmatpush.msra.mxu0 %v2576
    %2683 = vmatpush.msra.mxu0 %v2572
    %2684 = vmatpush.msra.mxu0 %v2568
    %2685 = vmatpush.msra.mxu0 %v2564
    %2686 = vmatpush.msra.mxu0 %v2560
    %2687 = vmatpush.msra.mxu0 %v2556
    %2688 = vmatpush.msra.mxu0 %v2552
    %2689 = vmatmul.f32.gmra.mxu0 %v2543
    %v2690 = vpop.f32.mrf.mxu0
    %v2691 = vadd.f32 0.0, %v2690
    %2692 = vdwg.mxu0
    %v2693 = vadd.f32 %v2545, %v2631
    %v2694 = vadd.f32 %v2546, %v2651
    %v2695 = vadd.f32 %v2547, %v2671
    %v2696 = vadd.f32 %v2548, %v2691
    %v2697 = vmul.f32 %v2693, 0.5
    %v2698 = vmul.f32 %v2694, 0.5
    %v2699 = vmul.f32 %v2695, 0.5
    %v2700 = vtanh.pop %v2697
    %v2701 = vtanh.pop %v2698
    %v2702 = vtanh.pop %v2699
    %v2703 = vmul.f32 %v2700, 0.5
    %v2704 = vmul.f32 %v2701, 0.5
    %v2705 = vmul.f32 %v2702, 0.5
    %v2706 = vadd.f32 %v2703, 0.5
    %v2707 = vadd.f32 %v2704, 0.5
    %v2708 = vadd.f32 %v2705, 0.5
    %v2709 = vtanh.pop %v2696
    %v2710 = vmul.f32 %v2707, %v2541
    %v2711 = vmul.f32 %v2706, %v2709
    %v2712 = vadd.f32 %v2710, %v2711
    %v2713 = vtanh.pop %v2712
    %v2714 = vmul.f32 %v2708, %v2713
    %2715 = vst [vmem:[%s1052] sm:$0xff] %v2714
    %v2716 = vld [vmem:[%s1056] sm:$0xff]
    %v2717 = vld [vmem:[%s1056 + $0x8] sm:$0xff]
    %v2718 = vld [vmem:[%s1056 + $0x10] sm:$0xff]
    %v2719 = vld [vmem:[%s1056 + $0x18] sm:$0xff]
    %v2720 = vld [vmem:[#allocation9] sm:$0xff]
    %v2721 = vld [vmem:[#allocation9 + $0x8] sm:$0xff]
    %v2722 = vld [vmem:[#allocation9 + $0x10] sm:$0xff]
    %v2723 = vld [vmem:[#allocation9 + $0x18] sm:$0xff]
    %v2724 = vld [vmem:[#allocation9 + $0x20] sm:$0xff]
    %v2725 = vld [vmem:[#allocation9 + $0x28] sm:$0xff]
    %v2726 = vld [vmem:[#allocation9 + $0x30] sm:$0xff]
    %v2727 = vld [vmem:[#allocation9 + $0x38] sm:$0xff]
    %v2728 = vld [vmem:[#allocation9 + $0x40] sm:$0xff]
    %v2729 = vld [vmem:[#allocation9 + $0x48] sm:$0xff]
    %v2730 = vld [vmem:[#allocation9 + $0x50] sm:$0xff]
    %v2731 = vld [vmem:[#allocation9 + $0x58] sm:$0xff]
    %v2732 = vld [vmem:[#allocation9 + $0x60] sm:$0xff]
    %v2733 = vld [vmem:[#allocation9 + $0x68] sm:$0xff]
    %v2734 = vld [vmem:[#allocation9 + $0x70] sm:$0xff]
    %v2735 = vld [vmem:[#allocation9 + $0x78] sm:$0xff]
    %v2736 = vld [vmem:[#allocation9 + $0x80] sm:$0xff]
    %v2737 = vld [vmem:[#allocation9 + $0x88] sm:$0xff]
    %v2738 = vld [vmem:[#allocation9 + $0x90] sm:$0xff]
    %v2739 = vld [vmem:[#allocation9 + $0x98] sm:$0xff]
    %v2740 = vld [vmem:[#allocation9 + $0xa0] sm:$0xff]
    %v2741 = vld [vmem:[#allocation9 + $0xa8] sm:$0xff]
    %v2742 = vld [vmem:[#allocation9 + $0xb0] sm:$0xff]
    %v2743 = vld [vmem:[#allocation9 + $0xb8] sm:$0xff]
    %v2744 = vld [vmem:[#allocation9 + $0xc0] sm:$0xff]
    %v2745 = vld [vmem:[#allocation9 + $0xc8] sm:$0xff]
    %v2746 = vld [vmem:[#allocation9 + $0xd0] sm:$0xff]
    %v2747 = vld [vmem:[#allocation9 + $0xd8] sm:$0xff]
    %v2748 = vld [vmem:[#allocation9 + $0xe0] sm:$0xff]
    %v2749 = vld [vmem:[#allocation9 + $0xe8] sm:$0xff]
    %v2750 = vld [vmem:[#allocation9 + $0xf0] sm:$0xff]
    %v2751 = vld [vmem:[#allocation9 + $0xf8] sm:$0xff]
    %v2752 = vld [vmem:[#allocation9 + $0x100] sm:$0xff]
    %v2753 = vld [vmem:[#allocation9 + $0x108] sm:$0xff]
    %v2754 = vld [vmem:[#allocation9 + $0x110] sm:$0xff]
    %v2755 = vld [vmem:[#allocation9 + $0x118] sm:$0xff]
    %v2756 = vld [vmem:[#allocation9 + $0x120] sm:$0xff]
    %v2757 = vld [vmem:[#allocation9 + $0x128] sm:$0xff]
    %v2758 = vld [vmem:[#allocation9 + $0x130] sm:$0xff]
    %v2759 = vld [vmem:[#allocation9 + $0x138] sm:$0xff]
    %v2760 = vld [vmem:[#allocation9 + $0x140] sm:$0xff]
    %v2761 = vld [vmem:[#allocation9 + $0x148] sm:$0xff]
    %v2762 = vld [vmem:[#allocation9 + $0x150] sm:$0xff]
    %v2763 = vld [vmem:[#allocation9 + $0x158] sm:$0xff]
    %v2764 = vld [vmem:[#allocation9 + $0x160] sm:$0xff]
    %v2765 = vld [vmem:[#allocation9 + $0x168] sm:$0xff]
    %v2766 = vld [vmem:[#allocation9 + $0x170] sm:$0xff]
    %v2767 = vld [vmem:[#allocation9 + $0x178] sm:$0xff]
    %v2768 = vld [vmem:[#allocation9 + $0x180] sm:$0xff]
    %v2769 = vld [vmem:[#allocation9 + $0x188] sm:$0xff]
    %v2770 = vld [vmem:[#allocation9 + $0x190] sm:$0xff]
    %v2771 = vld [vmem:[#allocation9 + $0x198] sm:$0xff]
    %v2772 = vld [vmem:[#allocation9 + $0x1a0] sm:$0xff]
    %v2773 = vld [vmem:[#allocation9 + $0x1a8] sm:$0xff]
    %v2774 = vld [vmem:[#allocation9 + $0x1b0] sm:$0xff]
    %v2775 = vld [vmem:[#allocation9 + $0x1b8] sm:$0xff]
    %v2776 = vld [vmem:[#allocation9 + $0x1c0] sm:$0xff]
    %v2777 = vld [vmem:[#allocation9 + $0x1c8] sm:$0xff]
    %v2778 = vld [vmem:[#allocation9 + $0x1d0] sm:$0xff]
    %v2779 = vld [vmem:[#allocation9 + $0x1d8] sm:$0xff]
    %v2780 = vld [vmem:[#allocation9 + $0x1e0] sm:$0xff]
    %v2781 = vld [vmem:[#allocation9 + $0x1e8] sm:$0xff]
    %v2782 = vld [vmem:[#allocation9 + $0x1f0] sm:$0xff]
    %v2783 = vld [vmem:[#allocation9 + $0x1f8] sm:$0xff]
    %2784 = vmatpush.msra.mxu0 %v2780
    %2785 = vmatpush.msra.mxu0 %v2776
    %2786 = vmatpush.msra.mxu0 %v2772
    %2787 = vmatpush.msra.mxu0 %v2768
    %2788 = vmatpush.msra.mxu0 %v2764
    %2789 = vmatpush.msra.mxu0 %v2760
    %2790 = vmatpush.msra.mxu0 %v2756
    %2791 = vmatpush.msra.mxu0 %v2752
    %2792 = vmatpush.msra.mxu0 %v2748
    %2793 = vmatpush.msra.mxu0 %v2744
    %2794 = vmatpush.msra.mxu0 %v2740
    %2795 = vmatpush.msra.mxu0 %v2736
    %2796 = vmatpush.msra.mxu0 %v2732
    %2797 = vmatpush.msra.mxu0 %v2728
    %2798 = vmatpush.msra.mxu0 %v2724
    %2799 = vmatpush.msra.mxu0 %v2720
    %2800 = vmatmul.f32.gmra.mxu0 %v2714
    %v2801 = vpop.f32.mrf.mxu0
    %v2802 = vadd.f32 0.0, %v2801
    %2803 = vdwg.mxu0
    %2804 = vmatpush.msra.mxu0 %v2781
    %2805 = vmatpush.msra.mxu0 %v2777
    %2806 = vmatpush.msra.mxu0 %v2773
    %2807 = vmatpush.msra.mxu0 %v2769
    %2808 = vmatpush.msra.mxu0 %v2765
    %2809 = vmatpush.msra.mxu0 %v2761
    %2810 = vmatpush.msra.mxu0 %v2757
    %2811 = vmatpush.msra.mxu0 %v2753
    %2812 = vmatpush.msra.mxu0 %v2749
    %2813 = vmatpush.msra.mxu0 %v2745
    %2814 = vmatpush.msra.mxu0 %v2741
    %2815 = vmatpush.msra.mxu0 %v2737
    %2816 = vmatpush.msra.mxu0 %v2733
    %2817 = vmatpush.msra.mxu0 %v2729
    %2818 = vmatpush.msra.mxu0 %v2725
    %2819 = vmatpush.msra.mxu0 %v2721
    %2820 = vmatmul.f32.gmra.mxu0 %v2714
    %v2821 = vpop.f32.mrf.mxu0
    %v2822 = vadd.f32 0.0, %v2821
    %2823 = vdwg.mxu0
    %2824 = vmatpush.msra.mxu0 %v2782
    %2825 = vmatpush.msra.mxu0 %v2778
    %2826 = vmatpush.msra.mxu0 %v2774
    %2827 = vmatpush.msra.mxu0 %v2770
    %2828 = vmatpush.msra.mxu0 %v2766
    %2829 = vmatpush.msra.mxu0 %v2762
    %2830 = vmatpush.msra.mxu0 %v2758
    %2831 = vmatpush.msra.mxu0 %v2754
    %2832 = vmatpush.msra.mxu0 %v2750
    %2833 = vmatpush.msra.mxu0 %v2746
    %2834 = vmatpush.msra.mxu0 %v2742
    %2835 = vmatpush.msra.mxu0 %v2738
    %2836 = vmatpush.msra.mxu0 %v2734
    %2837 = vmatpush.msra.mxu0 %v2730
    %2838 = vmatpush.msra.mxu0 %v2726
    %2839 = vmatpush.msra.mxu0 %v2722
    %2840 = vmatmul.f32.gmra.mxu0 %v2714
    %v2841 = vpop.f32.mrf.mxu0
    %v2842 = vadd.f32 0.0, %v2841
    %2843 = vdwg.mxu0
    %2844 = vmatpush.msra.mxu0 %v2783
    %2845 = vmatpush.msra.mxu0 %v2779
    %2846 = vmatpush.msra.mxu0 %v2775
    %2847 = vmatpush.msra.mxu0 %v2771
    %2848 = vmatpush.msra.mxu0 %v2767
    %2849 = vmatpush.msra.mxu0 %v2763
    %2850 = vmatpush.msra.mxu0 %v2759
    %2851 = vmatpush.msra.mxu0 %v2755
    %2852 = vmatpush.msra.mxu0 %v2751
    %2853 = vmatpush.msra.mxu0 %v2747
    %2854 = vmatpush.msra.mxu0 %v2743
    %2855 = vmatpush.msra.mxu0 %v2739
    %2856 = vmatpush.msra.mxu0 %v2735
    %2857 = vmatpush.msra.mxu0 %v2731
    %2858 = vmatpush.msra.mxu0 %v2727
    %2859 = vmatpush.msra.mxu0 %v2723
    %2860 = vmatmul.f32.gmra.mxu0 %v2714
    %v2861 = vpop.f32.mrf.mxu0
    %v2862 = vadd.f32 0.0, %v2861
    %2863 = vdwg.mxu0
    %v2864 = vadd.f32 %v2716, %v2802
    %v2865 = vadd.f32 %v2717, %v2822
    %v2866 = vadd.f32 %v2718, %v2842
    %v2867 = vadd.f32 %v2719, %v2862
    %v2868 = vmul.f32 %v2864, 0.5
    %v2869 = vmul.f32 %v2865, 0.5
    %v2870 = vmul.f32 %v2866, 0.5
    %v2871 = vtanh.pop %v2868
    %v2872 = vtanh.pop %v2869
    %v2873 = vtanh.pop %v2870
    %v2874 = vmul.f32 %v2871, 0.5
    %v2875 = vmul.f32 %v2872, 0.5
    %v2876 = vmul.f32 %v2873, 0.5
    %v2877 = vadd.f32 %v2874, 0.5
    %v2878 = vadd.f32 %v2875, 0.5
    %v2879 = vadd.f32 %v2876, 0.5
    %v2880 = vtanh.pop %v2867
    %v2881 = vmul.f32 %v2878, %v2712
    %v2882 = vmul.f32 %v2877, %v2880
    %v2883 = vadd.f32 %v2881, %v2882
    %v2884 = vtanh.pop %v2883
    %v2885 = vmul.f32 %v2879, %v2884
    %2886 = vst [vmem:[%s1227] sm:$0xff] %v2885
    %v2887 = vld [vmem:[%s1231] sm:$0xff]
    %v2888 = vld [vmem:[%s1231 + $0x8] sm:$0xff]
    %v2889 = vld [vmem:[%s1231 + $0x10] sm:$0xff]
    %v2890 = vld [vmem:[%s1231 + $0x18] sm:$0xff]
    %v2891 = vld [vmem:[#allocation9] sm:$0xff]
    %v2892 = vld [vmem:[#allocation9 + $0x8] sm:$0xff]
    %v2893 = vld [vmem:[#allocation9 + $0x10] sm:$0xff]
    %v2894 = vld [vmem:[#allocation9 + $0x18] sm:$0xff]
    %v2895 = vld [vmem:[#allocation9 + $0x20] sm:$0xff]
    %v2896 = vld [vmem:[#allocation9 + $0x28] sm:$0xff]
    %v2897 = vld [vmem:[#allocation9 + $0x30] sm:$0xff]
    %v2898 = vld [vmem:[#allocation9 + $0x38] sm:$0xff]
    %v2899 = vld [vmem:[#allocation9 + $0x40] sm:$0xff]
    %v2900 = vld [vmem:[#allocation9 + $0x48] sm:$0xff]
    %v2901 = vld [vmem:[#allocation9 + $0x50] sm:$0xff]
    %v2902 = vld [vmem:[#allocation9 + $0x58] sm:$0xff]
    %v2903 = vld [vmem:[#allocation9 + $0x60] sm:$0xff]
    %v2904 = vld [vmem:[#allocation9 + $0x68] sm:$0xff]
    %v2905 = vld [vmem:[#allocation9 + $0x70] sm:$0xff]
    %v2906 = vld [vmem:[#allocation9 + $0x78] sm:$0xff]
    %v2907 = vld [vmem:[#allocation9 + $0x80] sm:$0xff]
    %v2908 = vld [vmem:[#allocation9 + $0x88] sm:$0xff]
    %v2909 = vld [vmem:[#allocation9 + $0x90] sm:$0xff]
    %v2910 = vld [vmem:[#allocation9 + $0x98] sm:$0xff]
    %v2911 = vld [vmem:[#allocation9 + $0xa0] sm:$0xff]
    %v2912 = vld [vmem:[#allocation9 + $0xa8] sm:$0xff]
    %v2913 = vld [vmem:[#allocation9 + $0xb0] sm:$0xff]
    %v2914 = vld [vmem:[#allocation9 + $0xb8] sm:$0xff]
    %v2915 = vld [vmem:[#allocation9 + $0xc0] sm:$0xff]
    %v2916 = vld [vmem:[#allocation9 + $0xc8] sm:$0xff]
    %v2917 = vld [vmem:[#allocation9 + $0xd0] sm:$0xff]
    %v2918 = vld [vmem:[#allocation9 + $0xd8] sm:$0xff]
    %v2919 = vld [vmem:[#allocation9 + $0xe0] sm:$0xff]
    %v2920 = vld [vmem:[#allocation9 + $0xe8] sm:$0xff]
    %v2921 = vld [vmem:[#allocation9 + $0xf0] sm:$0xff]
    %v2922 = vld [vmem:[#allocation9 + $0xf8] sm:$0xff]
    %v2923 = vld [vmem:[#allocation9 + $0x100] sm:$0xff]
    %v2924 = vld [vmem:[#allocation9 + $0x108] sm:$0xff]
    %v2925 = vld [vmem:[#allocation9 + $0x110] sm:$0xff]
    %v2926 = vld [vmem:[#allocation9 + $0x118] sm:$0xff]
    %v2927 = vld [vmem:[#allocation9 + $0x120] sm:$0xff]
    %v2928 = vld [vmem:[#allocation9 + $0x128] sm:$0xff]
    %v2929 = vld [vmem:[#allocation9 + $0x130] sm:$0xff]
    %v2930 = vld [vmem:[#allocation9 + $0x138] sm:$0xff]
    %v2931 = vld [vmem:[#allocation9 + $0x140] sm:$0xff]
    %v2932 = vld [vmem:[#allocation9 + $0x148] sm:$0xff]
    %v2933 = vld [vmem:[#allocation9 + $0x150] sm:$0xff]
    %v2934 = vld [vmem:[#allocation9 + $0x158] sm:$0xff]
    %v2935 = vld [vmem:[#allocation9 + $0x160] sm:$0xff]
    %v2936 = vld [vmem:[#allocation9 + $0x168] sm:$0xff]
    %v2937 = vld [vmem:[#allocation9 + $0x170] sm:$0xff]
    %v2938 = vld [vmem:[#allocation9 + $0x178] sm:$0xff]
    %v2939 = vld [vmem:[#allocation9 + $0x180] sm:$0xff]
    %v2940 = vld [vmem:[#allocation9 + $0x188] sm:$0xff]
    %v2941 = vld [vmem:[#allocation9 + $0x190] sm:$0xff]
    %v2942 = vld [vmem:[#allocation9 + $0x198] sm:$0xff]
    %v2943 = vld [vmem:[#allocation9 + $0x1a0] sm:$0xff]
    %v2944 = vld [vmem:[#allocation9 + $0x1a8] sm:$0xff]
    %v2945 = vld [vmem:[#allocation9 + $0x1b0] sm:$0xff]
    %v2946 = vld [vmem:[#allocation9 + $0x1b8] sm:$0xff]
    %v2947 = vld [vmem:[#allocation9 + $0x1c0] sm:$0xff]
    %v2948 = vld [vmem:[#allocation9 + $0x1c8] sm:$0xff]
    %v2949 = vld [vmem:[#allocation9 + $0x1d0] sm:$0xff]
    %v2950 = vld [vmem:[#allocation9 + $0x1d8] sm:$0xff]
    %v2951 = vld [vmem:[#allocation9 + $0x1e0] sm:$0xff]
    %v2952 = vld [vmem:[#allocation9 + $0x1e8] sm:$0xff]
    %v2953 = vld [vmem:[#allocation9 + $0x1f0] sm:$0xff]
    %v2954 = vld [vmem:[#allocation9 + $0x1f8] sm:$0xff]
    %2955 = vmatpush.msra.mxu0 %v2951
    %2956 = vmatpush.msra.mxu0 %v2947
    %2957 = vmatpush.msra.mxu0 %v2943
    %2958 = vmatpush.msra.mxu0 %v2939
    %2959 = vmatpush.msra.mxu0 %v2935
    %2960 = vmatpush.msra.mxu0 %v2931
    %2961 = vmatpush.msra.mxu0 %v2927
    %2962 = vmatpush.msra.mxu0 %v2923
    %2963 = vmatpush.msra.mxu0 %v2919
    %2964 = vmatpush.msra.mxu0 %v2915
    %2965 = vmatpush.msra.mxu0 %v2911
    %2966 = vmatpush.msra.mxu0 %v2907
    %2967 = vmatpush.msra.mxu0 %v2903
    %2968 = vmatpush.msra.mxu0 %v2899
    %2969 = vmatpush.msra.mxu0 %v2895
    %2970 = vmatpush.msra.mxu0 %v2891
    %2971 = vmatmul.f32.gmra.mxu0 %v2885
    %v2972 = vpop.f32.mrf.mxu0
    %v2973 = vadd.f32 0.0, %v2972
    %2974 = vdwg.mxu0
    %2975 = vmatpush.msra.mxu0 %v2952
    %2976 = vmatpush.msra.mxu0 %v2948
    %2977 = vmatpush.msra.mxu0 %v2944
    %2978 = vmatpush.msra.mxu0 %v2940
    %2979 = vmatpush.msra.mxu0 %v2936
    %2980 = vmatpush.msra.mxu0 %v2932
    %2981 = vmatpush.msra.mxu0 %v2928
    %2982 = vmatpush.msra.mxu0 %v2924
    %2983 = vmatpush.msra.mxu0 %v2920
    %2984 = vmatpush.msra.mxu0 %v2916
    %2985 = vmatpush.msra.mxu0 %v2912
    %2986 = vmatpush.msra.mxu0 %v2908
    %2987 = vmatpush.msra.mxu0 %v2904
    %2988 = vmatpush.msra.mxu0 %v2900
    %2989 = vmatpush.msra.mxu0 %v2896
    %2990 = vmatpush.msra.mxu0 %v2892
    %2991 = vmatmul.f32.gmra.mxu0 %v2885
    %v2992 = vpop.f32.mrf.mxu0
    %v2993 = vadd.f32 0.0, %v2992
    %2994 = vdwg.mxu0
    %2995 = vmatpush.msra.mxu0 %v2953
    %2996 = vmatpush.msra.mxu0 %v2949
    %2997 = vmatpush.msra.mxu0 %v2945
    %2998 = vmatpush.msra.mxu0 %v2941
    %2999 = vmatpush.msra.mxu0 %v2937
    %3000 = vmatpush.msra.mxu0 %v2933
    %3001 = vmatpush.msra.mxu0 %v2929
    %3002 = vmatpush.msra.mxu0 %v2925
    %3003 = vmatpush.msra.mxu0 %v2921
    %3004 = vmatpush.msra.mxu0 %v2917
    %3005 = vmatpush.msra.mxu0 %v2913
    %3006 = vmatpush.msra.mxu0 %v2909
    %3007 = vmatpush.msra.mxu0 %v2905
    %3008 = vmatpush.msra.mxu0 %v2901
    %3009 = vmatpush.msra.mxu0 %v2897
    %3010 = vmatpush.msra.mxu0 %v2893
    %3011 = vmatmul.f32.gmra.mxu0 %v2885
    %v3012 = vpop.f32.mrf.mxu0
    %v3013 = vadd.f32 0.0, %v3012
    %3014 = vdwg.mxu0
    %3015 = vmatpush.msra.mxu0 %v2954
    %3016 = vmatpush.msra.mxu0 %v2950
    %3017 = vmatpush.msra.mxu0 %v2946
    %3018 = vmatpush.msra.mxu0 %v2942
    %3019 = vmatpush.msra.mxu0 %v2938
    %3020 = vmatpush.msra.mxu0 %v2934
    %3021 = vmatpush.msra.mxu0 %v2930
    %3022 = vmatpush.msra.mxu0 %v2926
    %3023 = vmatpush.msra.mxu0 %v2922
    %3024 = vmatpush.msra.mxu0 %v2918
    %3025 = vmatpush.msra.mxu0 %v2914
    %3026 = vmatpush.msra.mxu0 %v2910
    %3027 = vmatpush.msra.mxu0 %v2906
    %3028 = vmatpush.msra.mxu0 %v2902
    %3029 = vmatpush.msra.mxu0 %v2898
    %3030 = vmatpush.msra.mxu0 %v2894
    %3031 = vmatmul.f32.gmra.mxu0 %v2885
    %v3032 = vpop.f32.mrf.mxu0
    %v3033 = vadd.f32 0.0, %v3032
    %3034 = vdwg.mxu0
    %v3035 = vadd.f32 %v2887, %v2973
    %v3036 = vadd.f32 %v2888, %v2993
    %v3037 = vadd.f32 %v2889, %v3013
    %v3038 = vadd.f32 %v2890, %v3033
    %v3039 = vmul.f32 %v3035, 0.5
    %v3040 = vmul.f32 %v3036, 0.5
    %v3041 = vmul.f32 %v3037, 0.5
    %v3042 = vtanh.pop %v3039
    %v3043 = vtanh.pop %v3040
    %v3044 = vtanh.pop %v3041
    %v3045 = vmul.f32 %v3042, 0.5
    %v3046 = vmul.f32 %v3043, 0.5
    %v3047 = vmul.f32 %v3044, 0.5
    %v3048 = vadd.f32 %v3045, 0.5
    %v3049 = vadd.f32 %v3046, 0.5
    %v3050 = vadd.f32 %v3047, 0.5
    %v3051 = vtanh.pop %v3038
    %v3052 = vmul.f32 %v3049, %v2883
    %v3053 = vmul.f32 %v3048, %v3051
    %v3054 = vadd.f32 %v3052, %v3053
    %v3055 = vtanh.pop %v3054
    %v3056 = vmul.f32 %v3050, %v3055
    %3057 = vst [vmem:[%s1402] sm:$0xff] %v3056
    %v3058 = vld [vmem:[%s1406] sm:$0xff]
    %v3059 = vld [vmem:[%s1406 + $0x8] sm:$0xff]
    %v3060 = vld [vmem:[%s1406 + $0x10] sm:$0xff]
    %v3061 = vld [vmem:[%s1406 + $0x18] sm:$0xff]
    %v3062 = vld [vmem:[#allocation9] sm:$0xff]
    %v3063 = vld [vmem:[#allocation9 + $0x8] sm:$0xff]
    %v3064 = vld [vmem:[#allocation9 + $0x10] sm:$0xff]
    %v3065 = vld [vmem:[#allocation9 + $0x18] sm:$0xff]
    %v3066 = vld [vmem:[#allocation9 + $0x20] sm:$0xff]
    %v3067 = vld [vmem:[#allocation9 + $0x28] sm:$0xff]
    %v3068 = vld [vmem:[#allocation9 + $0x30] sm:$0xff]
    %v3069 = vld [vmem:[#allocation9 + $0x38] sm:$0xff]
    %v3070 = vld [vmem:[#allocation9 + $0x40] sm:$0xff]
    %v3071 = vld [vmem:[#allocation9 + $0x48] sm:$0xff]
    %v3072 = vld [vmem:[#allocation9 + $0x50] sm:$0xff]
    %v3073 = vld [vmem:[#allocation9 + $0x58] sm:$0xff]
    %v3074 = vld [vmem:[#allocation9 + $0x60] sm:$0xff]
    %v3075 = vld [vmem:[#allocation9 + $0x68] sm:$0xff]
    %v3076 = vld [vmem:[#allocation9 + $0x70] sm:$0xff]
    %v3077 = vld [vmem:[#allocation9 + $0x78] sm:$0xff]
    %v3078 = vld [vmem:[#allocation9 + $0x80] sm:$0xff]
    %v3079 = vld [vmem:[#allocation9 + $0x88] sm:$0xff]
    %v3080 = vld [vmem:[#allocation9 + $0x90] sm:$0xff]
    %v3081 = vld [vmem:[#allocation9 + $0x98] sm:$0xff]
    %v3082 = vld [vmem:[#allocation9 + $0xa0] sm:$0xff]
    %v3083 = vld [vmem:[#allocation9 + $0xa8] sm:$0xff]
    %v3084 = vld [vmem:[#allocation9 + $0xb0] sm:$0xff]
    %v3085 = vld [vmem:[#allocation9 + $0xb8] sm:$0xff]
    %v3086 = vld [vmem:[#allocation9 + $0xc0] sm:$0xff]
    %v3087 = vld [vmem:[#allocation9 + $0xc8] sm:$0xff]
    %v3088 = vld [vmem:[#allocation9 + $0xd0] sm:$0xff]
    %v3089 = vld [vmem:[#allocation9 + $0xd8] sm:$0xff]
    %v3090 = vld [vmem:[#allocation9 + $0xe0] sm:$0xff]
    %v3091 = vld [vmem:[#allocation9 + $0xe8] sm:$0xff]
    %v3092 = vld [vmem:[#allocation9 + $0xf0] sm:$0xff]
    %v3093 = vld [vmem:[#allocation9 + $0xf8] sm:$0xff]
    %v3094 = vld [vmem:[#allocation9 + $0x100] sm:$0xff]
    %v3095 = vld [vmem:[#allocation9 + $0x108] sm:$0xff]
    %v3096 = vld [vmem:[#allocation9 + $0x110] sm:$0xff]
    %v3097 = vld [vmem:[#allocation9 + $0x118] sm:$0xff]
    %v3098 = vld [vmem:[#allocation9 + $0x120] sm:$0xff]
    %v3099 = vld [vmem:[#allocation9 + $0x128] sm:$0xff]
    %v3100 = vld [vmem:[#allocation9 + $0x130] sm:$0xff]
    %v3101 = vld [vmem:[#allocation9 + $0x138] sm:$0xff]
    %v3102 = vld [vmem:[#allocation9 + $0x140] sm:$0xff]
    %v3103 = vld [vmem:[#allocation9 + $0x148] sm:$0xff]
    %v3104 = vld [vmem:[#allocation9 + $0x150] sm:$0xff]
    %v3105 = vld [vmem:[#allocation9 + $0x158] sm:$0xff]
    %v3106 = vld [vmem:[#allocation9 + $0x160] sm:$0xff]
    %v3107 = vld [vmem:[#allocation9 + $0x168] sm:$0xff]
    %v3108 = vld [vmem:[#allocation9 + $0x170] sm:$0xff]
    %v3109 = vld [vmem:[#allocation9 + $0x178] sm:$0xff]
    %v3110 = vld [vmem:[#allocation9 + $0x180] sm:$0xff]
    %v3111 = vld [vmem:[#allocation9 + $0x188] sm:$0xff]
    %v3112 = vld [vmem:[#allocation9 + $0x190] sm:$0xff]
    %v3113 = vld [vmem:[#allocation9 + $0x198] sm:$0xff]
    %v3114 = vld [vmem:[#allocation9 + $0x1a0] sm:$0xff]
    %v3115 = vld [vmem:[#allocation9 + $0x1a8] sm:$0xff]
    %v3116 = vld [vmem:[#allocation9 + $0x1b0] sm:$0xff]
    %v3117 = vld [vmem:[#allocation9 + $0x1b8] sm:$0xff]
    %v3118 = vld [vmem:[#allocation9 + $0x1c0] sm:$0xff]
    %v3119 = vld [vmem:[#allocation9 + $0x1c8] sm:$0xff]
    %v3120 = vld [vmem:[#allocation9 + $0x1d0] sm:$0xff]
    %v3121 = vld [vmem:[#allocation9 + $0x1d8] sm:$0xff]
    %v3122 = vld [vmem:[#allocation9 + $0x1e0] sm:$0xff]
    %v3123 = vld [vmem:[#allocation9 + $0x1e8] sm:$0xff]
    %v3124 = vld [vmem:[#allocation9 + $0x1f0] sm:$0xff]
    %v3125 = vld [vmem:[#allocation9 + $0x1f8] sm:$0xff]
    %3126 = vmatpush.msra.mxu0 %v3122
    %3127 = vmatpush.msra.mxu0 %v3118
    %3128 = vmatpush.msra.mxu0 %v3114
    %3129 = vmatpush.msra.mxu0 %v3110
    %3130 = vmatpush.msra.mxu0 %v3106
    %3131 = vmatpush.msra.mxu0 %v3102
    %3132 = vmatpush.msra.mxu0 %v3098
    %3133 = vmatpush.msra.mxu0 %v3094
    %3134 = vmatpush.msra.mxu0 %v3090
    %3135 = vmatpush.msra.mxu0 %v3086
    %3136 = vmatpush.msra.mxu0 %v3082
    %3137 = vmatpush.msra.mxu0 %v3078
    %3138 = vmatpush.msra.mxu0 %v3074
    %3139 = vmatpush.msra.mxu0 %v3070
    %3140 = vmatpush.msra.mxu0 %v3066
    %3141 = vmatpush.msra.mxu0 %v3062
    %3142 = vmatmul.f32.gmra.mxu0 %v3056
    %v3143 = vpop.f32.mrf.mxu0
    %v3144 = vadd.f32 0.0, %v3143
    %3145 = vdwg.mxu0
    %3146 = vmatpush.msra.mxu0 %v3123
    %3147 = vmatpush.msra.mxu0 %v3119
    %3148 = vmatpush.msra.mxu0 %v3115
    %3149 = vmatpush.msra.mxu0 %v3111
    %3150 = vmatpush.msra.mxu0 %v3107
    %3151 = vmatpush.msra.mxu0 %v3103
    %3152 = vmatpush.msra.mxu0 %v3099
    %3153 = vmatpush.msra.mxu0 %v3095
    %3154 = vmatpush.msra.mxu0 %v3091
    %3155 = vmatpush.msra.mxu0 %v3087
    %3156 = vmatpush.msra.mxu0 %v3083
    %3157 = vmatpush.msra.mxu0 %v3079
    %3158 = vmatpush.msra.mxu0 %v3075
    %3159 = vmatpush.msra.mxu0 %v3071
    %3160 = vmatpush.msra.mxu0 %v3067
    %3161 = vmatpush.msra.mxu0 %v3063
    %3162 = vmatmul.f32.gmra.mxu0 %v3056
    %v3163 = vpop.f32.mrf.mxu0
    %v3164 = vadd.f32 0.0, %v3163
    %3165 = vdwg.mxu0
    %3166 = vmatpush.msra.mxu0 %v3124
    %3167 = vmatpush.msra.mxu0 %v3120
    %3168 = vmatpush.msra.mxu0 %v3116
    %3169 = vmatpush.msra.mxu0 %v3112
    %3170 = vmatpush.msra.mxu0 %v3108
    %3171 = vmatpush.msra.mxu0 %v3104
    %3172 = vmatpush.msra.mxu0 %v3100
    %3173 = vmatpush.msra.mxu0 %v3096
    %3174 = vmatpush.msra.mxu0 %v3092
    %3175 = vmatpush.msra.mxu0 %v3088
    %3176 = vmatpush.msra.mxu0 %v3084
    %3177 = vmatpush.msra.mxu0 %v3080
    %3178 = vmatpush.msra.mxu0 %v3076
    %3179 = vmatpush.msra.mxu0 %v3072
    %3180 = vmatpush.msra.mxu0 %v3068
    %3181 = vmatpush.msra.mxu0 %v3064
    %3182 = vmatmul.f32.gmra.mxu0 %v3056
    %v3183 = vpop.f32.mrf.mxu0
    %v3184 = vadd.f32 0.0, %v3183
    %3185 = vdwg.mxu0
    %3186 = vmatpush.msra.mxu0 %v3125
    %3187 = vmatpush.msra.mxu0 %v3121
    %3188 = vmatpush.msra.mxu0 %v3117
    %3189 = vmatpush.msra.mxu0 %v3113
    %3190 = vmatpush.msra.mxu0 %v3109
    %3191 = vmatpush.msra.mxu0 %v3105
    %3192 = vmatpush.msra.mxu0 %v3101
    %3193 = vmatpush.msra.mxu0 %v3097
    %3194 = vmatpush.msra.mxu0 %v3093
    %3195 = vmatpush.msra.mxu0 %v3089
    %3196 = vmatpush.msra.mxu0 %v3085
    %3197 = vmatpush.msra.mxu0 %v3081
    %3198 = vmatpush.msra.mxu0 %v3077
    %3199 = vmatpush.msra.mxu0 %v3073
    %3200 = vmatpush.msra.mxu0 %v3069
    %3201 = vmatpush.msra.mxu0 %v3065
    %3202 = vmatmul.f32.gmra.mxu0 %v3056
    %v3203 = vpop.f32.mrf.mxu0
    %v3204 = vadd.f32 0.0, %v3203
    %3205 = vdwg.mxu0
    %v3206 = vadd.f32 %v3058, %v3144
    %v3207 = vadd.f32 %v3059, %v3164
    %v3208 = vadd.f32 %v3060, %v3184
    %v3209 = vadd.f32 %v3061, %v3204
    %v3210 = vmul.f32 %v3206, 0.5
    %v3211 = vmul.f32 %v3207, 0.5
    %v3212 = vmul.f32 %v3208, 0.5
    %v3213 = vtanh.pop %v3210
    %v3214 = vtanh.pop %v3211
    %v3215 = vtanh.pop %v3212
    %v3216 = vmul.f32 %v3213, 0.5
    %v3217 = vmul.f32 %v3214, 0.5
    %v3218 = vmul.f32 %v3215, 0.5
    %v3219 = vadd.f32 %v3216, 0.5
    %v3220 = vadd.f32 %v3217, 0.5
    %v3221 = vadd.f32 %v3218, 0.5
    %v3222 = vtanh.pop %v3209
    %v3223 = vmul.f32 %v3220, %v3054
    %v3224 = vmul.f32 %v3219, %v3222
    %v3225 = vadd.f32 %v3223, %v3224
    %v3226 = vtanh.pop %v3225
    %v3227 = vmul.f32 %v3221, %v3226
    %3228 = vst [vmem:[%s1577] sm:$0xff] %v3227
    %v3229 = vld [vmem:[%s1581] sm:$0xff]
    %v3230 = vld [vmem:[%s1581 + $0x8] sm:$0xff]
    %v3231 = vld [vmem:[%s1581 + $0x10] sm:$0xff]
    %v3232 = vld [vmem:[%s1581 + $0x18] sm:$0xff]
    %v3233 = vld [vmem:[#allocation9] sm:$0xff]
    %v3234 = vld [vmem:[#allocation9 + $0x8] sm:$0xff]
    %v3235 = vld [vmem:[#allocation9 + $0x10] sm:$0xff]
    %v3236 = vld [vmem:[#allocation9 + $0x18] sm:$0xff]
    %v3237 = vld [vmem:[#allocation9 + $0x20] sm:$0xff]
    %v3238 = vld [vmem:[#allocation9 + $0x28] sm:$0xff]
    %v3239 = vld [vmem:[#allocation9 + $0x30] sm:$0xff]
    %v3240 = vld [vmem:[#allocation9 + $0x38] sm:$0xff]
    %v3241 = vld [vmem:[#allocation9 + $0x40] sm:$0xff]
    %v3242 = vld [vmem:[#allocation9 + $0x48] sm:$0xff]
    %v3243 = vld [vmem:[#allocation9 + $0x50] sm:$0xff]
    %v3244 = vld [vmem:[#allocation9 + $0x58] sm:$0xff]
    %v3245 = vld [vmem:[#allocation9 + $0x60] sm:$0xff]
    %v3246 = vld [vmem:[#allocation9 + $0x68] sm:$0xff]
    %v3247 = vld [vmem:[#allocation9 + $0x70] sm:$0xff]
    %v3248 = vld [vmem:[#allocation9 + $0x78] sm:$0xff]
    %v3249 = vld [vmem:[#allocation9 + $0x80] sm:$0xff]
    %v3250 = vld [vmem:[#allocation9 + $0x88] sm:$0xff]
    %v3251 = vld [vmem:[#allocation9 + $0x90] sm:$0xff]
    %v3252 = vld [vmem:[#allocation9 + $0x98] sm:$0xff]
    %v3253 = vld [vmem:[#allocation9 + $0xa0] sm:$0xff]
    %v3254 = vld [vmem:[#allocation9 + $0xa8] sm:$0xff]
    %v3255 = vld [vmem:[#allocation9 + $0xb0] sm:$0xff]
    %v3256 = vld [vmem:[#allocation9 + $0xb8] sm:$0xff]
    %v3257 = vld [vmem:[#allocation9 + $0xc0] sm:$0xff]
    %v3258 = vld [vmem:[#allocation9 + $0xc8] sm:$0xff]
    %v3259 = vld [vmem:[#allocation9 + $0xd0] sm:$0xff]
    %v3260 = vld [vmem:[#allocation9 + $0xd8] sm:$0xff]
    %v3261 = vld [vmem:[#allocation9 + $0xe0] sm:$0xff]
    %v3262 = vld [vmem:[#allocation9 + $0xe8] sm:$0xff]
    %v3263 = vld [vmem:[#allocation9 + $0xf0] sm:$0xff]
    %v3264 = vld [vmem:[#allocation9 + $0xf8] sm:$0xff]
    %v3265 = vld [vmem:[#allocation9 + $0x100] sm:$0xff]
    %v3266 = vld [vmem:[#allocation9 + $0x108] sm:$0xff]
    %v3267 = vld [vmem:[#allocation9 + $0x110] sm:$0xff]
    %v3268 = vld [vmem:[#allocation9 + $0x118] sm:$0xff]
    %v3269 = vld [vmem:[#allocation9 + $0x120] sm:$0xff]
    %v3270 = vld [vmem:[#allocation9 + $0x128] sm:$0xff]
    %v3271 = vld [vmem:[#allocation9 + $0x130] sm:$0xff]
    %v3272 = vld [vmem:[#allocation9 + $0x138] sm:$0xff]
    %v3273 = vld [vmem:[#allocation9 + $0x140] sm:$0xff]
    %v3274 = vld [vmem:[#allocation9 + $0x148] sm:$0xff]
    %v3275 = vld [vmem:[#allocation9 + $0x150] sm:$0xff]
    %v3276 = vld [vmem:[#allocation9 + $0x158] sm:$0xff]
    %v3277 = vld [vmem:[#allocation9 + $0x160] sm:$0xff]
    %v3278 = vld [vmem:[#allocation9 + $0x168] sm:$0xff]
    %v3279 = vld [vmem:[#allocation9 + $0x170] sm:$0xff]
    %v3280 = vld [vmem:[#allocation9 + $0x178] sm:$0xff]
    %v3281 = vld [vmem:[#allocation9 + $0x180] sm:$0xff]
    %v3282 = vld [vmem:[#allocation9 + $0x188] sm:$0xff]
    %v3283 = vld [vmem:[#allocation9 + $0x190] sm:$0xff]
    %v3284 = vld [vmem:[#allocation9 + $0x198] sm:$0xff]
    %v3285 = vld [vmem:[#allocation9 + $0x1a0] sm:$0xff]
    %v3286 = vld [vmem:[#allocation9 + $0x1a8] sm:$0xff]
    %v3287 = vld [vmem:[#allocation9 + $0x1b0] sm:$0xff]
    %v3288 = vld [vmem:[#allocation9 + $0x1b8] sm:$0xff]
    %v3289 = vld [vmem:[#allocation9 + $0x1c0] sm:$0xff]
    %v3290 = vld [vmem:[#allocation9 + $0x1c8] sm:$0xff]
    %v3291 = vld [vmem:[#allocation9 + $0x1d0] sm:$0xff]
    %v3292 = vld [vmem:[#allocation9 + $0x1d8] sm:$0xff]
    %v3293 = vld [vmem:[#allocation9 + $0x1e0] sm:$0xff]
    %v3294 = vld [vmem:[#allocation9 + $0x1e8] sm:$0xff]
    %v3295 = vld [vmem:[#allocation9 + $0x1f0] sm:$0xff]
    %v3296 = vld [vmem:[#allocation9 + $0x1f8] sm:$0xff]
    %3297 = vmatpush.msra.mxu0 %v3293
    %3298 = vmatpush.msra.mxu0 %v3289
    %3299 = vmatpush.msra.mxu0 %v3285
    %3300 = vmatpush.msra.mxu0 %v3281
    %3301 = vmatpush.msra.mxu0 %v3277
    %3302 = vmatpush.msra.mxu0 %v3273
    %3303 = vmatpush.msra.mxu0 %v3269
    %3304 = vmatpush.msra.mxu0 %v3265
    %3305 = vmatpush.msra.mxu0 %v3261
    %3306 = vmatpush.msra.mxu0 %v3257
    %3307 = vmatpush.msra.mxu0 %v3253
    %3308 = vmatpush.msra.mxu0 %v3249
    %3309 = vmatpush.msra.mxu0 %v3245
    %3310 = vmatpush.msra.mxu0 %v3241
    %3311 = vmatpush.msra.mxu0 %v3237
    %3312 = vmatpush.msra.mxu0 %v3233
    %3313 = vmatmul.f32.gmra.mxu0 %v3227
    %v3314 = vpop.f32.mrf.mxu0
    %v3315 = vadd.f32 0.0, %v3314
    %3316 = vdwg.mxu0
    %3317 = vmatpush.msra.mxu0 %v3294
    %3318 = vmatpush.msra.mxu0 %v3290
    %3319 = vmatpush.msra.mxu0 %v3286
    %3320 = vmatpush.msra.mxu0 %v3282
    %3321 = vmatpush.msra.mxu0 %v3278
    %3322 = vmatpush.msra.mxu0 %v3274
    %3323 = vmatpush.msra.mxu0 %v3270
    %3324 = vmatpush.msra.mxu0 %v3266
    %3325 = vmatpush.msra.mxu0 %v3262
    %3326 = vmatpush.msra.mxu0 %v3258
    %3327 = vmatpush.msra.mxu0 %v3254
    %3328 = vmatpush.msra.mxu0 %v3250
    %3329 = vmatpush.msra.mxu0 %v3246
    %3330 = vmatpush.msra.mxu0 %v3242
    %3331 = vmatpush.msra.mxu0 %v3238
    %3332 = vmatpush.msra.mxu0 %v3234
    %3333 = vmatmul.f32.gmra.mxu0 %v3227
    %v3334 = vpop.f32.mrf.mxu0
    %v3335 = vadd.f32 0.0, %v3334
    %3336 = vdwg.mxu0
    %3337 = vmatpush.msra.mxu0 %v3295
    %3338 = vmatpush.msra.mxu0 %v3291
    %3339 = vmatpush.msra.mxu0 %v3287
    %3340 = vmatpush.msra.mxu0 %v3283
    %3341 = vmatpush.msra.mxu0 %v3279
    %3342 = vmatpush.msra.mxu0 %v3275
    %3343 = vmatpush.msra.mxu0 %v3271
    %3344 = vmatpush.msra.mxu0 %v3267
    %3345 = vmatpush.msra.mxu0 %v3263
    %3346 = vmatpush.msra.mxu0 %v3259
    %3347 = vmatpush.msra.mxu0 %v3255
    %3348 = vmatpush.msra.mxu0 %v3251
    %3349 = vmatpush.msra.mxu0 %v3247
    %3350 = vmatpush.msra.mxu0 %v3243
    %3351 = vmatpush.msra.mxu0 %v3239
    %3352 = vmatpush.msra.mxu0 %v3235
    %3353 = vmatmul.f32.gmra.mxu0 %v3227
    %v3354 = vpop.f32.mrf.mxu0
    %v3355 = vadd.f32 0.0, %v3354
    %3356 = vdwg.mxu0
    %3357 = vmatpush.msra.mxu0 %v3296
    %3358 = vmatpush.msra.mxu0 %v3292
    %3359 = vmatpush.msra.mxu0 %v3288
    %3360 = vmatpush.msra.mxu0 %v3284
    %3361 = vmatpush.msra.mxu0 %v3280
    %3362 = vmatpush.msra.mxu0 %v3276
    %3363 = vmatpush.msra.mxu0 %v3272
    %3364 = vmatpush.msra.mxu0 %v3268
    %3365 = vmatpush.msra.mxu0 %v3264
    %3366 = vmatpush.msra.mxu0 %v3260
    %3367 = vmatpush.msra.mxu0 %v3256
    %3368 = vmatpush.msra.mxu0 %v3252
    %3369 = vmatpush.msra.mxu0 %v3248
    %3370 = vmatpush.msra.mxu0 %v3244
    %3371 = vmatpush.msra.mxu0 %v3240
    %3372 = vmatpush.msra.mxu0 %v3236
    %3373 = vmatmul.f32.gmra.mxu0 %v3227
    %v3374 = vpop.f32.mrf.mxu0
    %v3375 = vadd.f32 0.0, %v3374
    %3376 = vdwg.mxu0
    %v3377 = vadd.f32 %v3229, %v3315
    %v3378 = vadd.f32 %v3230, %v3335
    %v3379 = vadd.f32 %v3231, %v3355
    %v3380 = vadd.f32 %v3232, %v3375
    %v3381 = vmul.f32 %v3377, 0.5
    %v3382 = vmul.f32 %v3378, 0.5
    %v3383 = vmul.f32 %v3379, 0.5
    %v3384 = vtanh.pop %v3381
    %v3385 = vtanh.pop %v3382
    %v3386 = vtanh.pop %v3383
    %v3387 = vmul.f32 %v3384, 0.5
    %v3388 = vmul.f32 %v3385, 0.5
    %v3389 = vmul.f32 %v3386, 0.5
    %v3390 = vadd.f32 %v3387, 0.5
    %v3391 = vadd.f32 %v3388, 0.5
    %v3392 = vadd.f32 %v3389, 0.5
    %v3393 = vtanh.pop %v3380
    %v3394 = vmul.f32 %v3391, %v3225
    %v3395 = vmul.f32 %v3390, %v3393
    %v3396 = vadd.f32 %v3394, %v3395
    %v3397 = vtanh.pop %v3396
    %v3398 = vmul.f32 %v3392, %v3397
    %3399 = vst [vmem:[%s1752] sm:$0xff] %v3398
    %v3400 = vld [vmem:[#allocation3] sm:$0xff]
    %v3401 = vld [vmem:[#allocation3 + $0x8] sm:$0xff]
    %v3402 = vld [vmem:[#allocation3 + $0x10] sm:$0xff]
    %v3403 = vld [vmem:[#allocation3 + $0x18] sm:$0xff]
    %v3404 = vld [vmem:[#allocation3 + $0x20] sm:$0xff]
    %v3405 = vld [vmem:[#allocation3 + $0x28] sm:$0xff]
    %v3406 = vld [vmem:[#allocation3 + $0x30] sm:$0xff]
    %v3407 = vld [vmem:[#allocation3 + $0x38] sm:$0xff]
    %v3408 = vld [vmem:[#allocation10] sm:$0xff]
    %v3409 = vld [vmem:[#allocation10 + $0x8] sm:$0xff]
    %v3410 = vld [vmem:[#allocation10 + $0x10] sm:$0xff]
    %v3411 = vld [vmem:[#allocation10 + $0x18] sm:$0xff]
    %v3412 = vld [vmem:[#allocation10 + $0x20] sm:$0xff]
    %v3413 = vld [vmem:[#allocation10 + $0x28] sm:$0xff]
    %v3414 = vld [vmem:[#allocation10 + $0x30] sm:$0xff]
    %v3415 = vld [vmem:[#allocation10 + $0x38] sm:$0xff]
    %v3416 = vld [vmem:[#allocation10 + $0x40] sm:$0xff]
    %v3417 = vld [vmem:[#allocation10 + $0x48] sm:$0xff]
    %v3418 = vld [vmem:[#allocation10 + $0x50] sm:$0xff]
    %v3419 = vld [vmem:[#allocation10 + $0x58] sm:$0xff]
    %v3420 = vld [vmem:[#allocation10 + $0x60] sm:$0xff]
    %v3421 = vld [vmem:[#allocation10 + $0x68] sm:$0xff]
    %v3422 = vld [vmem:[#allocation10 + $0x70] sm:$0xff]
    %v3423 = vld [vmem:[#allocation10 + $0x78] sm:$0xff]
    %v3424 = vld [vmem:[%s8] sm:$0x1]
    %v3426 = vperm.slane %v3424, 0
    %3428 = vmatpush.msra.mxu0 %v3423
    %3429 = vmatpush.msra.mxu0 %v3422
    %3430 = vmatpush.msra.mxu0 %v3421
    %3431 = vmatpush.msra.mxu0 %v3420
    %3432 = vmatpush.msra.mxu0 %v3419
    %3433 = vmatpush.msra.mxu0 %v3418
    %3434 = vmatpush.msra.mxu0 %v3417
    %3435 = vmatpush.msra.mxu0 %v3416
    %3436 = vmatpush.msra.mxu0 %v3415
    %3437 = vmatpush.msra.mxu0 %v3414
    %3438 = vmatpush.msra.mxu0 %v3413
    %3439 = vmatpush.msra.mxu0 %v3412
    %3440 = vmatpush.msra.mxu0 %v3411
    %3441 = vmatpush.msra.mxu0 %v3410
    %3442 = vmatpush.msra.mxu0 %v3409
    %3443 = vmatpush.msra.mxu0 %v3408
    %3444 = vmatmul.f32.gmra.mxu0 %v3400
    %v3445 = vpop.f32.mrf.mxu0
    %v3446 = vadd.f32 %v3426, %v3445
    %3447 = vmatmul.f32.gmra.mxu0 %v3401
    %v3448 = vpop.f32.mrf.mxu0
    %v3449 = vadd.f32 %v3426, %v3448
    %3450 = vmatmul.f32.gmra.mxu0 %v3402
    %v3451 = vpop.f32.mrf.mxu0
    %v3452 = vadd.f32 %v3426, %v3451
    %3453 = vmatmul.f32.gmra.mxu0 %v3403
    %v3454 = vpop.f32.mrf.mxu0
    %v3455 = vadd.f32 %v3426, %v3454
    %3456 = vmatmul.f32.gmra.mxu0 %v3404
    %v3457 = vpop.f32.mrf.mxu0
    %v3458 = vadd.f32 %v3426, %v3457
    %3459 = vmatmul.f32.gmra.mxu0 %v3405
    %v3460 = vpop.f32.mrf.mxu0
    %v3461 = vadd.f32 %v3426, %v3460
    %3462 = vmatmul.f32.gmra.mxu0 %v3406
    %v3463 = vpop.f32.mrf.mxu0
    %v3464 = vadd.f32 %v3426, %v3463
    %3465 = vmatmul.f32.gmra.mxu0 %v3407
    %v3466 = vpop.f32.mrf.mxu0
    %v3467 = vadd.f32 %v3426, %v3466
    %3468 = vdwg.mxu0
    %3469 = vst [vmem:[#allocation12] sm:$0xff] %v3446
    %3470 = vst [vmem:[#allocation12 + $0x8] sm:$0xff] %v3449
    %3471 = vst [vmem:[#allocation12 + $0x10] sm:$0xff] %v3452
    %3472 = vst [vmem:[#allocation12 + $0x18] sm:$0xff] %v3455
    %3473 = vst [vmem:[#allocation12 + $0x20] sm:$0xff] %v3458
    %3474 = vst [vmem:[#allocation12 + $0x28] sm:$0xff] %v3461
    %3475 = vst [vmem:[#allocation12 + $0x30] sm:$0xff] %v3464
    %3476 = vst [vmem:[#allocation12 + $0x38] sm:$0xff] %v3467
    // Predicated region
    $region54: #{tpu_custom_call.1} parent=1 // pred_check
      _
    $region55: #{tpu_custom_call.1} parent=1 // pred_check_branch
      %3478 = sbr.rel (0) target = $region57
    $region56: #{tpu_custom_call.1} parent=1 // pred_region
      %3480 = vsyncadd [#allocation6], 0
      %s3481 = sshll.u32 [#allocation12], 4
      %s3482 = int_to_ptr.vmem [resolvable:$true] %s3481
      %s3483 = sshll.u32 %s9, 4
      %s3484 = int_to_ptr.hbm [resolvable:$true] %s3483
      %3489 = dma.vmem_to_hbm [thread:$0]  %s3482, 1024, %s3484, [#allocation6], 128, 128, 8
    $region57: #{tpu_custom_call.1} parent=1 // pred_fallthru
      _
    // Predicated region
    $region58: #{tpu_custom_call.1} parent=1 // pred_check
      _
    $region59: #{tpu_custom_call.1} parent=1 // pred_check_branch
      %3491 = sbr.rel (0) target = $region61
    $region60: #{tpu_custom_call.1} parent=1 // pred_region
      %3493 = dma.done [#allocation6], 1024
    $region61: #{tpu_custom_call.1} parent=1 // pred_fallthru
      _
    %3494 = vsyncpa [#allocation5], 1
    %3495 = vsyncpa [#allocation8], 1
    %3496 = vsyncpa [#allocation11], 1
    %3497 = vsyncpa [#allocation6], 1

</llo_original>
